<compile_context>
chip_gen: v5e
topology: v5e:2x2
jax: 0.10.0
libtpu: 0.0.40
codegen_flags: <defaults>
</compile_context>

<pallas_src>
import functools

import jax
import jax.numpy as jnp
from jax.experimental import pallas as pl
from jax.experimental.pallas import tpu as pltpu


def _decoder_chunk_kernel(
    emb_ref,     # (TC, B, E)     target embeddings for this time chunk
    w_x_ref,     # (E + 2H, 4H)   fused LSTM weights [W_xe ; W_xf ; W_hh]
    b_ref,       # (1, 4H)        LSTM bias (b_ih + b_hh), f32
    mbp_t_ref,   # (H, B*S)       (memory_bank @ W_a^T)^T   (attention keys)
    mb_ref,      # (B*S, H)       memory bank flattened over (batch, src)
    mask_ref,    # (B, B*S)       additive mask: 0 valid / -1e9 invalid, f32
    w_c_ref,     # (2H, H)        fused output projection [W_c_ctx ; W_c_hid]
    h0_ref, c0_ref, f0_ref,       # (B, H) initial hidden / cell / input feed
    out_ref,     # (TC, B, H)     dec_outs chunk
    attn_ref,    # (TC, B, B*S)   block-diagonal attention chunk (lane-dense)
    h_sc, c_sc, f_sc,             # (B, H) f32 carries across time chunks
    *, hidden_size, tc, compute_dtype,
):
    H = hidden_size
    cd = compute_dtype

    @pl.when(pl.program_id(0) == 0)
    def _init():
        h_sc[...] = h0_ref[...]
        c_sc[...] = c0_ref[...]
        f_sc[...] = f0_ref[...]

    # Grid-invariant operands, hoisted out of the unrolled time loop.
    w_x = w_x_ref[...]
    bias = b_ref[...]
    mbp_t = mbp_t_ref[...]
    mb = mb_ref[...]
    mask = mask_ref[...]
    w_c = w_c_ref[...]

    h = h_sc[...]
    c = c_sc[...]
    feed = f_sc[...]

    # Short, static time loop -> fully unrolled at trace time (static indices,
    # lets the LLO scheduler overlap step t+1 matmul pushes with step t tail).
    for t in range(tc):
        emb_t = emb_ref[t]                                       # (B, E)

        # ---- LSTM cell: one fused matmul over [emb ; input_feed ; h] ----
        x_cat = jnp.concatenate(
            [emb_t.astype(cd), feed.astype(cd), h.astype(cd)], axis=1)
        gates = jnp.dot(x_cat, w_x,
                        preferred_element_type=jnp.float32) + bias   # (B, 4H)
        i_g = jax.nn.sigmoid(gates[:, 0 * H:1 * H])
        f_g = jax.nn.sigmoid(gates[:, 1 * H:2 * H])
        g_g = jnp.tanh(gates[:, 2 * H:3 * H])
        o_g = jax.nn.sigmoid(gates[:, 3 * H:4 * H])
        c = f_g * c + i_g * g_g
        h = o_g * jnp.tanh(c)

        # ---- GlobalAttention ("general", softmax), lane-dense on MXU ----
        # scores over all B*S columns; cross-batch & out-of-length columns
        # are masked to -1e9 -> exactly 0 after softmax (exp underflow).
        scores = jnp.dot(h.astype(cd), mbp_t,
                         preferred_element_type=jnp.float32) + mask  # (B, B*S)
        m = jnp.max(scores, axis=-1, keepdims=True)
        e = jnp.exp(scores - m)
        align = e * pl.reciprocal(jnp.sum(e, axis=-1, keepdims=True),
                                  approx=True)                       # (B, B*S)
        ctx = jnp.dot(align.astype(cd), mb,
                      preferred_element_type=jnp.float32)            # (B, H)

        # ---- output projection: fused [ctx ; h] @ [W_c_ctx ; W_c_hid] ---
        ch = jnp.concatenate([ctx.astype(cd), h.astype(cd)], axis=1)
        attn_h = jnp.tanh(jnp.dot(ch, w_c,
                                  preferred_element_type=jnp.float32))

        feed = attn_h            # dropout p=0.0 -> identity; next input feed
        out_ref[t] = attn_h.astype(out_ref.dtype)
        attn_ref[t] = align.astype(attn_ref.dtype)

    h_sc[...] = h
    c_sc[...] = c
    f_sc[...] = feed


def rnn_decoder_forward(emb, memory_bank_bsh, memory_lengths, params,
                        h0, c0, input_feed0, *,
                        compute_dtype=jnp.float32, time_chunk=None):
    """Full decoder forward (all time steps) in one pallas_call.

    Requires B % 8 == 0 and H % 128 == 0 (and here B*S is the lane width of
    the flattened attention; B*S = 128 gives exactly one unmasked vreg row).
    """
    T, B, E = emb.shape
    _, S, H = memory_bank_bsh.shape
    BS = B * S

    if time_chunk is None:
        time_chunk = min(T, 8)
    TC = time_chunk
    T_pad = ((T + TC - 1) // TC) * TC
    if T_pad != T:
        emb = jnp.concatenate(
            [emb, jnp.zeros((T_pad - T, B, E), emb.dtype)], axis=0)
    num_chunks = T_pad // TC

    # ---- parameter fusion / hoisting (one-time XLA glue) -----------------
    w_x = jnp.concatenate(
        [params["w_xe"], params["w_xf"], params["w_hh"]], axis=0)  # (E+2H,4H)
    w_c = jnp.concatenate(
        [params["w_c_ctx"], params["w_c_hid"]], axis=0)            # (2H, H)
    bias = params["b"].reshape(1, 4 * H).astype(jnp.float32)

    mb_flat = memory_bank_bsh.reshape(BS, H)
    mbp_t = params["w_a"] @ mb_flat.T                              # (H, BS)

    # Additive mask: for row b, only columns b*S..b*S+S-1 with s < length[b].
    lengths = memory_lengths.astype(jnp.int32)
    col_b = jnp.repeat(jnp.arange(B, dtype=jnp.int32), S)          # (BS,)
    col_s = jnp.tile(jnp.arange(S, dtype=jnp.int32), B)            # (BS,)
    valid = ((col_b[None, :] == jnp.arange(B, dtype=jnp.int32)[:, None])
             & (col_s[None, :] < lengths[:, None]))
    mask_bias = jnp.where(valid, 0.0, -1e9).astype(jnp.float32)    # (B, BS)

    cd = compute_dtype
    emb_c = emb.astype(cd)
    w_x_c = w_x.astype(cd)
    w_c_c = w_c.astype(cd)
    mb_c = mb_flat.astype(cd)
    mbp_t_c = mbp_t.astype(cd)

    kernel = functools.partial(_decoder_chunk_kernel, hidden_size=H,
                               tc=TC, compute_dtype=cd)

    grid_spec = pltpu.PrefetchScalarGridSpec(
        num_scalar_prefetch=0,
        grid=(num_chunks,),
        in_specs=[
            pl.BlockSpec((TC, B, E), lambda i: (i, 0, 0)),     # emb chunk
            pl.BlockSpec((E + 2 * H, 4 * H), lambda i: (0, 0)),
            pl.BlockSpec((1, 4 * H), lambda i: (0, 0)),
            pl.BlockSpec((H, BS), lambda i: (0, 0)),
            pl.BlockSpec((BS, H), lambda i: (0, 0)),
            pl.BlockSpec((B, BS), lambda i: (0, 0)),
            pl.BlockSpec((2 * H, H), lambda i: (0, 0)),
            pl.BlockSpec((B, H), lambda i: (0, 0)),
            pl.BlockSpec((B, H), lambda i: (0, 0)),
            pl.BlockSpec((B, H), lambda i: (0, 0)),
        ],
        out_specs=[
            pl.BlockSpec((TC, B, H), lambda i: (i, 0, 0)),
            pl.BlockSpec((TC, B, BS), lambda i: (i, 0, 0)),
        ],
        scratch_shapes=[
            pltpu.VMEM((B, H), jnp.float32),   # h carry
            pltpu.VMEM((B, H), jnp.float32),   # c carry
            pltpu.VMEM((B, H), jnp.float32),   # input-feed carry
        ],
    )

    dec_outs, attn_full = pl.pallas_call(
        kernel,
        out_shape=(
            jax.ShapeDtypeStruct((T_pad, B, H), jnp.float32),
            jax.ShapeDtypeStruct((T_pad, B, BS), jnp.float32),
        ),
        grid_spec=grid_spec,
        compiler_params=pltpu.CompilerParams(
            dimension_semantics=("arbitrary",)),   # sequential recurrence
    )(emb_c, w_x_c, bias, mbp_t_c, mb_c, mask_bias, w_c_c,
      h0.astype(jnp.float32), c0.astype(jnp.float32),
      input_feed0.astype(jnp.float32))

    dec_outs = dec_outs[:T]
    # Extract the own-batch diagonal block (off-diagonal entries are 0).
    b_idx = jnp.arange(B)
    attns_std = attn_full[:T].reshape(T, B, B, S)[:, b_idx, b_idx, :]
    return dec_outs, {"std": attns_std}


def _reference_forward(emb, mb_bsh, lengths, params, h0, c0, feed0):
    """Pure-JAX reference of the same recurrence (for verification)."""
    T, B, E = emb.shape
    _, S, H = mb_bsh.shape
    pos = jnp.arange(S)[None, :]
    mask = pos < lengths[:, None]

    def step(carry, emb_t):
        h, c, feed = carry
        gates = (emb_t @ params["w_xe"] + feed @ params["w_xf"]
                 + h @ params["w_hh"] + params["b"])
        i = jax.nn.sigmoid(gates[:, 0 * H:1 * H])
        f = jax.nn.sigmoid(gates[:, 1 * H:2 * H])
        g = jnp.tanh(gates[:, 2 * H:3 * H])
        o = jax.nn.sigmoid(gates[:, 3 * H:4 * H])
        c = f * c + i * g
        h = o * jnp.tanh(c)
        scores = jnp.einsum('bh,bsh->bs', h @ params["w_a"], mb_bsh)
        scores = jnp.where(mask, scores, -1e9)
        align = jax.nn.softmax(scores, axis=-1)
        ctx = jnp.einsum('bs,bsh->bh', align, mb_bsh)
        attn_h = jnp.tanh(ctx @ params["w_c_ctx"] + h @ params["w_c_hid"])
        return (h, c, attn_h), (attn_h, align)

    _, (outs, aligns) = jax.lax.scan(step, (h0, c0, feed0), emb)
    return outs, aligns


if __name__ == "__main__":
    # Small shapes consistent with the module's forward signature.
    T = 8      # tgt_len
    B = 8      # batch
    S = 16     # src_len       (B*S = 128 -> lane-dense attention)
    H = 128    # hidden_size
    E = 128    # embedding dim (LSTM input size = E + H via input feed)

    key = jax.random.PRNGKey(0)
    ks = jax.random.split(key, 12)
    scale = 0.1

    params = {
        "w_xe": scale * jax.random.normal(ks[0], (E, 4 * H), jnp.float32),
        "w_xf": scale * jax.random.normal(ks[1], (H, 4 * H), jnp.float32),
        "w_hh": scale * jax.random.normal(ks[2], (H, 4 * H), jnp.float32),
        "b":    scale * jax.random.normal(ks[3], (1, 4 * H), jnp.float32),
        "w_a":      scale * jax.random.normal(ks[4], (H, H), jnp.float32),
        "w_c_ctx":  scale * jax.random.normal(ks[5], (H, H), jnp.float32),
        "w_c_hid":  scale * jax.random.normal(ks[6], (H, H), jnp.float32),
    }

    # tgt token ids -> embeddings (embedding lookup is glue, not the hot path)
    vocab = 50
    emb_table = scale * jax.random.normal(ks[7], (vocab, E), jnp.float32)
    tgt = jax.random.randint(ks[8], (T, B, 1), 0, vocab)    # (tgt_len, batch, nfeats)
    emb = emb_table[tgt[:, :, 0]]                           # (T, B, E)

    # encoder memory bank (src_len, batch, hidden) -> (B, S, H)
    memory_bank = scale * jax.random.normal(ks[9], (S, B, H), jnp.float32)
    memory_bank_bsh = jnp.transpose(memory_bank, (1, 0, 2))
    memory_lengths = jax.random.randint(ks[10], (B,), S // 2, S + 1)

    # init_state: hidden from encoder final, input_feed zeros
    h0 = scale * jax.random.normal(ks[11], (B, H), jnp.float32)
    c0 = scale * jax.random.normal(jax.random.fold_in(key, 99), (B, H), jnp.float32)
    input_feed0 = jnp.zeros((B, H), jnp.float32)

    ref_outs, ref_attn = _reference_forward(
        emb, memory_bank_bsh, memory_lengths, params, h0, c0, input_feed0)

    # ---- f32 run (tight tolerance) ---------------------------------------
    dec_outs, attns = rnn_decoder_forward(
        emb, memory_bank_bsh, memory_lengths, params, h0, c0, input_feed0,
        compute_dtype=jnp.float32)
    dec_outs = jax.block_until_ready(dec_outs)
    attns_std = jax.block_until_ready(attns["std"])
    assert jnp.allclose(dec_outs, ref_outs, atol=3e-3, rtol=3e-3), "dec_outs mismatch (f32)"
    assert jnp.allclose(attns_std, ref_attn, atol=3e-3, rtol=3e-3), "attn mismatch (f32)"

    # ---- bf16 matmul operands, f32 accumulation/state (v6e/v7x path) -----
    dec_outs_bf, attns_bf = rnn_decoder_forward(
        emb, memory_bank_bsh, memory_lengths, params, h0, c0, input_feed0,
        compute_dtype=jnp.bfloat16)
    dec_outs_bf = jax.block_until_ready(dec_outs_bf)
    attns_bf_std = jax.block_until_ready(attns_bf["std"])
    assert jnp.allclose(dec_outs_bf, ref_outs, atol=2e-2, rtol=2e-2), "dec_outs mismatch (bf16)"
    assert jnp.allclose(attns_bf_std, ref_attn, atol=2e-2, rtol=2e-2), "attn mismatch (bf16)"

    print("KERNEL_OK")
</pallas_src>

<mosaic_0001>
module attributes {stable_mosaic.version = 11 : i64} {
  func.func @_decoder_chunk_kernel(%arg0: i32, %arg1: memref<8x8x128xf32, #tpu.memory_space<vmem>>, %arg2: memref<384x512xf32, #tpu.memory_space<vmem>>, %arg3: memref<1x512xf32, #tpu.memory_space<vmem>>, %arg4: memref<128x128xf32, #tpu.memory_space<vmem>>, %arg5: memref<128x128xf32, #tpu.memory_space<vmem>>, %arg6: memref<8x128xf32, #tpu.memory_space<vmem>>, %arg7: memref<256x128xf32, #tpu.memory_space<vmem>>, %arg8: memref<8x128xf32, #tpu.memory_space<vmem>>, %arg9: memref<8x128xf32, #tpu.memory_space<vmem>>, %arg10: memref<8x128xf32, #tpu.memory_space<vmem>>, %arg11: memref<8x8x128xf32, #tpu.memory_space<vmem>>, %arg12: memref<8x8x128xf32, #tpu.memory_space<vmem>>, %arg13: memref<8x128xf32, #tpu.memory_space<vmem>>, %arg14: memref<8x128xf32, #tpu.memory_space<vmem>>, %arg15: memref<8x128xf32, #tpu.memory_space<vmem>>) attributes {dimension_semantics = [#tpu.dimension_semantics<arbitrary>], iteration_bounds = array<i64: 1>, scalar_prefetch = 0 : i64, scratch_operands = 3 : i64, tpu.core_type = #tpu.core_type<tc>, window_params = [{transform_indices = @transform_0, window_bounds = array<i64: 8, 8, 128>}, {pipeline_mode = #tpu.pipeline_mode<synchronous>, transform_indices = @transform_1, window_bounds = array<i64: 384, 512>}, {pipeline_mode = #tpu.pipeline_mode<synchronous>, transform_indices = @transform_2, window_bounds = array<i64: 1, 512>}, {pipeline_mode = #tpu.pipeline_mode<synchronous>, transform_indices = @transform_3, window_bounds = array<i64: 128, 128>}, {pipeline_mode = #tpu.pipeline_mode<synchronous>, transform_indices = @transform_4, window_bounds = array<i64: 128, 128>}, {pipeline_mode = #tpu.pipeline_mode<synchronous>, transform_indices = @transform_5, window_bounds = array<i64: 8, 128>}, {pipeline_mode = #tpu.pipeline_mode<synchronous>, transform_indices = @transform_6, window_bounds = array<i64: 256, 128>}, {pipeline_mode = #tpu.pipeline_mode<synchronous>, transform_indices = @transform_7, window_bounds = array<i64: 8, 128>}, {pipeline_mode = #tpu.pipeline_mode<synchronous>, transform_indices = @transform_8, window_bounds = array<i64: 8, 128>}, {pipeline_mode = #tpu.pipeline_mode<synchronous>, transform_indices = @transform_9, window_bounds = array<i64: 8, 128>}, {transform_indices = @transform_10, window_bounds = array<i64: 8, 8, 128>}, {transform_indices = @transform_11, window_bounds = array<i64: 8, 8, 128>}]} {
    %c0_i32 = arith.constant 0 : i32
    %0 = arith.cmpi eq, %arg0, %c0_i32 : i32
    %1 = arith.extui %0 : i1 to i32
    %c0_i32_0 = arith.constant 0 : i32
    %2 = arith.cmpi ne, %1, %c0_i32_0 : i32
    scf.if %2 {
      %c0_160 = arith.constant 0 : index
      %c0_161 = arith.constant 0 : index
      %439 = vector.load %arg8[%c0_160, %c0_161] : memref<8x128xf32, #tpu.memory_space<vmem>>, vector<8x128xf32>
      %c0_162 = arith.constant 0 : index
      %c0_163 = arith.constant 0 : index
      %440 = vector.load %arg13[%c0_162, %c0_163] : memref<8x128xf32, #tpu.memory_space<vmem>>, vector<8x128xf32>
      tpu.vector_store %arg13[%c0_162, %c0_163], %439 {strides = array<i32>} : memref<8x128xf32, #tpu.memory_space<vmem>>, vector<8x128xf32>,
      %c0_164 = arith.constant 0 : index
      %c0_165 = arith.constant 0 : index
      %441 = vector.load %arg9[%c0_164, %c0_165] : memref<8x128xf32, #tpu.memory_space<vmem>>, vector<8x128xf32>
      %c0_166 = arith.constant 0 : index
      %c0_167 = arith.constant 0 : index
      %442 = vector.load %arg14[%c0_166, %c0_167] : memref<8x128xf32, #tpu.memory_space<vmem>>, vector<8x128xf32>
      tpu.vector_store %arg14[%c0_166, %c0_167], %441 {strides = array<i32>} : memref<8x128xf32, #tpu.memory_space<vmem>>, vector<8x128xf32>,
      %c0_168 = arith.constant 0 : index
      %c0_169 = arith.constant 0 : index
      %443 = vector.load %arg10[%c0_168, %c0_169] : memref<8x128xf32, #tpu.memory_space<vmem>>, vector<8x128xf32>
      %c0_170 = arith.constant 0 : index
      %c0_171 = arith.constant 0 : index
      %444 = vector.load %arg15[%c0_170, %c0_171] : memref<8x128xf32, #tpu.memory_space<vmem>>, vector<8x128xf32>
      tpu.vector_store %arg15[%c0_170, %c0_171], %443 {strides = array<i32>} : memref<8x128xf32, #tpu.memory_space<vmem>>, vector<8x128xf32>,
    } else {
    }
    %c0 = arith.constant 0 : index
    %c0_1 = arith.constant 0 : index
    %3 = vector.load %arg2[%c0, %c0_1] : memref<384x512xf32, #tpu.memory_space<vmem>>, vector<384x512xf32>
    %c0_2 = arith.constant 0 : index
    %c0_3 = arith.constant 0 : index
    %4 = vector.load %arg3[%c0_2, %c0_3] : memref<1x512xf32, #tpu.memory_space<vmem>>, vector<1x512xf32>
    %c0_4 = arith.constant 0 : index
    %c0_5 = arith.constant 0 : index
    %5 = vector.load %arg4[%c0_4, %c0_5] : memref<128x128xf32, #tpu.memory_space<vmem>>, vector<128x128xf32>
    %c0_6 = arith.constant 0 : index
    %c0_7 = arith.constant 0 : index
    %6 = vector.load %arg5[%c0_6, %c0_7] : memref<128x128xf32, #tpu.memory_space<vmem>>, vector<128x128xf32>
    %c0_8 = arith.constant 0 : index
    %c0_9 = arith.constant 0 : index
    %7 = vector.load %arg6[%c0_8, %c0_9] : memref<8x128xf32, #tpu.memory_space<vmem>>, vector<8x128xf32>
    %c0_10 = arith.constant 0 : index
    %c0_11 = arith.constant 0 : index
    %8 = vector.load %arg7[%c0_10, %c0_11] : memref<256x128xf32, #tpu.memory_space<vmem>>, vector<256x128xf32>
    %c0_12 = arith.constant 0 : index
    %c0_13 = arith.constant 0 : index
    %9 = vector.load %arg13[%c0_12, %c0_13] : memref<8x128xf32, #tpu.memory_space<vmem>>, vector<8x128xf32>
    %c0_14 = arith.constant 0 : index
    %c0_15 = arith.constant 0 : index
    %10 = vector.load %arg14[%c0_14, %c0_15] : memref<8x128xf32, #tpu.memory_space<vmem>>, vector<8x128xf32>
    %c0_16 = arith.constant 0 : index
    %c0_17 = arith.constant 0 : index
    %11 = vector.load %arg15[%c0_16, %c0_17] : memref<8x128xf32, #tpu.memory_space<vmem>>, vector<8x128xf32>
    %c0_18 = arith.constant 0 : index
    %c0_19 = arith.constant 0 : index
    %c0_20 = arith.constant 0 : index
    %12 = vector.load %arg1[%c0_18, %c0_19, %c0_20] : memref<8x8x128xf32, #tpu.memory_space<vmem>>, vector<1x8x128xf32>
    %13 = vector.shape_cast %12 : vector<1x8x128xf32> to vector<8x128xf32>
    %14 = tpu.concatenate %13, %11, %9 in 1 : vector<8x128xf32>, vector<8x128xf32>, vector<8x128xf32> -> vector<8x384xf32>
    %cst = arith.constant dense<0.000000e+00> : vector<8x512xf32>
    %15 = tpu.matmul %14, %3, %cst {dimension_numbers = #tpu.dot_dimension_numbers<[1], [0], [0], [1], [0, 0, 1, 1], [], []>} : vector<8x384xf32>, vector<384x512xf32>, vector<8x512xf32> -> vector<8x512xf32>
    %16 = vector.broadcast %4 : vector<1x512xf32> to vector<8x512xf32>
    %17 = arith.addf %15, %16 : vector<8x512xf32>
    %18 = vector.extract_strided_slice %17 {offsets = [0, 0], sizes = [8, 128], strides = [1, 1]} : vector<8x512xf32> to vector<8x128xf32>
    %19 = arith.negf %18 : vector<8x128xf32>
    %20 = math.exp %19 : vector<8x128xf32>
    %cst_21 = arith.constant 1.000000e+00 : f32
    %21 = vector.broadcast %cst_21 : f32 to vector<8x128xf32>
    %22 = arith.addf %21, %20 : vector<8x128xf32>
    %23 = arith.divf %21, %22 : vector<8x128xf32>
    %24 = vector.extract_strided_slice %17 {offsets = [0, 128], sizes = [8, 128], strides = [1, 1]} : vector<8x512xf32> to vector<8x128xf32>
    %25 = arith.negf %24 : vector<8x128xf32>
    %26 = math.exp %25 : vector<8x128xf32>
    %cst_22 = arith.constant 1.000000e+00 : f32
    %27 = vector.broadcast %cst_22 : f32 to vector<8x128xf32>
    %28 = arith.addf %27, %26 : vector<8x128xf32>
    %29 = arith.divf %27, %28 : vector<8x128xf32>
    %30 = vector.extract_strided_slice %17 {offsets = [0, 256], sizes = [8, 128], strides = [1, 1]} : vector<8x512xf32> to vector<8x128xf32>
    %31 = math.tanh %30 : vector<8x128xf32>
    %32 = vector.extract_strided_slice %17 {offsets = [0, 384], sizes = [8, 128], strides = [1, 1]} : vector<8x512xf32> to vector<8x128xf32>
    %33 = arith.negf %32 : vector<8x128xf32>
    %34 = math.exp %33 : vector<8x128xf32>
    %cst_23 = arith.constant 1.000000e+00 : f32
    %35 = vector.broadcast %cst_23 : f32 to vector<8x128xf32>
    %36 = arith.addf %35, %34 : vector<8x128xf32>
    %37 = arith.divf %35, %36 : vector<8x128xf32>
    %38 = arith.mulf %29, %10 : vector<8x128xf32>
    %39 = arith.mulf %23, %31 : vector<8x128xf32>
    %40 = arith.addf %38, %39 : vector<8x128xf32>
    %41 = math.tanh %40 : vector<8x128xf32>
    %42 = arith.mulf %37, %41 : vector<8x128xf32>
    %cst_24 = arith.constant dense<0.000000e+00> : vector<8x128xf32>
    %43 = tpu.matmul %42, %5, %cst_24 {dimension_numbers = #tpu.dot_dimension_numbers<[1], [0], [0], [1], [0, 0, 1, 1], [], []>} : vector<8x128xf32>, vector<128x128xf32>, vector<8x128xf32> -> vector<8x128xf32>
    %44 = arith.addf %43, %7 : vector<8x128xf32>
    %cst_25 = arith.constant dense<0xFF800000> : vector<8xf32>
    %45 = vector.multi_reduction <maximumf>, %44, %cst_25 [1] : vector<8x128xf32> to vector<8xf32>
    %46 = vector.shape_cast %45 : vector<8xf32> to vector<8x1xf32>
    %47 = vector.broadcast %46 : vector<8x1xf32> to vector<8x128xf32>
    %48 = arith.subf %44, %47 : vector<8x128xf32>
    %49 = math.exp %48 : vector<8x128xf32>
    %cst_26 = arith.constant dense<0.000000e+00> : vector<8xf32>
    %50 = vector.multi_reduction <add>, %49, %cst_26 [1] : vector<8x128xf32> to vector<8xf32>
    %51 = vector.shape_cast %50 : vector<8xf32> to vector<8x1xf32>
    %52 = tpu.reciprocal %51 {approx = true} : vector<8x1xf32> -> vector<8x1xf32>
    %53 = vector.broadcast %52 : vector<8x1xf32> to vector<8x128xf32>
    %54 = arith.mulf %49, %53 : vector<8x128xf32>
    %cst_27 = arith.constant dense<0.000000e+00> : vector<8x128xf32>
    %55 = tpu.matmul %54, %6, %cst_27 {dimension_numbers = #tpu.dot_dimension_numbers<[1], [0], [0], [1], [0, 0, 1, 1], [], []>} : vector<8x128xf32>, vector<128x128xf32>, vector<8x128xf32> -> vector<8x128xf32>
    %56 = tpu.concatenate %55, %42 in 1 : vector<8x128xf32>, vector<8x128xf32> -> vector<8x256xf32>
    %cst_28 = arith.constant dense<0.000000e+00> : vector<8x128xf32>
    %57 = tpu.matmul %56, %8, %cst_28 {dimension_numbers = #tpu.dot_dimension_numbers<[1], [0], [0], [1], [0, 0, 1, 1], [], []>} : vector<8x256xf32>, vector<256x128xf32>, vector<8x128xf32> -> vector<8x128xf32>
    %58 = math.tanh %57 : vector<8x128xf32>
    %c0_29 = arith.constant 0 : index
    %c0_30 = arith.constant 0 : index
    %c0_31 = arith.constant 0 : index
    %59 = vector.load %arg11[%c0_29, %c0_30, %c0_31] : memref<8x8x128xf32, #tpu.memory_space<vmem>>, vector<1x8x128xf32>
    %60 = vector.shape_cast %59 : vector<1x8x128xf32> to vector<8x128xf32>
    %61 = vector.shape_cast %58 : vector<8x128xf32> to vector<1x8x128xf32>
    tpu.vector_store %arg11[%c0_29, %c0_30, %c0_31], %61 {strides = array<i32>} : memref<8x8x128xf32, #tpu.memory_space<vmem>>, vector<1x8x128xf32>,
    %c0_32 = arith.constant 0 : index
    %c0_33 = arith.constant 0 : index
    %c0_34 = arith.constant 0 : index
    %62 = vector.load %arg12[%c0_32, %c0_33, %c0_34] : memref<8x8x128xf32, #tpu.memory_space<vmem>>, vector<1x8x128xf32>
    %63 = vector.shape_cast %62 : vector<1x8x128xf32> to vector<8x128xf32>
    %64 = vector.shape_cast %54 : vector<8x128xf32> to vector<1x8x128xf32>
    tpu.vector_store %arg12[%c0_32, %c0_33, %c0_34], %64 {strides = array<i32>} : memref<8x8x128xf32, #tpu.memory_space<vmem>>, vector<1x8x128xf32>,
    %c1 = arith.constant 1 : index
    %c0_35 = arith.constant 0 : index
    %c0_36 = arith.constant 0 : index
    %65 = vector.load %arg1[%c1, %c0_35, %c0_36] : memref<8x8x128xf32, #tpu.memory_space<vmem>>, vector<1x8x128xf32>
    %66 = vector.shape_cast %65 : vector<1x8x128xf32> to vector<8x128xf32>
    %67 = tpu.concatenate %66, %58, %42 in 1 : vector<8x128xf32>, vector<8x128xf32>, vector<8x128xf32> -> vector<8x384xf32>
    %cst_37 = arith.constant dense<0.000000e+00> : vector<8x512xf32>
    %68 = tpu.matmul %67, %3, %cst_37 {dimension_numbers = #tpu.dot_dimension_numbers<[1], [0], [0], [1], [0, 0, 1, 1], [], []>} : vector<8x384xf32>, vector<384x512xf32>, vector<8x512xf32> -> vector<8x512xf32>
    %69 = vector.broadcast %4 : vector<1x512xf32> to vector<8x512xf32>
    %70 = arith.addf %68, %69 : vector<8x512xf32>
    %71 = vector.extract_strided_slice %70 {offsets = [0, 0], sizes = [8, 128], strides = [1, 1]} : vector<8x512xf32> to vector<8x128xf32>
    %72 = arith.negf %71 : vector<8x128xf32>
    %73 = math.exp %72 : vector<8x128xf32>
    %cst_38 = arith.constant 1.000000e+00 : f32
    %74 = vector.broadcast %cst_38 : f32 to vector<8x128xf32>
    %75 = arith.addf %74, %73 : vector<8x128xf32>
    %76 = arith.divf %74, %75 : vector<8x128xf32>
    %77 = vector.extract_strided_slice %70 {offsets = [0, 128], sizes = [8, 128], strides = [1, 1]} : vector<8x512xf32> to vector<8x128xf32>
    %78 = arith.negf %77 : vector<8x128xf32>
    %79 = math.exp %78 : vector<8x128xf32>
    %cst_39 = arith.constant 1.000000e+00 : f32
    %80 = vector.broadcast %cst_39 : f32 to vector<8x128xf32>
    %81 = arith.addf %80, %79 : vector<8x128xf32>
    %82 = arith.divf %80, %81 : vector<8x128xf32>
    %83 = vector.extract_strided_slice %70 {offsets = [0, 256], sizes = [8, 128], strides = [1, 1]} : vector<8x512xf32> to vector<8x128xf32>
    %84 = math.tanh %83 : vector<8x128xf32>
    %85 = vector.extract_strided_slice %70 {offsets = [0, 384], sizes = [8, 128], strides = [1, 1]} : vector<8x512xf32> to vector<8x128xf32>
    %86 = arith.negf %85 : vector<8x128xf32>
    %87 = math.exp %86 : vector<8x128xf32>
    %cst_40 = arith.constant 1.000000e+00 : f32
    %88 = vector.broadcast %cst_40 : f32 to vector<8x128xf32>
    %89 = arith.addf %88, %87 : vector<8x128xf32>
    %90 = arith.divf %88, %89 : vector<8x128xf32>
    %91 = arith.mulf %82, %40 : vector<8x128xf32>
    %92 = arith.mulf %76, %84 : vector<8x128xf32>
    %93 = arith.addf %91, %92 : vector<8x128xf32>
    %94 = math.tanh %93 : vector<8x128xf32>
    %95 = arith.mulf %90, %94 : vector<8x128xf32>
    %cst_41 = arith.constant dense<0.000000e+00> : vector<8x128xf32>
    %96 = tpu.matmul %95, %5, %cst_41 {dimension_numbers = #tpu.dot_dimension_numbers<[1], [0], [0], [1], [0, 0, 1, 1], [], []>} : vector<8x128xf32>, vector<128x128xf32>, vector<8x128xf32> -> vector<8x128xf32>
    %97 = arith.addf %96, %7 : vector<8x128xf32>
    %cst_42 = arith.constant dense<0xFF800000> : vector<8xf32>
    %98 = vector.multi_reduction <maximumf>, %97, %cst_42 [1] : vector<8x128xf32> to vector<8xf32>
    %99 = vector.shape_cast %98 : vector<8xf32> to vector<8x1xf32>
    %100 = vector.broadcast %99 : vector<8x1xf32> to vector<8x128xf32>
    %101 = arith.subf %97, %100 : vector<8x128xf32>
    %102 = math.exp %101 : vector<8x128xf32>
    %cst_43 = arith.constant dense<0.000000e+00> : vector<8xf32>
    %103 = vector.multi_reduction <add>, %102, %cst_43 [1] : vector<8x128xf32> to vector<8xf32>
    %104 = vector.shape_cast %103 : vector<8xf32> to vector<8x1xf32>
    %105 = tpu.reciprocal %104 {approx = true} : vector<8x1xf32> -> vector<8x1xf32>
    %106 = vector.broadcast %105 : vector<8x1xf32> to vector<8x128xf32>
    %107 = arith.mulf %102, %106 : vector<8x128xf32>
    %cst_44 = arith.constant dense<0.000000e+00> : vector<8x128xf32>
    %108 = tpu.matmul %107, %6, %cst_44 {dimension_numbers = #tpu.dot_dimension_numbers<[1], [0], [0], [1], [0, 0, 1, 1], [], []>} : vector<8x128xf32>, vector<128x128xf32>, vector<8x128xf32> -> vector<8x128xf32>
    %109 = tpu.concatenate %108, %95 in 1 : vector<8x128xf32>, vector<8x128xf32> -> vector<8x256xf32>
    %cst_45 = arith.constant dense<0.000000e+00> : vector<8x128xf32>
    %110 = tpu.matmul %109, %8, %cst_45 {dimension_numbers = #tpu.dot_dimension_numbers<[1], [0], [0], [1], [0, 0, 1, 1], [], []>} : vector<8x256xf32>, vector<256x128xf32>, vector<8x128xf32> -> vector<8x128xf32>
    %111 = math.tanh %110 : vector<8x128xf32>
    %c1_46 = arith.constant 1 : index
    %c0_47 = arith.constant 0 : index
    %c0_48 = arith.constant 0 : index
    %112 = vector.load %arg11[%c1_46, %c0_47, %c0_48] : memref<8x8x128xf32, #tpu.memory_space<vmem>>, vector<1x8x128xf32>
    %113 = vector.shape_cast %112 : vector<1x8x128xf32> to vector<8x128xf32>
    %114 = vector.shape_cast %111 : vector<8x128xf32> to vector<1x8x128xf32>
    tpu.vector_store %arg11[%c1_46, %c0_47, %c0_48], %114 {strides = array<i32>} : memref<8x8x128xf32, #tpu.memory_space<vmem>>, vector<1x8x128xf32>,
    %c1_49 = arith.constant 1 : index
    %c0_50 = arith.constant 0 : index
    %c0_51 = arith.constant 0 : index
    %115 = vector.load %arg12[%c1_49, %c0_50, %c0_51] : memref<8x8x128xf32, #tpu.memory_space<vmem>>, vector<1x8x128xf32>
    %116 = vector.shape_cast %115 : vector<1x8x128xf32> to vector<8x128xf32>
    %117 = vector.shape_cast %107 : vector<8x128xf32> to vector<1x8x128xf32>
    tpu.vector_store %arg12[%c1_49, %c0_50, %c0_51], %117 {strides = array<i32>} : memref<8x8x128xf32, #tpu.memory_space<vmem>>, vector<1x8x128xf32>,
    %c2 = arith.constant 2 : index
    %c0_52 = arith.constant 0 : index
    %c0_53 = arith.constant 0 : index
    %118 = vector.load %arg1[%c2, %c0_52, %c0_53] : memref<8x8x128xf32, #tpu.memory_space<vmem>>, vector<1x8x128xf32>
    %119 = vector.shape_cast %118 : vector<1x8x128xf32> to vector<8x128xf32>
    %120 = tpu.concatenate %119, %111, %95 in 1 : vector<8x128xf32>, vector<8x128xf32>, vector<8x128xf32> -> vector<8x384xf32>
    %cst_54 = arith.constant dense<0.000000e+00> : vector<8x512xf32>
    %121 = tpu.matmul %120, %3, %cst_54 {dimension_numbers = #tpu.dot_dimension_numbers<[1], [0], [0], [1], [0, 0, 1, 1], [], []>} : vector<8x384xf32>, vector<384x512xf32>, vector<8x512xf32> -> vector<8x512xf32>
    %122 = vector.broadcast %4 : vector<1x512xf32> to vector<8x512xf32>
    %123 = arith.addf %121, %122 : vector<8x512xf32>
    %124 = vector.extract_strided_slice %123 {offsets = [0, 0], sizes = [8, 128], strides = [1, 1]} : vector<8x512xf32> to vector<8x128xf32>
    %125 = arith.negf %124 : vector<8x128xf32>
    %126 = math.exp %125 : vector<8x128xf32>
    %cst_55 = arith.constant 1.000000e+00 : f32
    %127 = vector.broadcast %cst_55 : f32 to vector<8x128xf32>
    %128 = arith.addf %127, %126 : vector<8x128xf32>
    %129 = arith.divf %127, %128 : vector<8x128xf32>
    %130 = vector.extract_strided_slice %123 {offsets = [0, 128], sizes = [8, 128], strides = [1, 1]} : vector<8x512xf32> to vector<8x128xf32>
    %131 = arith.negf %130 : vector<8x128xf32>
    %132 = math.exp %131 : vector<8x128xf32>
    %cst_56 = arith.constant 1.000000e+00 : f32
    %133 = vector.broadcast %cst_56 : f32 to vector<8x128xf32>
    %134 = arith.addf %133, %132 : vector<8x128xf32>
    %135 = arith.divf %133, %134 : vector<8x128xf32>
    %136 = vector.extract_strided_slice %123 {offsets = [0, 256], sizes = [8, 128], strides = [1, 1]} : vector<8x512xf32> to vector<8x128xf32>
    %137 = math.tanh %136 : vector<8x128xf32>
    %138 = vector.extract_strided_slice %123 {offsets = [0, 384], sizes = [8, 128], strides = [1, 1]} : vector<8x512xf32> to vector<8x128xf32>
    %139 = arith.negf %138 : vector<8x128xf32>
    %140 = math.exp %139 : vector<8x128xf32>
    %cst_57 = arith.constant 1.000000e+00 : f32
    %141 = vector.broadcast %cst_57 : f32 to vector<8x128xf32>
    %142 = arith.addf %141, %140 : vector<8x128xf32>
    %143 = arith.divf %141, %142 : vector<8x128xf32>
    %144 = arith.mulf %135, %93 : vector<8x128xf32>
    %145 = arith.mulf %129, %137 : vector<8x128xf32>
    %146 = arith.addf %144, %145 : vector<8x128xf32>
    %147 = math.tanh %146 : vector<8x128xf32>
    %148 = arith.mulf %143, %147 : vector<8x128xf32>
    %cst_58 = arith.constant dense<0.000000e+00> : vector<8x128xf32>
    %149 = tpu.matmul %148, %5, %cst_58 {dimension_numbers = #tpu.dot_dimension_numbers<[1], [0], [0], [1], [0, 0, 1, 1], [], []>} : vector<8x128xf32>, vector<128x128xf32>, vector<8x128xf32> -> vector<8x128xf32>
    %150 = arith.addf %149, %7 : vector<8x128xf32>
    %cst_59 = arith.constant dense<0xFF800000> : vector<8xf32>
    %151 = vector.multi_reduction <maximumf>, %150, %cst_59 [1] : vector<8x128xf32> to vector<8xf32>
    %152 = vector.shape_cast %151 : vector<8xf32> to vector<8x1xf32>
    %153 = vector.broadcast %152 : vector<8x1xf32> to vector<8x128xf32>
    %154 = arith.subf %150, %153 : vector<8x128xf32>
    %155 = math.exp %154 : vector<8x128xf32>
    %cst_60 = arith.constant dense<0.000000e+00> : vector<8xf32>
    %156 = vector.multi_reduction <add>, %155, %cst_60 [1] : vector<8x128xf32> to vector<8xf32>
    %157 = vector.shape_cast %156 : vector<8xf32> to vector<8x1xf32>
    %158 = tpu.reciprocal %157 {approx = true} : vector<8x1xf32> -> vector<8x1xf32>
    %159 = vector.broadcast %158 : vector<8x1xf32> to vector<8x128xf32>
    %160 = arith.mulf %155, %159 : vector<8x128xf32>
    %cst_61 = arith.constant dense<0.000000e+00> : vector<8x128xf32>
    %161 = tpu.matmul %160, %6, %cst_61 {dimension_numbers = #tpu.dot_dimension_numbers<[1], [0], [0], [1], [0, 0, 1, 1], [], []>} : vector<8x128xf32>, vector<128x128xf32>, vector<8x128xf32> -> vector<8x128xf32>
    %162 = tpu.concatenate %161, %148 in 1 : vector<8x128xf32>, vector<8x128xf32> -> vector<8x256xf32>
    %cst_62 = arith.constant dense<0.000000e+00> : vector<8x128xf32>
    %163 = tpu.matmul %162, %8, %cst_62 {dimension_numbers = #tpu.dot_dimension_numbers<[1], [0], [0], [1], [0, 0, 1, 1], [], []>} : vector<8x256xf32>, vector<256x128xf32>, vector<8x128xf32> -> vector<8x128xf32>
    %164 = math.tanh %163 : vector<8x128xf32>
    %c2_63 = arith.constant 2 : index
    %c0_64 = arith.constant 0 : index
    %c0_65 = arith.constant 0 : index
    %165 = vector.load %arg11[%c2_63, %c0_64, %c0_65] : memref<8x8x128xf32, #tpu.memory_space<vmem>>, vector<1x8x128xf32>
    %166 = vector.shape_cast %165 : vector<1x8x128xf32> to vector<8x128xf32>
    %167 = vector.shape_cast %164 : vector<8x128xf32> to vector<1x8x128xf32>
    tpu.vector_store %arg11[%c2_63, %c0_64, %c0_65], %167 {strides = array<i32>} : memref<8x8x128xf32, #tpu.memory_space<vmem>>, vector<1x8x128xf32>,
    %c2_66 = arith.constant 2 : index
    %c0_67 = arith.constant 0 : index
    %c0_68 = arith.constant 0 : index
    %168 = vector.load %arg12[%c2_66, %c0_67, %c0_68] : memref<8x8x128xf32, #tpu.memory_space<vmem>>, vector<1x8x128xf32>
    %169 = vector.shape_cast %168 : vector<1x8x128xf32> to vector<8x128xf32>
    %170 = vector.shape_cast %160 : vector<8x128xf32> to vector<1x8x128xf32>
    tpu.vector_store %arg12[%c2_66, %c0_67, %c0_68], %170 {strides = array<i32>} : memref<8x8x128xf32, #tpu.memory_space<vmem>>, vector<1x8x128xf32>,
    %c3 = arith.constant 3 : index
    %c0_69 = arith.constant 0 : index
    %c0_70 = arith.constant 0 : index
    %171 = vector.load %arg1[%c3, %c0_69, %c0_70] : memref<8x8x128xf32, #tpu.memory_space<vmem>>, vector<1x8x128xf32>
    %172 = vector.shape_cast %171 : vector<1x8x128xf32> to vector<8x128xf32>
    %173 = tpu.concatenate %172, %164, %148 in 1 : vector<8x128xf32>, vector<8x128xf32>, vector<8x128xf32> -> vector<8x384xf32>
    %cst_71 = arith.constant dense<0.000000e+00> : vector<8x512xf32>
    %174 = tpu.matmul %173, %3, %cst_71 {dimension_numbers = #tpu.dot_dimension_numbers<[1], [0], [0], [1], [0, 0, 1, 1], [], []>} : vector<8x384xf32>, vector<384x512xf32>, vector<8x512xf32> -> vector<8x512xf32>
    %175 = vector.broadcast %4 : vector<1x512xf32> to vector<8x512xf32>
    %176 = arith.addf %174, %175 : vector<8x512xf32>
    %177 = vector.extract_strided_slice %176 {offsets = [0, 0], sizes = [8, 128], strides = [1, 1]} : vector<8x512xf32> to vector<8x128xf32>
    %178 = arith.negf %177 : vector<8x128xf32>
    %179 = math.exp %178 : vector<8x128xf32>
    %cst_72 = arith.constant 1.000000e+00 : f32
    %180 = vector.broadcast %cst_72 : f32 to vector<8x128xf32>
    %181 = arith.addf %180, %179 : vector<8x128xf32>
    %182 = arith.divf %180, %181 : vector<8x128xf32>
    %183 = vector.extract_strided_slice %176 {offsets = [0, 128], sizes = [8, 128], strides = [1, 1]} : vector<8x512xf32> to vector<8x128xf32>
    %184 = arith.negf %183 : vector<8x128xf32>
    %185 = math.exp %184 : vector<8x128xf32>
    %cst_73 = arith.constant 1.000000e+00 : f32
    %186 = vector.broadcast %cst_73 : f32 to vector<8x128xf32>
    %187 = arith.addf %186, %185 : vector<8x128xf32>
    %188 = arith.divf %186, %187 : vector<8x128xf32>
    %189 = vector.extract_strided_slice %176 {offsets = [0, 256], sizes = [8, 128], strides = [1, 1]} : vector<8x512xf32> to vector<8x128xf32>
    %190 = math.tanh %189 : vector<8x128xf32>
    %191 = vector.extract_strided_slice %176 {offsets = [0, 384], sizes = [8, 128], strides = [1, 1]} : vector<8x512xf32> to vector<8x128xf32>
    %192 = arith.negf %191 : vector<8x128xf32>
    %193 = math.exp %192 : vector<8x128xf32>
    %cst_74 = arith.constant 1.000000e+00 : f32
    %194 = vector.broadcast %cst_74 : f32 to vector<8x128xf32>
    %195 = arith.addf %194, %193 : vector<8x128xf32>
    %196 = arith.divf %194, %195 : vector<8x128xf32>
    %197 = arith.mulf %188, %146 : vector<8x128xf32>
    %198 = arith.mulf %182, %190 : vector<8x128xf32>
    %199 = arith.addf %197, %198 : vector<8x128xf32>
    %200 = math.tanh %199 : vector<8x128xf32>
    %201 = arith.mulf %196, %200 : vector<8x128xf32>
    %cst_75 = arith.constant dense<0.000000e+00> : vector<8x128xf32>
    %202 = tpu.matmul %201, %5, %cst_75 {dimension_numbers = #tpu.dot_dimension_numbers<[1], [0], [0], [1], [0, 0, 1, 1], [], []>} : vector<8x128xf32>, vector<128x128xf32>, vector<8x128xf32> -> vector<8x128xf32>
    %203 = arith.addf %202, %7 : vector<8x128xf32>
    %cst_76 = arith.constant dense<0xFF800000> : vector<8xf32>
    %204 = vector.multi_reduction <maximumf>, %203, %cst_76 [1] : vector<8x128xf32> to vector<8xf32>
    %205 = vector.shape_cast %204 : vector<8xf32> to vector<8x1xf32>
    %206 = vector.broadcast %205 : vector<8x1xf32> to vector<8x128xf32>
    %207 = arith.subf %203, %206 : vector<8x128xf32>
    %208 = math.exp %207 : vector<8x128xf32>
    %cst_77 = arith.constant dense<0.000000e+00> : vector<8xf32>
    %209 = vector.multi_reduction <add>, %208, %cst_77 [1] : vector<8x128xf32> to vector<8xf32>
    %210 = vector.shape_cast %209 : vector<8xf32> to vector<8x1xf32>
    %211 = tpu.reciprocal %210 {approx = true} : vector<8x1xf32> -> vector<8x1xf32>
    %212 = vector.broadcast %211 : vector<8x1xf32> to vector<8x128xf32>
    %213 = arith.mulf %208, %212 : vector<8x128xf32>
    %cst_78 = arith.constant dense<0.000000e+00> : vector<8x128xf32>
    %214 = tpu.matmul %213, %6, %cst_78 {dimension_numbers = #tpu.dot_dimension_numbers<[1], [0], [0], [1], [0, 0, 1, 1], [], []>} : vector<8x128xf32>, vector<128x128xf32>, vector<8x128xf32> -> vector<8x128xf32>
    %215 = tpu.concatenate %214, %201 in 1 : vector<8x128xf32>, vector<8x128xf32> -> vector<8x256xf32>
    %cst_79 = arith.constant dense<0.000000e+00> : vector<8x128xf32>
    %216 = tpu.matmul %215, %8, %cst_79 {dimension_numbers = #tpu.dot_dimension_numbers<[1], [0], [0], [1], [0, 0, 1, 1], [], []>} : vector<8x256xf32>, vector<256x128xf32>, vector<8x128xf32> -> vector<8x128xf32>
    %217 = math.tanh %216 : vector<8x128xf32>
    %c3_80 = arith.constant 3 : index
    %c0_81 = arith.constant 0 : index
    %c0_82 = arith.constant 0 : index
    %218 = vector.load %arg11[%c3_80, %c0_81, %c0_82] : memref<8x8x128xf32, #tpu.memory_space<vmem>>, vector<1x8x128xf32>
    %219 = vector.shape_cast %218 : vector<1x8x128xf32> to vector<8x128xf32>
    %220 = vector.shape_cast %217 : vector<8x128xf32> to vector<1x8x128xf32>
    tpu.vector_store %arg11[%c3_80, %c0_81, %c0_82], %220 {strides = array<i32>} : memref<8x8x128xf32, #tpu.memory_space<vmem>>, vector<1x8x128xf32>,
    %c3_83 = arith.constant 3 : index
    %c0_84 = arith.constant 0 : index
    %c0_85 = arith.constant 0 : index
    %221 = vector.load %arg12[%c3_83, %c0_84, %c0_85] : memref<8x8x128xf32, #tpu.memory_space<vmem>>, vector<1x8x128xf32>
    %222 = vector.shape_cast %221 : vector<1x8x128xf32> to vector<8x128xf32>
    %223 = vector.shape_cast %213 : vector<8x128xf32> to vector<1x8x128xf32>
    tpu.vector_store %arg12[%c3_83, %c0_84, %c0_85], %223 {strides = array<i32>} : memref<8x8x128xf32, #tpu.memory_space<vmem>>, vector<1x8x128xf32>,
    %c4 = arith.constant 4 : index
    %c0_86 = arith.constant 0 : index
    %c0_87 = arith.constant 0 : index
    %224 = vector.load %arg1[%c4, %c0_86, %c0_87] : memref<8x8x128xf32, #tpu.memory_space<vmem>>, vector<1x8x128xf32>
    %225 = vector.shape_cast %224 : vector<1x8x128xf32> to vector<8x128xf32>
    %226 = tpu.concatenate %225, %217, %201 in 1 : vector<8x128xf32>, vector<8x128xf32>, vector<8x128xf32> -> vector<8x384xf32>
    %cst_88 = arith.constant dense<0.000000e+00> : vector<8x512xf32>
    %227 = tpu.matmul %226, %3, %cst_88 {dimension_numbers = #tpu.dot_dimension_numbers<[1], [0], [0], [1], [0, 0, 1, 1], [], []>} : vector<8x384xf32>, vector<384x512xf32>, vector<8x512xf32> -> vector<8x512xf32>
    %228 = vector.broadcast %4 : vector<1x512xf32> to vector<8x512xf32>
    %229 = arith.addf %227, %228 : vector<8x512xf32>
    %230 = vector.extract_strided_slice %229 {offsets = [0, 0], sizes = [8, 128], strides = [1, 1]} : vector<8x512xf32> to vector<8x128xf32>
    %231 = arith.negf %230 : vector<8x128xf32>
    %232 = math.exp %231 : vector<8x128xf32>
    %cst_89 = arith.constant 1.000000e+00 : f32
    %233 = vector.broadcast %cst_89 : f32 to vector<8x128xf32>
    %234 = arith.addf %233, %232 : vector<8x128xf32>
    %235 = arith.divf %233, %234 : vector<8x128xf32>
    %236 = vector.extract_strided_slice %229 {offsets = [0, 128], sizes = [8, 128], strides = [1, 1]} : vector<8x512xf32> to vector<8x128xf32>
    %237 = arith.negf %236 : vector<8x128xf32>
    %238 = math.exp %237 : vector<8x128xf32>
    %cst_90 = arith.constant 1.000000e+00 : f32
    %239 = vector.broadcast %cst_90 : f32 to vector<8x128xf32>
    %240 = arith.addf %239, %238 : vector<8x128xf32>
    %241 = arith.divf %239, %240 : vector<8x128xf32>
    %242 = vector.extract_strided_slice %229 {offsets = [0, 256], sizes = [8, 128], strides = [1, 1]} : vector<8x512xf32> to vector<8x128xf32>
    %243 = math.tanh %242 : vector<8x128xf32>
    %244 = vector.extract_strided_slice %229 {offsets = [0, 384], sizes = [8, 128], strides = [1, 1]} : vector<8x512xf32> to vector<8x128xf32>
    %245 = arith.negf %244 : vector<8x128xf32>
    %246 = math.exp %245 : vector<8x128xf32>
    %cst_91 = arith.constant 1.000000e+00 : f32
    %247 = vector.broadcast %cst_91 : f32 to vector<8x128xf32>
    %248 = arith.addf %247, %246 : vector<8x128xf32>
    %249 = arith.divf %247, %248 : vector<8x128xf32>
    %250 = arith.mulf %241, %199 : vector<8x128xf32>
    %251 = arith.mulf %235, %243 : vector<8x128xf32>
    %252 = arith.addf %250, %251 : vector<8x128xf32>
    %253 = math.tanh %252 : vector<8x128xf32>
    %254 = arith.mulf %249, %253 : vector<8x128xf32>
    %cst_92 = arith.constant dense<0.000000e+00> : vector<8x128xf32>
    %255 = tpu.matmul %254, %5, %cst_92 {dimension_numbers = #tpu.dot_dimension_numbers<[1], [0], [0], [1], [0, 0, 1, 1], [], []>} : vector<8x128xf32>, vector<128x128xf32>, vector<8x128xf32> -> vector<8x128xf32>
    %256 = arith.addf %255, %7 : vector<8x128xf32>
    %cst_93 = arith.constant dense<0xFF800000> : vector<8xf32>
    %257 = vector.multi_reduction <maximumf>, %256, %cst_93 [1] : vector<8x128xf32> to vector<8xf32>
    %258 = vector.shape_cast %257 : vector<8xf32> to vector<8x1xf32>
    %259 = vector.broadcast %258 : vector<8x1xf32> to vector<8x128xf32>
    %260 = arith.subf %256, %259 : vector<8x128xf32>
    %261 = math.exp %260 : vector<8x128xf32>
    %cst_94 = arith.constant dense<0.000000e+00> : vector<8xf32>
    %262 = vector.multi_reduction <add>, %261, %cst_94 [1] : vector<8x128xf32> to vector<8xf32>
    %263 = vector.shape_cast %262 : vector<8xf32> to vector<8x1xf32>
    %264 = tpu.reciprocal %263 {approx = true} : vector<8x1xf32> -> vector<8x1xf32>
    %265 = vector.broadcast %264 : vector<8x1xf32> to vector<8x128xf32>
    %266 = arith.mulf %261, %265 : vector<8x128xf32>
    %cst_95 = arith.constant dense<0.000000e+00> : vector<8x128xf32>
    %267 = tpu.matmul %266, %6, %cst_95 {dimension_numbers = #tpu.dot_dimension_numbers<[1], [0], [0], [1], [0, 0, 1, 1], [], []>} : vector<8x128xf32>, vector<128x128xf32>, vector<8x128xf32> -> vector<8x128xf32>
    %268 = tpu.concatenate %267, %254 in 1 : vector<8x128xf32>, vector<8x128xf32> -> vector<8x256xf32>
    %cst_96 = arith.constant dense<0.000000e+00> : vector<8x128xf32>
    %269 = tpu.matmul %268, %8, %cst_96 {dimension_numbers = #tpu.dot_dimension_numbers<[1], [0], [0], [1], [0, 0, 1, 1], [], []>} : vector<8x256xf32>, vector<256x128xf32>, vector<8x128xf32> -> vector<8x128xf32>
    %270 = math.tanh %269 : vector<8x128xf32>
    %c4_97 = arith.constant 4 : index
    %c0_98 = arith.constant 0 : index
    %c0_99 = arith.constant 0 : index
    %271 = vector.load %arg11[%c4_97, %c0_98, %c0_99] : memref<8x8x128xf32, #tpu.memory_space<vmem>>, vector<1x8x128xf32>
    %272 = vector.shape_cast %271 : vector<1x8x128xf32> to vector<8x128xf32>
    %273 = vector.shape_cast %270 : vector<8x128xf32> to vector<1x8x128xf32>
    tpu.vector_store %arg11[%c4_97, %c0_98, %c0_99], %273 {strides = array<i32>} : memref<8x8x128xf32, #tpu.memory_space<vmem>>, vector<1x8x128xf32>,
    %c4_100 = arith.constant 4 : index
    %c0_101 = arith.constant 0 : index
    %c0_102 = arith.constant 0 : index
    %274 = vector.load %arg12[%c4_100, %c0_101, %c0_102] : memref<8x8x128xf32, #tpu.memory_space<vmem>>, vector<1x8x128xf32>
    %275 = vector.shape_cast %274 : vector<1x8x128xf32> to vector<8x128xf32>
    %276 = vector.shape_cast %266 : vector<8x128xf32> to vector<1x8x128xf32>
    tpu.vector_store %arg12[%c4_100, %c0_101, %c0_102], %276 {strides = array<i32>} : memref<8x8x128xf32, #tpu.memory_space<vmem>>, vector<1x8x128xf32>,
    %c5 = arith.constant 5 : index
    %c0_103 = arith.constant 0 : index
    %c0_104 = arith.constant 0 : index
    %277 = vector.load %arg1[%c5, %c0_103, %c0_104] : memref<8x8x128xf32, #tpu.memory_space<vmem>>, vector<1x8x128xf32>
    %278 = vector.shape_cast %277 : vector<1x8x128xf32> to vector<8x128xf32>
    %279 = tpu.concatenate %278, %270, %254 in 1 : vector<8x128xf32>, vector<8x128xf32>, vector<8x128xf32> -> vector<8x384xf32>
    %cst_105 = arith.constant dense<0.000000e+00> : vector<8x512xf32>
    %280 = tpu.matmul %279, %3, %cst_105 {dimension_numbers = #tpu.dot_dimension_numbers<[1], [0], [0], [1], [0, 0, 1, 1], [], []>} : vector<8x384xf32>, vector<384x512xf32>, vector<8x512xf32> -> vector<8x512xf32>
    %281 = vector.broadcast %4 : vector<1x512xf32> to vector<8x512xf32>
    %282 = arith.addf %280, %281 : vector<8x512xf32>
    %283 = vector.extract_strided_slice %282 {offsets = [0, 0], sizes = [8, 128], strides = [1, 1]} : vector<8x512xf32> to vector<8x128xf32>
    %284 = arith.negf %283 : vector<8x128xf32>
    %285 = math.exp %284 : vector<8x128xf32>
    %cst_106 = arith.constant 1.000000e+00 : f32
    %286 = vector.broadcast %cst_106 : f32 to vector<8x128xf32>
    %287 = arith.addf %286, %285 : vector<8x128xf32>
    %288 = arith.divf %286, %287 : vector<8x128xf32>
    %289 = vector.extract_strided_slice %282 {offsets = [0, 128], sizes = [8, 128], strides = [1, 1]} : vector<8x512xf32> to vector<8x128xf32>
    %290 = arith.negf %289 : vector<8x128xf32>
    %291 = math.exp %290 : vector<8x128xf32>
    %cst_107 = arith.constant 1.000000e+00 : f32
    %292 = vector.broadcast %cst_107 : f32 to vector<8x128xf32>
    %293 = arith.addf %292, %291 : vector<8x128xf32>
    %294 = arith.divf %292, %293 : vector<8x128xf32>
    %295 = vector.extract_strided_slice %282 {offsets = [0, 256], sizes = [8, 128], strides = [1, 1]} : vector<8x512xf32> to vector<8x128xf32>
    %296 = math.tanh %295 : vector<8x128xf32>
    %297 = vector.extract_strided_slice %282 {offsets = [0, 384], sizes = [8, 128], strides = [1, 1]} : vector<8x512xf32> to vector<8x128xf32>
    %298 = arith.negf %297 : vector<8x128xf32>
    %299 = math.exp %298 : vector<8x128xf32>
    %cst_108 = arith.constant 1.000000e+00 : f32
    %300 = vector.broadcast %cst_108 : f32 to vector<8x128xf32>
    %301 = arith.addf %300, %299 : vector<8x128xf32>
    %302 = arith.divf %300, %301 : vector<8x128xf32>
    %303 = arith.mulf %294, %252 : vector<8x128xf32>
    %304 = arith.mulf %288, %296 : vector<8x128xf32>
    %305 = arith.addf %303, %304 : vector<8x128xf32>
    %306 = math.tanh %305 : vector<8x128xf32>
    %307 = arith.mulf %302, %306 : vector<8x128xf32>
    %cst_109 = arith.constant dense<0.000000e+00> : vector<8x128xf32>
    %308 = tpu.matmul %307, %5, %cst_109 {dimension_numbers = #tpu.dot_dimension_numbers<[1], [0], [0], [1], [0, 0, 1, 1], [], []>} : vector<8x128xf32>, vector<128x128xf32>, vector<8x128xf32> -> vector<8x128xf32>
    %309 = arith.addf %308, %7 : vector<8x128xf32>
    %cst_110 = arith.constant dense<0xFF800000> : vector<8xf32>
    %310 = vector.multi_reduction <maximumf>, %309, %cst_110 [1] : vector<8x128xf32> to vector<8xf32>
    %311 = vector.shape_cast %310 : vector<8xf32> to vector<8x1xf32>
    %312 = vector.broadcast %311 : vector<8x1xf32> to vector<8x128xf32>
    %313 = arith.subf %309, %312 : vector<8x128xf32>
    %314 = math.exp %313 : vector<8x128xf32>
    %cst_111 = arith.constant dense<0.000000e+00> : vector<8xf32>
    %315 = vector.multi_reduction <add>, %314, %cst_111 [1] : vector<8x128xf32> to vector<8xf32>
    %316 = vector.shape_cast %315 : vector<8xf32> to vector<8x1xf32>
    %317 = tpu.reciprocal %316 {approx = true} : vector<8x1xf32> -> vector<8x1xf32>
    %318 = vector.broadcast %317 : vector<8x1xf32> to vector<8x128xf32>
    %319 = arith.mulf %314, %318 : vector<8x128xf32>
    %cst_112 = arith.constant dense<0.000000e+00> : vector<8x128xf32>
    %320 = tpu.matmul %319, %6, %cst_112 {dimension_numbers = #tpu.dot_dimension_numbers<[1], [0], [0], [1], [0, 0, 1, 1], [], []>} : vector<8x128xf32>, vector<128x128xf32>, vector<8x128xf32> -> vector<8x128xf32>
    %321 = tpu.concatenate %320, %307 in 1 : vector<8x128xf32>, vector<8x128xf32> -> vector<8x256xf32>
    %cst_113 = arith.constant dense<0.000000e+00> : vector<8x128xf32>
    %322 = tpu.matmul %321, %8, %cst_113 {dimension_numbers = #tpu.dot_dimension_numbers<[1], [0], [0], [1], [0, 0, 1, 1], [], []>} : vector<8x256xf32>, vector<256x128xf32>, vector<8x128xf32> -> vector<8x128xf32>
    %323 = math.tanh %322 : vector<8x128xf32>
    %c5_114 = arith.constant 5 : index
    %c0_115 = arith.constant 0 : index
    %c0_116 = arith.constant 0 : index
    %324 = vector.load %arg11[%c5_114, %c0_115, %c0_116] : memref<8x8x128xf32, #tpu.memory_space<vmem>>, vector<1x8x128xf32>
    %325 = vector.shape_cast %324 : vector<1x8x128xf32> to vector<8x128xf32>
    %326 = vector.shape_cast %323 : vector<8x128xf32> to vector<1x8x128xf32>
    tpu.vector_store %arg11[%c5_114, %c0_115, %c0_116], %326 {strides = array<i32>} : memref<8x8x128xf32, #tpu.memory_space<vmem>>, vector<1x8x128xf32>,
    %c5_117 = arith.constant 5 : index
    %c0_118 = arith.constant 0 : index
    %c0_119 = arith.constant 0 : index
    %327 = vector.load %arg12[%c5_117, %c0_118, %c0_119] : memref<8x8x128xf32, #tpu.memory_space<vmem>>, vector<1x8x128xf32>
    %328 = vector.shape_cast %327 : vector<1x8x128xf32> to vector<8x128xf32>
    %329 = vector.shape_cast %319 : vector<8x128xf32> to vector<1x8x128xf32>
    tpu.vector_store %arg12[%c5_117, %c0_118, %c0_119], %329 {strides = array<i32>} : memref<8x8x128xf32, #tpu.memory_space<vmem>>, vector<1x8x128xf32>,
    %c6 = arith.constant 6 : index
    %c0_120 = arith.constant 0 : index
    %c0_121 = arith.constant 0 : index
    %330 = vector.load %arg1[%c6, %c0_120, %c0_121] : memref<8x8x128xf32, #tpu.memory_space<vmem>>, vector<1x8x128xf32>
    %331 = vector.shape_cast %330 : vector<1x8x128xf32> to vector<8x128xf32>
    %332 = tpu.concatenate %331, %323, %307 in 1 : vector<8x128xf32>, vector<8x128xf32>, vector<8x128xf32> -> vector<8x384xf32>
    %cst_122 = arith.constant dense<0.000000e+00> : vector<8x512xf32>
    %333 = tpu.matmul %332, %3, %cst_122 {dimension_numbers = #tpu.dot_dimension_numbers<[1], [0], [0], [1], [0, 0, 1, 1], [], []>} : vector<8x384xf32>, vector<384x512xf32>, vector<8x512xf32> -> vector<8x512xf32>
    %334 = vector.broadcast %4 : vector<1x512xf32> to vector<8x512xf32>
    %335 = arith.addf %333, %334 : vector<8x512xf32>
    %336 = vector.extract_strided_slice %335 {offsets = [0, 0], sizes = [8, 128], strides = [1, 1]} : vector<8x512xf32> to vector<8x128xf32>
    %337 = arith.negf %336 : vector<8x128xf32>
    %338 = math.exp %337 : vector<8x128xf32>
    %cst_123 = arith.constant 1.000000e+00 : f32
    %339 = vector.broadcast %cst_123 : f32 to vector<8x128xf32>
    %340 = arith.addf %339, %338 : vector<8x128xf32>
    %341 = arith.divf %339, %340 : vector<8x128xf32>
    %342 = vector.extract_strided_slice %335 {offsets = [0, 128], sizes = [8, 128], strides = [1, 1]} : vector<8x512xf32> to vector<8x128xf32>
    %343 = arith.negf %342 : vector<8x128xf32>
    %344 = math.exp %343 : vector<8x128xf32>
    %cst_124 = arith.constant 1.000000e+00 : f32
    %345 = vector.broadcast %cst_124 : f32 to vector<8x128xf32>
    %346 = arith.addf %345, %344 : vector<8x128xf32>
    %347 = arith.divf %345, %346 : vector<8x128xf32>
    %348 = vector.extract_strided_slice %335 {offsets = [0, 256], sizes = [8, 128], strides = [1, 1]} : vector<8x512xf32> to vector<8x128xf32>
    %349 = math.tanh %348 : vector<8x128xf32>
    %350 = vector.extract_strided_slice %335 {offsets = [0, 384], sizes = [8, 128], strides = [1, 1]} : vector<8x512xf32> to vector<8x128xf32>
    %351 = arith.negf %350 : vector<8x128xf32>
    %352 = math.exp %351 : vector<8x128xf32>
    %cst_125 = arith.constant 1.000000e+00 : f32
    %353 = vector.broadcast %cst_125 : f32 to vector<8x128xf32>
    %354 = arith.addf %353, %352 : vector<8x128xf32>
    %355 = arith.divf %353, %354 : vector<8x128xf32>
    %356 = arith.mulf %347, %305 : vector<8x128xf32>
    %357 = arith.mulf %341, %349 : vector<8x128xf32>
    %358 = arith.addf %356, %357 : vector<8x128xf32>
    %359 = math.tanh %358 : vector<8x128xf32>
    %360 = arith.mulf %355, %359 : vector<8x128xf32>
    %cst_126 = arith.constant dense<0.000000e+00> : vector<8x128xf32>
    %361 = tpu.matmul %360, %5, %cst_126 {dimension_numbers = #tpu.dot_dimension_numbers<[1], [0], [0], [1], [0, 0, 1, 1], [], []>} : vector<8x128xf32>, vector<128x128xf32>, vector<8x128xf32> -> vector<8x128xf32>
    %362 = arith.addf %361, %7 : vector<8x128xf32>
    %cst_127 = arith.constant dense<0xFF800000> : vector<8xf32>
    %363 = vector.multi_reduction <maximumf>, %362, %cst_127 [1] : vector<8x128xf32> to vector<8xf32>
    %364 = vector.shape_cast %363 : vector<8xf32> to vector<8x1xf32>
    %365 = vector.broadcast %364 : vector<8x1xf32> to vector<8x128xf32>
    %366 = arith.subf %362, %365 : vector<8x128xf32>
    %367 = math.exp %366 : vector<8x128xf32>
    %cst_128 = arith.constant dense<0.000000e+00> : vector<8xf32>
    %368 = vector.multi_reduction <add>, %367, %cst_128 [1] : vector<8x128xf32> to vector<8xf32>
    %369 = vector.shape_cast %368 : vector<8xf32> to vector<8x1xf32>
    %370 = tpu.reciprocal %369 {approx = true} : vector<8x1xf32> -> vector<8x1xf32>
    %371 = vector.broadcast %370 : vector<8x1xf32> to vector<8x128xf32>
    %372 = arith.mulf %367, %371 : vector<8x128xf32>
    %cst_129 = arith.constant dense<0.000000e+00> : vector<8x128xf32>
    %373 = tpu.matmul %372, %6, %cst_129 {dimension_numbers = #tpu.dot_dimension_numbers<[1], [0], [0], [1], [0, 0, 1, 1], [], []>} : vector<8x128xf32>, vector<128x128xf32>, vector<8x128xf32> -> vector<8x128xf32>
    %374 = tpu.concatenate %373, %360 in 1 : vector<8x128xf32>, vector<8x128xf32> -> vector<8x256xf32>
    %cst_130 = arith.constant dense<0.000000e+00> : vector<8x128xf32>
    %375 = tpu.matmul %374, %8, %cst_130 {dimension_numbers = #tpu.dot_dimension_numbers<[1], [0], [0], [1], [0, 0, 1, 1], [], []>} : vector<8x256xf32>, vector<256x128xf32>, vector<8x128xf32> -> vector<8x128xf32>
    %376 = math.tanh %375 : vector<8x128xf32>
    %c6_131 = arith.constant 6 : index
    %c0_132 = arith.constant 0 : index
    %c0_133 = arith.constant 0 : index
    %377 = vector.load %arg11[%c6_131, %c0_132, %c0_133] : memref<8x8x128xf32, #tpu.memory_space<vmem>>, vector<1x8x128xf32>
    %378 = vector.shape_cast %377 : vector<1x8x128xf32> to vector<8x128xf32>
    %379 = vector.shape_cast %376 : vector<8x128xf32> to vector<1x8x128xf32>
    tpu.vector_store %arg11[%c6_131, %c0_132, %c0_133], %379 {strides = array<i32>} : memref<8x8x128xf32, #tpu.memory_space<vmem>>, vector<1x8x128xf32>,
    %c6_134 = arith.constant 6 : index
    %c0_135 = arith.constant 0 : index
    %c0_136 = arith.constant 0 : index
    %380 = vector.load %arg12[%c6_134, %c0_135, %c0_136] : memref<8x8x128xf32, #tpu.memory_space<vmem>>, vector<1x8x128xf32>
    %381 = vector.shape_cast %380 : vector<1x8x128xf32> to vector<8x128xf32>
    %382 = vector.shape_cast %372 : vector<8x128xf32> to vector<1x8x128xf32>
    tpu.vector_store %arg12[%c6_134, %c0_135, %c0_136], %382 {strides = array<i32>} : memref<8x8x128xf32, #tpu.memory_space<vmem>>, vector<1x8x128xf32>,
    %c7 = arith.constant 7 : index
    %c0_137 = arith.constant 0 : index
    %c0_138 = arith.constant 0 : index
    %383 = vector.load %arg1[%c7, %c0_137, %c0_138] : memref<8x8x128xf32, #tpu.memory_space<vmem>>, vector<1x8x128xf32>
    %384 = vector.shape_cast %383 : vector<1x8x128xf32> to vector<8x128xf32>
    %385 = tpu.concatenate %384, %376, %360 in 1 : vector<8x128xf32>, vector<8x128xf32>, vector<8x128xf32> -> vector<8x384xf32>
    %cst_139 = arith.constant dense<0.000000e+00> : vector<8x512xf32>
    %386 = tpu.matmul %385, %3, %cst_139 {dimension_numbers = #tpu.dot_dimension_numbers<[1], [0], [0], [1], [0, 0, 1, 1], [], []>} : vector<8x384xf32>, vector<384x512xf32>, vector<8x512xf32> -> vector<8x512xf32>
    %387 = vector.broadcast %4 : vector<1x512xf32> to vector<8x512xf32>
    %388 = arith.addf %386, %387 : vector<8x512xf32>
    %389 = vector.extract_strided_slice %388 {offsets = [0, 0], sizes = [8, 128], strides = [1, 1]} : vector<8x512xf32> to vector<8x128xf32>
    %390 = arith.negf %389 : vector<8x128xf32>
    %391 = math.exp %390 : vector<8x128xf32>
    %cst_140 = arith.constant 1.000000e+00 : f32
    %392 = vector.broadcast %cst_140 : f32 to vector<8x128xf32>
    %393 = arith.addf %392, %391 : vector<8x128xf32>
    %394 = arith.divf %392, %393 : vector<8x128xf32>
    %395 = vector.extract_strided_slice %388 {offsets = [0, 128], sizes = [8, 128], strides = [1, 1]} : vector<8x512xf32> to vector<8x128xf32>
    %396 = arith.negf %395 : vector<8x128xf32>
    %397 = math.exp %396 : vector<8x128xf32>
    %cst_141 = arith.constant 1.000000e+00 : f32
    %398 = vector.broadcast %cst_141 : f32 to vector<8x128xf32>
    %399 = arith.addf %398, %397 : vector<8x128xf32>
    %400 = arith.divf %398, %399 : vector<8x128xf32>
    %401 = vector.extract_strided_slice %388 {offsets = [0, 256], sizes = [8, 128], strides = [1, 1]} : vector<8x512xf32> to vector<8x128xf32>
    %402 = math.tanh %401 : vector<8x128xf32>
    %403 = vector.extract_strided_slice %388 {offsets = [0, 384], sizes = [8, 128], strides = [1, 1]} : vector<8x512xf32> to vector<8x128xf32>
    %404 = arith.negf %403 : vector<8x128xf32>
    %405 = math.exp %404 : vector<8x128xf32>
    %cst_142 = arith.constant 1.000000e+00 : f32
    %406 = vector.broadcast %cst_142 : f32 to vector<8x128xf32>
    %407 = arith.addf %406, %405 : vector<8x128xf32>
    %408 = arith.divf %406, %407 : vector<8x128xf32>
    %409 = arith.mulf %400, %358 : vector<8x128xf32>
    %410 = arith.mulf %394, %402 : vector<8x128xf32>
    %411 = arith.addf %409, %410 : vector<8x128xf32>
    %412 = math.tanh %411 : vector<8x128xf32>
    %413 = arith.mulf %408, %412 : vector<8x128xf32>
    %cst_143 = arith.constant dense<0.000000e+00> : vector<8x128xf32>
    %414 = tpu.matmul %413, %5, %cst_143 {dimension_numbers = #tpu.dot_dimension_numbers<[1], [0], [0], [1], [0, 0, 1, 1], [], []>} : vector<8x128xf32>, vector<128x128xf32>, vector<8x128xf32> -> vector<8x128xf32>
    %415 = arith.addf %414, %7 : vector<8x128xf32>
    %cst_144 = arith.constant dense<0xFF800000> : vector<8xf32>
    %416 = vector.multi_reduction <maximumf>, %415, %cst_144 [1] : vector<8x128xf32> to vector<8xf32>
    %417 = vector.shape_cast %416 : vector<8xf32> to vector<8x1xf32>
    %418 = vector.broadcast %417 : vector<8x1xf32> to vector<8x128xf32>
    %419 = arith.subf %415, %418 : vector<8x128xf32>
    %420 = math.exp %419 : vector<8x128xf32>
    %cst_145 = arith.constant dense<0.000000e+00> : vector<8xf32>
    %421 = vector.multi_reduction <add>, %420, %cst_145 [1] : vector<8x128xf32> to vector<8xf32>
    %422 = vector.shape_cast %421 : vector<8xf32> to vector<8x1xf32>
    %423 = tpu.reciprocal %422 {approx = true} : vector<8x1xf32> -> vector<8x1xf32>
    %424 = vector.broadcast %423 : vector<8x1xf32> to vector<8x128xf32>
    %425 = arith.mulf %420, %424 : vector<8x128xf32>
    %cst_146 = arith.constant dense<0.000000e+00> : vector<8x128xf32>
    %426 = tpu.matmul %425, %6, %cst_146 {dimension_numbers = #tpu.dot_dimension_numbers<[1], [0], [0], [1], [0, 0, 1, 1], [], []>} : vector<8x128xf32>, vector<128x128xf32>, vector<8x128xf32> -> vector<8x128xf32>
    %427 = tpu.concatenate %426, %413 in 1 : vector<8x128xf32>, vector<8x128xf32> -> vector<8x256xf32>
    %cst_147 = arith.constant dense<0.000000e+00> : vector<8x128xf32>
    %428 = tpu.matmul %427, %8, %cst_147 {dimension_numbers = #tpu.dot_dimension_numbers<[1], [0], [0], [1], [0, 0, 1, 1], [], []>} : vector<8x256xf32>, vector<256x128xf32>, vector<8x128xf32> -> vector<8x128xf32>
    %429 = math.tanh %428 : vector<8x128xf32>
    %c7_148 = arith.constant 7 : index
    %c0_149 = arith.constant 0 : index
    %c0_150 = arith.constant 0 : index
    %430 = vector.load %arg11[%c7_148, %c0_149, %c0_150] : memref<8x8x128xf32, #tpu.memory_space<vmem>>, vector<1x8x128xf32>
    %431 = vector.shape_cast %430 : vector<1x8x128xf32> to vector<8x128xf32>
    %432 = vector.shape_cast %429 : vector<8x128xf32> to vector<1x8x128xf32>
    tpu.vector_store %arg11[%c7_148, %c0_149, %c0_150], %432 {strides = array<i32>} : memref<8x8x128xf32, #tpu.memory_space<vmem>>, vector<1x8x128xf32>,
    %c7_151 = arith.constant 7 : index
    %c0_152 = arith.constant 0 : index
    %c0_153 = arith.constant 0 : index
    %433 = vector.load %arg12[%c7_151, %c0_152, %c0_153] : memref<8x8x128xf32, #tpu.memory_space<vmem>>, vector<1x8x128xf32>
    %434 = vector.shape_cast %433 : vector<1x8x128xf32> to vector<8x128xf32>
    %435 = vector.shape_cast %425 : vector<8x128xf32> to vector<1x8x128xf32>
    tpu.vector_store %arg12[%c7_151, %c0_152, %c0_153], %435 {strides = array<i32>} : memref<8x8x128xf32, #tpu.memory_space<vmem>>, vector<1x8x128xf32>,
    %c0_154 = arith.constant 0 : index
    %c0_155 = arith.constant 0 : index
    %436 = vector.load %arg13[%c0_154, %c0_155] : memref<8x128xf32, #tpu.memory_space<vmem>>, vector<8x128xf32>
    tpu.vector_store %arg13[%c0_154, %c0_155], %413 {strides = array<i32>} : memref<8x128xf32, #tpu.memory_space<vmem>>, vector<8x128xf32>,
    %c0_156 = arith.constant 0 : index
    %c0_157 = arith.constant 0 : index
    %437 = vector.load %arg14[%c0_156, %c0_157] : memref<8x128xf32, #tpu.memory_space<vmem>>, vector<8x128xf32>
    tpu.vector_store %arg14[%c0_156, %c0_157], %411 {strides = array<i32>} : memref<8x128xf32, #tpu.memory_space<vmem>>, vector<8x128xf32>,
    %c0_158 = arith.constant 0 : index
    %c0_159 = arith.constant 0 : index
    %438 = vector.load %arg15[%c0_158, %c0_159] : memref<8x128xf32, #tpu.memory_space<vmem>>, vector<8x128xf32>
    tpu.vector_store %arg15[%c0_158, %c0_159], %429 {strides = array<i32>} : memref<8x128xf32, #tpu.memory_space<vmem>>, vector<8x128xf32>,
    return
  }
  func.func @transform_0(%arg0: i32) -> (i32, i32, i32) {
    %c0_i32 = arith.constant 0 : i32
    %c0_i32_0 = arith.constant 0 : i32
    %c0_i32_1 = arith.constant 0 : i32
    return %arg0, %c0_i32, %c0_i32_0 : i32, i32, i32
  }
  func.func @transform_1(%arg0: i32) -> (i32, i32) {
    %c0_i32 = arith.constant 0 : i32
    %c0_i32_0 = arith.constant 0 : i32
    %c0_i32_1 = arith.constant 0 : i32
    return %c0_i32, %c0_i32_0 : i32, i32
  }
  func.func @transform_2(%arg0: i32) -> (i32, i32) {
    %c0_i32 = arith.constant 0 : i32
    %c0_i32_0 = arith.constant 0 : i32
    %c0_i32_1 = arith.constant 0 : i32
    return %c0_i32, %c0_i32_0 : i32, i32
  }
  func.func @transform_3(%arg0: i32) -> (i32, i32) {
    %c0_i32 = arith.constant 0 : i32
    %c0_i32_0 = arith.constant 0 : i32
    %c0_i32_1 = arith.constant 0 : i32
    return %c0_i32, %c0_i32_0 : i32, i32
  }
  func.func @transform_4(%arg0: i32) -> (i32, i32) {
    %c0_i32 = arith.constant 0 : i32
    %c0_i32_0 = arith.constant 0 : i32
    %c0_i32_1 = arith.constant 0 : i32
    return %c0_i32, %c0_i32_0 : i32, i32
  }
  func.func @transform_5(%arg0: i32) -> (i32, i32) {
    %c0_i32 = arith.constant 0 : i32
    %c0_i32_0 = arith.constant 0 : i32
    %c0_i32_1 = arith.constant 0 : i32
    return %c0_i32, %c0_i32_0 : i32, i32
  }
  func.func @transform_6(%arg0: i32) -> (i32, i32) {
    %c0_i32 = arith.constant 0 : i32
    %c0_i32_0 = arith.constant 0 : i32
    %c0_i32_1 = arith.constant 0 : i32
    return %c0_i32, %c0_i32_0 : i32, i32
  }
  func.func @transform_7(%arg0: i32) -> (i32, i32) {
    %c0_i32 = arith.constant 0 : i32
    %c0_i32_0 = arith.constant 0 : i32
    %c0_i32_1 = arith.constant 0 : i32
    return %c0_i32, %c0_i32_0 : i32, i32
  }
  func.func @transform_8(%arg0: i32) -> (i32, i32) {
    %c0_i32 = arith.constant 0 : i32
    %c0_i32_0 = arith.constant 0 : i32
    %c0_i32_1 = arith.constant 0 : i32
    return %c0_i32, %c0_i32_0 : i32, i32
  }
  func.func @transform_9(%arg0: i32) -> (i32, i32) {
    %c0_i32 = arith.constant 0 : i32
    %c0_i32_0 = arith.constant 0 : i32
    %c0_i32_1 = arith.constant 0 : i32
    return %c0_i32, %c0_i32_0 : i32, i32
  }
  func.func @transform_10(%arg0: i32) -> (i32, i32, i32) {
    %c0_i32 = arith.constant 0 : i32
    %c0_i32_0 = arith.constant 0 : i32
    %c0_i32_1 = arith.constant 0 : i32
    return %arg0, %c0_i32, %c0_i32_0 : i32, i32, i32
  }
  func.func @transform_11(%arg0: i32) -> (i32, i32, i32) {
    %c0_i32 = arith.constant 0 : i32
    %c0_i32_0 = arith.constant 0 : i32
    %c0_i32_1 = arith.constant 0 : i32
    return %arg0, %c0_i32, %c0_i32_0 : i32, i32, i32
  }
}

</mosaic_0001>

<llo_original>
// kernel: tpu_custom_call.1
$region0: #{tpu_custom_call.1}
  #allocation0 [shape = 'u32[]', space=smem, size = 0x4, offset = 0x4, fixed_abs, tag = 'smem constant byte address 0x4 - core index']
  #allocation1 [shape = 'u32[72,128]{1,0:T(1,128)}', space=vmem, size = 0x9000, scoped, tag = 'internal scratch']
  #allocation2 [shape = 'f32[8,128]{1,0:T(8,128)}', space=vmem, size = 0x1000, scoped, tag = 'scratch operand']
  #allocation3 [shape = 'f32[8,128]{1,0:T(8,128)}', space=vmem, size = 0x1000, scoped, tag = 'scratch operand']
  #allocation4 [shape = 'f32[8,128]{1,0:T(8,128)}', space=vmem, size = 0x1000, scoped, tag = 'scratch operand']
  %s0 = inlined_call_operand.hbm [shape: f32[8,8,128], index: 0, kind: input, shape index: {}]
  %s1 = inlined_call_operand.hbm [shape: f32[384,512], index: 1, kind: input, shape index: {}]
  %s2 = inlined_call_operand.hbm [shape: f32[1,512], index: 2, kind: input, shape index: {}]
  %s3 = inlined_call_operand.hbm [shape: f32[128,128], index: 3, kind: input, shape index: {}]
  %s4 = inlined_call_operand.hbm [shape: f32[128,128], index: 4, kind: input, shape index: {}]
  %s5 = inlined_call_operand.hbm [shape: f32[8,128], index: 5, kind: input, shape index: {}]
  %s6 = inlined_call_operand.hbm [shape: f32[256,128], index: 6, kind: input, shape index: {}]
  %s7 = inlined_call_operand.hbm [shape: f32[8,128], index: 7, kind: input, shape index: {}]
  %s8 = inlined_call_operand.hbm [shape: f32[8,128], index: 8, kind: input, shape index: {}]
  %s9 = inlined_call_operand.vmem [shape: f32[8,128], index: 9, kind: input, shape index: {}]
  %s10 = inlined_call_operand.hbm [shape: f32[8,8,128], index: 10, kind: output, shape index: {0}]
  %s11 = inlined_call_operand.hbm [shape: f32[8,8,128], index: 11, kind: output, shape index: {1}]
  %12 = xla_tuple %s10, %s11
  %s13 = sld [smem:[#allocation0]]
  $region98: #{tpu_custom_call.1} parent=0
    _
  %s15 = ssub.s32 1, %s13
  %s16 = scalar_select 0, %s15, %s13
  $region1: #{tpu_custom_call.1} parent=0
    #allocation5 [shape = 'u8[32768]{0}', space=vmem, size = 0x8000, scoped, tag = 'input window, operand 0, single buffered']
    #allocation6 [shape = 's32[1]{0}', space=sflag, size = 0x4, scoped, tag = 'scoped memory for tpu_custom_call.1']
    #allocation7 [shape = 's32[1]{0}', space=sflag, size = 0x4, scoped, tag = 'scoped memory for tpu_custom_call.1']
    #allocation8 [shape = 'u8[786432]{0}', space=vmem, size = 0xc0000, scoped, tag = 'input window, operand 1, single buffered']
    #allocation9 [shape = 's32[1]{0}', space=sflag, size = 0x4, scoped, tag = 'scoped memory for tpu_custom_call.1']
    #allocation10 [shape = 'u8[2048]{0}', space=vmem, size = 0x800, scoped, tag = 'input window, operand 2, single buffered']
    #allocation11 [shape = 'u8[65536]{0}', space=vmem, size = 0x10000, scoped, tag = 'input window, operand 3, single buffered']
    #allocation12 [shape = 's32[1]{0}', space=sflag, size = 0x4, scoped, tag = 'scoped memory for tpu_custom_call.1']
    #allocation13 [shape = 'u8[65536]{0}', space=vmem, size = 0x10000, scoped, tag = 'input window, operand 4, single buffered']
    #allocation14 [shape = 'u8[4096]{0}', space=vmem, size = 0x1000, scoped, tag = 'input window, operand 5, single buffered']
    #allocation15 [shape = 's32[1]{0}', space=sflag, size = 0x4, scoped, tag = 'scoped memory for tpu_custom_call.1']
    #allocation16 [shape = 'u8[131072]{0}', space=vmem, size = 0x20000, scoped, tag = 'input window, operand 6, single buffered']
    #allocation17 [shape = 'u8[4096]{0}', space=vmem, size = 0x1000, scoped, tag = 'input window, operand 7, single buffered']
    #allocation18 [shape = 's32[1]{0}', space=sflag, size = 0x4, scoped, tag = 'scoped memory for tpu_custom_call.1']
    #allocation19 [shape = 'u8[4096]{0}', space=vmem, size = 0x1000, scoped, tag = 'input window, operand 8, single buffered']
    #allocation20 [shape = 'u8[32768]{0}', space=vmem, size = 0x8000, scoped, tag = 'output window, operand 0, single buffered']
    #allocation21 [shape = 'u8[32768]{0}', space=vmem, size = 0x8000, scoped, tag = 'output window, operand 1, single buffered']
    #allocation22 [shape = 's32[1]{0}', space=sflag, size = 0x4, scoped, tag = 'scoped memory for tpu_custom_call.1']
    %17 = vsyncpa [#allocation6], 0
    %18 = vsyncpa [#allocation9], 0
    %19 = vsyncpa [#allocation12], 0
    %20 = vsyncpa [#allocation15], 0
    %21 = vsyncpa [#allocation18], 0
    %22 = vsyncpa [#allocation7], 0
    %23 = vsyncpa [#allocation22], 0
    // Predicated region
    $region2: #{tpu_custom_call.1} parent=1 // pred_check
      _
    $region3: #{tpu_custom_call.1} parent=1 // pred_check_branch
      %25 = sbr.rel (0) target = $region5
    $region4: #{tpu_custom_call.1} parent=1 // pred_region
      %27 = vsyncadd [#allocation6], 0
      %s28 = sshll.u32 %s0, 4
      %s29 = int_to_ptr.hbm [resolvable:$true] %s28
      %s30 = sshll.u32 [#allocation5], 4
      %s31 = int_to_ptr.vmem [resolvable:$true] %s30
      %36 = dma.hbm_to_vmem [thread:$0]  %s29, 1024, %s31, [#allocation6], 128, 128, 8
    $region5: #{tpu_custom_call.1} parent=1 // pred_fallthru
      _
    // Predicated region
    $region6: #{tpu_custom_call.1} parent=1 // pred_check
      _
    $region7: #{tpu_custom_call.1} parent=1 // pred_check_branch
      %38 = sbr.rel (0) target = $region9
    $region8: #{tpu_custom_call.1} parent=1 // pred_region
      %40 = vsyncadd [#allocation9], 0
      %s41 = sshll.u32 %s1, 4
      %s42 = int_to_ptr.hbm [resolvable:$true] %s41
      %s43 = sshll.u32 [#allocation8], 4
      %s44 = int_to_ptr.vmem [resolvable:$true] %s43
      %49 = dma.hbm_to_vmem [thread:$0]  %s42, 24576, %s44, [#allocation9], 512, 512, 32
    $region9: #{tpu_custom_call.1} parent=1 // pred_fallthru
      _
    // Predicated region
    $region10: #{tpu_custom_call.1} parent=1 // pred_check
      _
    $region11: #{tpu_custom_call.1} parent=1 // pred_check_branch
      %51 = sbr.rel (0) target = $region13
    $region12: #{tpu_custom_call.1} parent=1 // pred_region
      %53 = vsyncadd [#allocation9], 0
      %s55 = sshll.u32 %s2, 4
      %s56 = int_to_ptr.hbm [resolvable:$true] %s55
      %s57 = sshll.u32 [#allocation10], 4
      %s58 = int_to_ptr.vmem [resolvable:$true] %s57
      %60 = dma.hbm_to_vmem [thread:$0]  %s56, 64, %s58, [#allocation9]
    $region13: #{tpu_custom_call.1} parent=1 // pred_fallthru
      _
    // Predicated region
    $region14: #{tpu_custom_call.1} parent=1 // pred_check
      _
    $region15: #{tpu_custom_call.1} parent=1 // pred_check_branch
      %62 = sbr.rel (0) target = $region17
    $region16: #{tpu_custom_call.1} parent=1 // pred_region
      %64 = vsyncadd [#allocation12], 0
      %s65 = sshll.u32 %s3, 4
      %s66 = int_to_ptr.hbm [resolvable:$true] %s65
      %s67 = sshll.u32 [#allocation11], 4
      %s68 = int_to_ptr.vmem [resolvable:$true] %s67
      %73 = dma.hbm_to_vmem [thread:$0]  %s66, 2048, %s68, [#allocation12], 128, 128, 8
    $region17: #{tpu_custom_call.1} parent=1 // pred_fallthru
      _
    // Predicated region
    $region18: #{tpu_custom_call.1} parent=1 // pred_check
      _
    $region19: #{tpu_custom_call.1} parent=1 // pred_check_branch
      %75 = sbr.rel (0) target = $region21
    $region20: #{tpu_custom_call.1} parent=1 // pred_region
      %77 = vsyncadd [#allocation12], 0
      %s78 = sshll.u32 %s4, 4
      %s79 = int_to_ptr.hbm [resolvable:$true] %s78
      %s80 = sshll.u32 [#allocation13], 4
      %s81 = int_to_ptr.vmem [resolvable:$true] %s80
      %86 = dma.hbm_to_vmem [thread:$0]  %s79, 2048, %s81, [#allocation12], 128, 128, 8
    $region21: #{tpu_custom_call.1} parent=1 // pred_fallthru
      _
    // Predicated region
    $region22: #{tpu_custom_call.1} parent=1 // pred_check
      _
    $region23: #{tpu_custom_call.1} parent=1 // pred_check_branch
      %88 = sbr.rel (0) target = $region25
    $region24: #{tpu_custom_call.1} parent=1 // pred_region
      %90 = vsyncadd [#allocation15], 0
      %s92 = sshll.u32 %s5, 4
      %s93 = int_to_ptr.hbm [resolvable:$true] %s92
      %s94 = sshll.u32 [#allocation14], 4
      %s95 = int_to_ptr.vmem [resolvable:$true] %s94
      %97 = dma.hbm_to_vmem [thread:$0]  %s93, 128, %s95, [#allocation15]
    $region25: #{tpu_custom_call.1} parent=1 // pred_fallthru
      _
    // Predicated region
    $region26: #{tpu_custom_call.1} parent=1 // pred_check
      _
    $region27: #{tpu_custom_call.1} parent=1 // pred_check_branch
      %99 = sbr.rel (0) target = $region29
    $region28: #{tpu_custom_call.1} parent=1 // pred_region
      %101 = vsyncadd [#allocation15], 0
      %s102 = sshll.u32 %s6, 4
      %s103 = int_to_ptr.hbm [resolvable:$true] %s102
      %s104 = sshll.u32 [#allocation16], 4
      %s105 = int_to_ptr.vmem [resolvable:$true] %s104
      %110 = dma.hbm_to_vmem [thread:$0]  %s103, 4096, %s105, [#allocation15], 128, 128, 8
    $region29: #{tpu_custom_call.1} parent=1 // pred_fallthru
      _
    // Predicated region
    $region30: #{tpu_custom_call.1} parent=1 // pred_check
      _
    $region31: #{tpu_custom_call.1} parent=1 // pred_check_branch
      %112 = sbr.rel (0) target = $region33
    $region32: #{tpu_custom_call.1} parent=1 // pred_region
      %114 = vsyncadd [#allocation18], 0
      %s116 = sshll.u32 %s7, 4
      %s117 = int_to_ptr.hbm [resolvable:$true] %s116
      %s118 = sshll.u32 [#allocation17], 4
      %s119 = int_to_ptr.vmem [resolvable:$true] %s118
      %121 = dma.hbm_to_vmem [thread:$0]  %s117, 128, %s119, [#allocation18]
    $region33: #{tpu_custom_call.1} parent=1 // pred_fallthru
      _
    // Predicated region
    $region34: #{tpu_custom_call.1} parent=1 // pred_check
      _
    $region35: #{tpu_custom_call.1} parent=1 // pred_check_branch
      %123 = sbr.rel (0) target = $region37
    $region36: #{tpu_custom_call.1} parent=1 // pred_region
      %125 = vsyncadd [#allocation18], 0
      %s127 = sshll.u32 %s8, 4
      %s128 = int_to_ptr.hbm [resolvable:$true] %s127
      %s129 = sshll.u32 [#allocation19], 4
      %s130 = int_to_ptr.vmem [resolvable:$true] %s129
      %132 = dma.hbm_to_vmem [thread:$0]  %s128, 128, %s130, [#allocation18]
    $region37: #{tpu_custom_call.1} parent=1 // pred_fallthru
      _
    // Predicated region
    $region38: #{tpu_custom_call.1} parent=1 // pred_check
      _
    $region39: #{tpu_custom_call.1} parent=1 // pred_check_branch
      %134 = sbr.rel (0) target = $region41
    $region40: #{tpu_custom_call.1} parent=1 // pred_region
      _
    $region41: #{tpu_custom_call.1} parent=1 // pred_fallthru
      _
    // Predicated region
    $region42: #{tpu_custom_call.1} parent=1 // pred_check
      _
    $region43: #{tpu_custom_call.1} parent=1 // pred_check_branch
      %136 = sbr.rel (0) target = $region45
    $region44: #{tpu_custom_call.1} parent=1 // pred_region
      %138 = dma.done [#allocation6], 1024
    $region45: #{tpu_custom_call.1} parent=1 // pred_fallthru
      _
    // Predicated region
    $region46: #{tpu_custom_call.1} parent=1 // pred_check
      _
    $region47: #{tpu_custom_call.1} parent=1 // pred_check_branch
      %140 = sbr.rel (0) target = $region49
    $region48: #{tpu_custom_call.1} parent=1 // pred_region
      %142 = dma.done [#allocation9], 24576
    $region49: #{tpu_custom_call.1} parent=1 // pred_fallthru
      _
    // Predicated region
    $region50: #{tpu_custom_call.1} parent=1 // pred_check
      _
    $region51: #{tpu_custom_call.1} parent=1 // pred_check_branch
      %144 = sbr.rel (0) target = $region53
    $region52: #{tpu_custom_call.1} parent=1 // pred_region
      %146 = dma.done [#allocation9], 64
    $region53: #{tpu_custom_call.1} parent=1 // pred_fallthru
      _
    // Predicated region
    $region54: #{tpu_custom_call.1} parent=1 // pred_check
      _
    $region55: #{tpu_custom_call.1} parent=1 // pred_check_branch
      %148 = sbr.rel (0) target = $region57
    $region56: #{tpu_custom_call.1} parent=1 // pred_region
      %150 = dma.done [#allocation12], 2048
    $region57: #{tpu_custom_call.1} parent=1 // pred_fallthru
      _
    // Predicated region
    $region58: #{tpu_custom_call.1} parent=1 // pred_check
      _
    $region59: #{tpu_custom_call.1} parent=1 // pred_check_branch
      %152 = sbr.rel (0) target = $region61
    $region60: #{tpu_custom_call.1} parent=1 // pred_region
      %154 = dma.done [#allocation12], 2048
    $region61: #{tpu_custom_call.1} parent=1 // pred_fallthru
      _
    // Predicated region
    $region62: #{tpu_custom_call.1} parent=1 // pred_check
      _
    $region63: #{tpu_custom_call.1} parent=1 // pred_check_branch
      %156 = sbr.rel (0) target = $region65
    $region64: #{tpu_custom_call.1} parent=1 // pred_region
      %158 = dma.done [#allocation15], 128
    $region65: #{tpu_custom_call.1} parent=1 // pred_fallthru
      _
    // Predicated region
    $region66: #{tpu_custom_call.1} parent=1 // pred_check
      _
    $region67: #{tpu_custom_call.1} parent=1 // pred_check_branch
      %160 = sbr.rel (0) target = $region69
    $region68: #{tpu_custom_call.1} parent=1 // pred_region
      %162 = dma.done [#allocation15], 4096
    $region69: #{tpu_custom_call.1} parent=1 // pred_fallthru
      _
    // Predicated region
    $region70: #{tpu_custom_call.1} parent=1 // pred_check
      _
    $region71: #{tpu_custom_call.1} parent=1 // pred_check_branch
      %164 = sbr.rel (0) target = $region73
    $region72: #{tpu_custom_call.1} parent=1 // pred_region
      %166 = dma.done [#allocation18], 128
    $region73: #{tpu_custom_call.1} parent=1 // pred_fallthru
      _
    // Predicated region
    $region74: #{tpu_custom_call.1} parent=1 // pred_check
      _
    $region75: #{tpu_custom_call.1} parent=1 // pred_check_branch
      %168 = sbr.rel (0) target = $region77
    $region76: #{tpu_custom_call.1} parent=1 // pred_region
      %170 = dma.done [#allocation18], 128
    $region77: #{tpu_custom_call.1} parent=1 // pred_fallthru
      _
    %p171 = scmp.eq.s32.totalorder 0, 0
    // Predicated region
    $region78: #{tpu_custom_call.1} parent=1 // pred_check
      %p172 = pneg %p171
    $region79: #{tpu_custom_call.1} parent=1 // pred_check_branch
      %174 = sbr.rel (%p172) target = $region81
    $region80: #{tpu_custom_call.1} parent=1 // pred_region
      %v175 = vld [vmem:[#allocation17] sm:$0xff]
      %176 = vst [vmem:[#allocation2] sm:$0xff] %v175
      %v177 = vld [vmem:[#allocation19] sm:$0xff]
      %178 = vst [vmem:[#allocation3] sm:$0xff] %v177
      %v179 = vld [vmem:[%s9] sm:$0xff]
      %180 = vst [vmem:[#allocation4] sm:$0xff] %v179
    $region81: #{tpu_custom_call.1} parent=1 // pred_fallthru
      _
    %v181 = vld [vmem:[#allocation8] sm:$0xff]
    %v182 = vld [vmem:[#allocation8 + $0x8] sm:$0xff]
    %v183 = vld [vmem:[#allocation8 + $0x10] sm:$0xff]
    %v184 = vld [vmem:[#allocation8 + $0x18] sm:$0xff]
    %v185 = vld [vmem:[#allocation8 + $0x20] sm:$0xff]
    %v186 = vld [vmem:[#allocation8 + $0x28] sm:$0xff]
    %v187 = vld [vmem:[#allocation8 + $0x30] sm:$0xff]
    %v188 = vld [vmem:[#allocation8 + $0x38] sm:$0xff]
    %v189 = vld [vmem:[#allocation8 + $0x40] sm:$0xff]
    %v190 = vld [vmem:[#allocation8 + $0x48] sm:$0xff]
    %v191 = vld [vmem:[#allocation8 + $0x50] sm:$0xff]
    %v192 = vld [vmem:[#allocation8 + $0x58] sm:$0xff]
    %v193 = vld [vmem:[#allocation8 + $0x60] sm:$0xff]
    %v194 = vld [vmem:[#allocation8 + $0x68] sm:$0xff]
    %v195 = vld [vmem:[#allocation8 + $0x70] sm:$0xff]
    %v196 = vld [vmem:[#allocation8 + $0x78] sm:$0xff]
    %v197 = vld [vmem:[#allocation8 + $0x80] sm:$0xff]
    %v198 = vld [vmem:[#allocation8 + $0x88] sm:$0xff]
    %v199 = vld [vmem:[#allocation8 + $0x90] sm:$0xff]
    %v200 = vld [vmem:[#allocation8 + $0x98] sm:$0xff]
    %v201 = vld [vmem:[#allocation8 + $0xa0] sm:$0xff]
    %v202 = vld [vmem:[#allocation8 + $0xa8] sm:$0xff]
    %v203 = vld [vmem:[#allocation8 + $0xb0] sm:$0xff]
    %v204 = vld [vmem:[#allocation8 + $0xb8] sm:$0xff]
    %v205 = vld [vmem:[#allocation8 + $0xc0] sm:$0xff]
    %v206 = vld [vmem:[#allocation8 + $0xc8] sm:$0xff]
    %v207 = vld [vmem:[#allocation8 + $0xd0] sm:$0xff]
    %v208 = vld [vmem:[#allocation8 + $0xd8] sm:$0xff]
    %v209 = vld [vmem:[#allocation8 + $0xe0] sm:$0xff]
    %v210 = vld [vmem:[#allocation8 + $0xe8] sm:$0xff]
    %v211 = vld [vmem:[#allocation8 + $0xf0] sm:$0xff]
    %v212 = vld [vmem:[#allocation8 + $0xf8] sm:$0xff]
    %v213 = vld [vmem:[#allocation8 + $0x100] sm:$0xff]
    %v214 = vld [vmem:[#allocation8 + $0x108] sm:$0xff]
    %v215 = vld [vmem:[#allocation8 + $0x110] sm:$0xff]
    %v216 = vld [vmem:[#allocation8 + $0x118] sm:$0xff]
    %v217 = vld [vmem:[#allocation8 + $0x120] sm:$0xff]
    %v218 = vld [vmem:[#allocation8 + $0x128] sm:$0xff]
    %v219 = vld [vmem:[#allocation8 + $0x130] sm:$0xff]
    %v220 = vld [vmem:[#allocation8 + $0x138] sm:$0xff]
    %v221 = vld [vmem:[#allocation8 + $0x140] sm:$0xff]
    %v222 = vld [vmem:[#allocation8 + $0x148] sm:$0xff]
    %v223 = vld [vmem:[#allocation8 + $0x150] sm:$0xff]
    %v224 = vld [vmem:[#allocation8 + $0x158] sm:$0xff]
    %v225 = vld [vmem:[#allocation8 + $0x160] sm:$0xff]
    %v226 = vld [vmem:[#allocation8 + $0x168] sm:$0xff]
    %v227 = vld [vmem:[#allocation8 + $0x170] sm:$0xff]
    %v228 = vld [vmem:[#allocation8 + $0x178] sm:$0xff]
    %v229 = vld [vmem:[#allocation8 + $0x180] sm:$0xff]
    %v230 = vld [vmem:[#allocation8 + $0x188] sm:$0xff]
    %v231 = vld [vmem:[#allocation8 + $0x190] sm:$0xff]
    %v232 = vld [vmem:[#allocation8 + $0x198] sm:$0xff]
    %v233 = vld [vmem:[#allocation8 + $0x1a0] sm:$0xff]
    %v234 = vld [vmem:[#allocation8 + $0x1a8] sm:$0xff]
    %v235 = vld [vmem:[#allocation8 + $0x1b0] sm:$0xff]
    %v236 = vld [vmem:[#allocation8 + $0x1b8] sm:$0xff]
    %v237 = vld [vmem:[#allocation8 + $0x1c0] sm:$0xff]
    %v238 = vld [vmem:[#allocation8 + $0x1c8] sm:$0xff]
    %v239 = vld [vmem:[#allocation8 + $0x1d0] sm:$0xff]
    %v240 = vld [vmem:[#allocation8 + $0x1d8] sm:$0xff]
    %v241 = vld [vmem:[#allocation8 + $0x1e0] sm:$0xff]
    %v242 = vld [vmem:[#allocation8 + $0x1e8] sm:$0xff]
    %v243 = vld [vmem:[#allocation8 + $0x1f0] sm:$0xff]
    %v244 = vld [vmem:[#allocation8 + $0x1f8] sm:$0xff]
    %v245 = vld [vmem:[#allocation8 + $0x200] sm:$0xff]
    %v246 = vld [vmem:[#allocation8 + $0x208] sm:$0xff]
    %v247 = vld [vmem:[#allocation8 + $0x210] sm:$0xff]
    %v248 = vld [vmem:[#allocation8 + $0x218] sm:$0xff]
    %v249 = vld [vmem:[#allocation8 + $0x220] sm:$0xff]
    %v250 = vld [vmem:[#allocation8 + $0x228] sm:$0xff]
    %v251 = vld [vmem:[#allocation8 + $0x230] sm:$0xff]
    %v252 = vld [vmem:[#allocation8 + $0x238] sm:$0xff]
    %v253 = vld [vmem:[#allocation8 + $0x240] sm:$0xff]
    %v254 = vld [vmem:[#allocation8 + $0x248] sm:$0xff]
    %v255 = vld [vmem:[#allocation8 + $0x250] sm:$0xff]
    %v256 = vld [vmem:[#allocation8 + $0x258] sm:$0xff]
    %v257 = vld [vmem:[#allocation8 + $0x260] sm:$0xff]
    %v258 = vld [vmem:[#allocation8 + $0x268] sm:$0xff]
    %v259 = vld [vmem:[#allocation8 + $0x270] sm:$0xff]
    %v260 = vld [vmem:[#allocation8 + $0x278] sm:$0xff]
    %v261 = vld [vmem:[#allocation8 + $0x280] sm:$0xff]
    %v262 = vld [vmem:[#allocation8 + $0x288] sm:$0xff]
    %v263 = vld [vmem:[#allocation8 + $0x290] sm:$0xff]
    %v264 = vld [vmem:[#allocation8 + $0x298] sm:$0xff]
    %v265 = vld [vmem:[#allocation8 + $0x2a0] sm:$0xff]
    %v266 = vld [vmem:[#allocation8 + $0x2a8] sm:$0xff]
    %v267 = vld [vmem:[#allocation8 + $0x2b0] sm:$0xff]
    %v268 = vld [vmem:[#allocation8 + $0x2b8] sm:$0xff]
    %v269 = vld [vmem:[#allocation8 + $0x2c0] sm:$0xff]
    %v270 = vld [vmem:[#allocation8 + $0x2c8] sm:$0xff]
    %v271 = vld [vmem:[#allocation8 + $0x2d0] sm:$0xff]
    %v272 = vld [vmem:[#allocation8 + $0x2d8] sm:$0xff]
    %v273 = vld [vmem:[#allocation8 + $0x2e0] sm:$0xff]
    %v274 = vld [vmem:[#allocation8 + $0x2e8] sm:$0xff]
    %v275 = vld [vmem:[#allocation8 + $0x2f0] sm:$0xff]
    %v276 = vld [vmem:[#allocation8 + $0x2f8] sm:$0xff]
    %v277 = vld [vmem:[#allocation8 + $0x300] sm:$0xff]
    %v278 = vld [vmem:[#allocation8 + $0x308] sm:$0xff]
    %v279 = vld [vmem:[#allocation8 + $0x310] sm:$0xff]
    %v280 = vld [vmem:[#allocation8 + $0x318] sm:$0xff]
    %v281 = vld [vmem:[#allocation8 + $0x320] sm:$0xff]
    %v282 = vld [vmem:[#allocation8 + $0x328] sm:$0xff]
    %v283 = vld [vmem:[#allocation8 + $0x330] sm:$0xff]
    %v284 = vld [vmem:[#allocation8 + $0x338] sm:$0xff]
    %v285 = vld [vmem:[#allocation8 + $0x340] sm:$0xff]
    %v286 = vld [vmem:[#allocation8 + $0x348] sm:$0xff]
    %v287 = vld [vmem:[#allocation8 + $0x350] sm:$0xff]
    %v288 = vld [vmem:[#allocation8 + $0x358] sm:$0xff]
    %v289 = vld [vmem:[#allocation8 + $0x360] sm:$0xff]
    %v290 = vld [vmem:[#allocation8 + $0x368] sm:$0xff]
    %v291 = vld [vmem:[#allocation8 + $0x370] sm:$0xff]
    %v292 = vld [vmem:[#allocation8 + $0x378] sm:$0xff]
    %v293 = vld [vmem:[#allocation8 + $0x380] sm:$0xff]
    %v294 = vld [vmem:[#allocation8 + $0x388] sm:$0xff]
    %v295 = vld [vmem:[#allocation8 + $0x390] sm:$0xff]
    %v296 = vld [vmem:[#allocation8 + $0x398] sm:$0xff]
    %v297 = vld [vmem:[#allocation8 + $0x3a0] sm:$0xff]
    %v298 = vld [vmem:[#allocation8 + $0x3a8] sm:$0xff]
    %v299 = vld [vmem:[#allocation8 + $0x3b0] sm:$0xff]
    %v300 = vld [vmem:[#allocation8 + $0x3b8] sm:$0xff]
    %v301 = vld [vmem:[#allocation8 + $0x3c0] sm:$0xff]
    %v302 = vld [vmem:[#allocation8 + $0x3c8] sm:$0xff]
    %v303 = vld [vmem:[#allocation8 + $0x3d0] sm:$0xff]
    %v304 = vld [vmem:[#allocation8 + $0x3d8] sm:$0xff]
    %v305 = vld [vmem:[#allocation8 + $0x3e0] sm:$0xff]
    %v306 = vld [vmem:[#allocation8 + $0x3e8] sm:$0xff]
    %v307 = vld [vmem:[#allocation8 + $0x3f0] sm:$0xff]
    %v308 = vld [vmem:[#allocation8 + $0x3f8] sm:$0xff]
    %v309 = vld [vmem:[#allocation8 + $0x400] sm:$0xff]
    %v310 = vld [vmem:[#allocation8 + $0x408] sm:$0xff]
    %v311 = vld [vmem:[#allocation8 + $0x410] sm:$0xff]
    %v312 = vld [vmem:[#allocation8 + $0x418] sm:$0xff]
    %v313 = vld [vmem:[#allocation8 + $0x420] sm:$0xff]
    %v314 = vld [vmem:[#allocation8 + $0x428] sm:$0xff]
    %v315 = vld [vmem:[#allocation8 + $0x430] sm:$0xff]
    %v316 = vld [vmem:[#allocation8 + $0x438] sm:$0xff]
    %v317 = vld [vmem:[#allocation8 + $0x440] sm:$0xff]
    %v318 = vld [vmem:[#allocation8 + $0x448] sm:$0xff]
    %v319 = vld [vmem:[#allocation8 + $0x450] sm:$0xff]
    %v320 = vld [vmem:[#allocation8 + $0x458] sm:$0xff]
    %v321 = vld [vmem:[#allocation8 + $0x460] sm:$0xff]
    %v322 = vld [vmem:[#allocation8 + $0x468] sm:$0xff]
    %v323 = vld [vmem:[#allocation8 + $0x470] sm:$0xff]
    %v324 = vld [vmem:[#allocation8 + $0x478] sm:$0xff]
    %v325 = vld [vmem:[#allocation8 + $0x480] sm:$0xff]
    %v326 = vld [vmem:[#allocation8 + $0x488] sm:$0xff]
    %v327 = vld [vmem:[#allocation8 + $0x490] sm:$0xff]
    %v328 = vld [vmem:[#allocation8 + $0x498] sm:$0xff]
    %v329 = vld [vmem:[#allocation8 + $0x4a0] sm:$0xff]
    %v330 = vld [vmem:[#allocation8 + $0x4a8] sm:$0xff]
    %v331 = vld [vmem:[#allocation8 + $0x4b0] sm:$0xff]
    %v332 = vld [vmem:[#allocation8 + $0x4b8] sm:$0xff]
    %v333 = vld [vmem:[#allocation8 + $0x4c0] sm:$0xff]
    %v334 = vld [vmem:[#allocation8 + $0x4c8] sm:$0xff]
    %v335 = vld [vmem:[#allocation8 + $0x4d0] sm:$0xff]
    %v336 = vld [vmem:[#allocation8 + $0x4d8] sm:$0xff]
    %v337 = vld [vmem:[#allocation8 + $0x4e0] sm:$0xff]
    %v338 = vld [vmem:[#allocation8 + $0x4e8] sm:$0xff]
    %v339 = vld [vmem:[#allocation8 + $0x4f0] sm:$0xff]
    %v340 = vld [vmem:[#allocation8 + $0x4f8] sm:$0xff]
    %v341 = vld [vmem:[#allocation8 + $0x500] sm:$0xff]
    %v342 = vld [vmem:[#allocation8 + $0x508] sm:$0xff]
    %v343 = vld [vmem:[#allocation8 + $0x510] sm:$0xff]
    %v344 = vld [vmem:[#allocation8 + $0x518] sm:$0xff]
    %v345 = vld [vmem:[#allocation8 + $0x520] sm:$0xff]
    %v346 = vld [vmem:[#allocation8 + $0x528] sm:$0xff]
    %v347 = vld [vmem:[#allocation8 + $0x530] sm:$0xff]
    %v348 = vld [vmem:[#allocation8 + $0x538] sm:$0xff]
    %v349 = vld [vmem:[#allocation8 + $0x540] sm:$0xff]
    %v350 = vld [vmem:[#allocation8 + $0x548] sm:$0xff]
    %v351 = vld [vmem:[#allocation8 + $0x550] sm:$0xff]
    %v352 = vld [vmem:[#allocation8 + $0x558] sm:$0xff]
    %v353 = vld [vmem:[#allocation8 + $0x560] sm:$0xff]
    %v354 = vld [vmem:[#allocation8 + $0x568] sm:$0xff]
    %v355 = vld [vmem:[#allocation8 + $0x570] sm:$0xff]
    %v356 = vld [vmem:[#allocation8 + $0x578] sm:$0xff]
    %v357 = vld [vmem:[#allocation8 + $0x580] sm:$0xff]
    %v358 = vld [vmem:[#allocation8 + $0x588] sm:$0xff]
    %v359 = vld [vmem:[#allocation8 + $0x590] sm:$0xff]
    %v360 = vld [vmem:[#allocation8 + $0x598] sm:$0xff]
    %v361 = vld [vmem:[#allocation8 + $0x5a0] sm:$0xff]
    %v362 = vld [vmem:[#allocation8 + $0x5a8] sm:$0xff]
    %v363 = vld [vmem:[#allocation8 + $0x5b0] sm:$0xff]
    %v364 = vld [vmem:[#allocation8 + $0x5b8] sm:$0xff]
    %v365 = vld [vmem:[#allocation8 + $0x5c0] sm:$0xff]
    %v366 = vld [vmem:[#allocation8 + $0x5c8] sm:$0xff]
    %v367 = vld [vmem:[#allocation8 + $0x5d0] sm:$0xff]
    %v368 = vld [vmem:[#allocation8 + $0x5d8] sm:$0xff]
    %v369 = vld [vmem:[#allocation8 + $0x5e0] sm:$0xff]
    %v370 = vld [vmem:[#allocation8 + $0x5e8] sm:$0xff]
    %v371 = vld [vmem:[#allocation8 + $0x5f0] sm:$0xff]
    %v372 = vld [vmem:[#allocation8 + $0x5f8] sm:$0xff]
    %v373 = vld [vmem:[#allocation10] sm:$0xf]
    %v374 = vld [vmem:[#allocation11] sm:$0xff]
    %v375 = vld [vmem:[#allocation11 + $0x8] sm:$0xff]
    %v376 = vld [vmem:[#allocation11 + $0x10] sm:$0xff]
    %v377 = vld [vmem:[#allocation11 + $0x18] sm:$0xff]
    %v378 = vld [vmem:[#allocation11 + $0x20] sm:$0xff]
    %v379 = vld [vmem:[#allocation11 + $0x28] sm:$0xff]
    %v380 = vld [vmem:[#allocation11 + $0x30] sm:$0xff]
    %v381 = vld [vmem:[#allocation11 + $0x38] sm:$0xff]
    %v382 = vld [vmem:[#allocation11 + $0x40] sm:$0xff]
    %v383 = vld [vmem:[#allocation11 + $0x48] sm:$0xff]
    %v384 = vld [vmem:[#allocation11 + $0x50] sm:$0xff]
    %v385 = vld [vmem:[#allocation11 + $0x58] sm:$0xff]
    %v386 = vld [vmem:[#allocation11 + $0x60] sm:$0xff]
    %v387 = vld [vmem:[#allocation11 + $0x68] sm:$0xff]
    %v388 = vld [vmem:[#allocation11 + $0x70] sm:$0xff]
    %v389 = vld [vmem:[#allocation11 + $0x78] sm:$0xff]
    %v390 = vld [vmem:[#allocation13] sm:$0xff]
    %v391 = vld [vmem:[#allocation13 + $0x8] sm:$0xff]
    %v392 = vld [vmem:[#allocation13 + $0x10] sm:$0xff]
    %v393 = vld [vmem:[#allocation13 + $0x18] sm:$0xff]
    %v394 = vld [vmem:[#allocation13 + $0x20] sm:$0xff]
    %v395 = vld [vmem:[#allocation13 + $0x28] sm:$0xff]
    %v396 = vld [vmem:[#allocation13 + $0x30] sm:$0xff]
    %v397 = vld [vmem:[#allocation13 + $0x38] sm:$0xff]
    %v398 = vld [vmem:[#allocation13 + $0x40] sm:$0xff]
    %v399 = vld [vmem:[#allocation13 + $0x48] sm:$0xff]
    %v400 = vld [vmem:[#allocation13 + $0x50] sm:$0xff]
    %v401 = vld [vmem:[#allocation13 + $0x58] sm:$0xff]
    %v402 = vld [vmem:[#allocation13 + $0x60] sm:$0xff]
    %v403 = vld [vmem:[#allocation13 + $0x68] sm:$0xff]
    %v404 = vld [vmem:[#allocation13 + $0x70] sm:$0xff]
    %v405 = vld [vmem:[#allocation13 + $0x78] sm:$0xff]
    %v406 = vld [vmem:[#allocation14] sm:$0xff]
    %v407 = vld [vmem:[#allocation16] sm:$0xff]
    %v408 = vld [vmem:[#allocation16 + $0x8] sm:$0xff]
    %v409 = vld [vmem:[#allocation16 + $0x10] sm:$0xff]
    %v410 = vld [vmem:[#allocation16 + $0x18] sm:$0xff]
    %v411 = vld [vmem:[#allocation16 + $0x20] sm:$0xff]
    %v412 = vld [vmem:[#allocation16 + $0x28] sm:$0xff]
    %v413 = vld [vmem:[#allocation16 + $0x30] sm:$0xff]
    %v414 = vld [vmem:[#allocation16 + $0x38] sm:$0xff]
    %v415 = vld [vmem:[#allocation16 + $0x40] sm:$0xff]
    %v416 = vld [vmem:[#allocation16 + $0x48] sm:$0xff]
    %v417 = vld [vmem:[#allocation16 + $0x50] sm:$0xff]
    %v418 = vld [vmem:[#allocation16 + $0x58] sm:$0xff]
    %v419 = vld [vmem:[#allocation16 + $0x60] sm:$0xff]
    %v420 = vld [vmem:[#allocation16 + $0x68] sm:$0xff]
    %v421 = vld [vmem:[#allocation16 + $0x70] sm:$0xff]
    %v422 = vld [vmem:[#allocation16 + $0x78] sm:$0xff]
    %v423 = vld [vmem:[#allocation16 + $0x80] sm:$0xff]
    %v424 = vld [vmem:[#allocation16 + $0x88] sm:$0xff]
    %v425 = vld [vmem:[#allocation16 + $0x90] sm:$0xff]
    %v426 = vld [vmem:[#allocation16 + $0x98] sm:$0xff]
    %v427 = vld [vmem:[#allocation16 + $0xa0] sm:$0xff]
    %v428 = vld [vmem:[#allocation16 + $0xa8] sm:$0xff]
    %v429 = vld [vmem:[#allocation16 + $0xb0] sm:$0xff]
    %v430 = vld [vmem:[#allocation16 + $0xb8] sm:$0xff]
    %v431 = vld [vmem:[#allocation16 + $0xc0] sm:$0xff]
    %v432 = vld [vmem:[#allocation16 + $0xc8] sm:$0xff]
    %v433 = vld [vmem:[#allocation16 + $0xd0] sm:$0xff]
    %v434 = vld [vmem:[#allocation16 + $0xd8] sm:$0xff]
    %v435 = vld [vmem:[#allocation16 + $0xe0] sm:$0xff]
    %v436 = vld [vmem:[#allocation16 + $0xe8] sm:$0xff]
    %v437 = vld [vmem:[#allocation16 + $0xf0] sm:$0xff]
    %v438 = vld [vmem:[#allocation16 + $0xf8] sm:$0xff]
    %v439 = vld [vmem:[#allocation2] sm:$0xff]
    %v440 = vld [vmem:[#allocation3] sm:$0xff]
    %v441 = vld [vmem:[#allocation4] sm:$0xff]
    %v442 = vld [vmem:[#allocation5] sm:$0xff]
    %v444 = vperm.slane %v373, 0
    %v445 = vperm.slane %v373, 1
    %v446 = vperm.slane %v373, 2
    %v447 = vperm.slane %v373, 3
    %452 = vmatpush.msra.mxu0 %v241
    %453 = vmatpush.msra.mxu0 %v237
    %454 = vmatpush.msra.mxu0 %v233
    %455 = vmatpush.msra.mxu0 %v229
    %456 = vmatpush.msra.mxu0 %v225
    %457 = vmatpush.msra.mxu0 %v221
    %458 = vmatpush.msra.mxu0 %v217
    %459 = vmatpush.msra.mxu0 %v213
    %460 = vmatpush.msra.mxu0 %v209
    %461 = vmatpush.msra.mxu0 %v205
    %462 = vmatpush.msra.mxu0 %v201
    %463 = vmatpush.msra.mxu0 %v197
    %464 = vmatpush.msra.mxu0 %v193
    %465 = vmatpush.msra.mxu0 %v189
    %466 = vmatpush.msra.mxu0 %v185
    %467 = vmatpush.msra.mxu0 %v181
    %468 = vmatmul.f32.gmra.mxu0 %v442
    %v469 = vpop.f32.mrf.mxu0
    %v470 = vadd.f32 %v444, %v469
    %471 = vdwg.mxu0
    %472 = vmatpush.msra.mxu0 %v305
    %473 = vmatpush.msra.mxu0 %v301
    %474 = vmatpush.msra.mxu0 %v297
    %475 = vmatpush.msra.mxu0 %v293
    %476 = vmatpush.msra.mxu0 %v289
    %477 = vmatpush.msra.mxu0 %v285
    %478 = vmatpush.msra.mxu0 %v281
    %479 = vmatpush.msra.mxu0 %v277
    %480 = vmatpush.msra.mxu0 %v273
    %481 = vmatpush.msra.mxu0 %v269
    %482 = vmatpush.msra.mxu0 %v265
    %483 = vmatpush.msra.mxu0 %v261
    %484 = vmatpush.msra.mxu0 %v257
    %485 = vmatpush.msra.mxu0 %v253
    %486 = vmatpush.msra.mxu0 %v249
    %487 = vmatpush.msra.mxu0 %v245
    %488 = vmatmul.f32.gmra.mxu0 %v441
    %v489 = vpop.f32.mrf.mxu0
    %v490 = vadd.f32 %v470, %v489
    %491 = vdwg.mxu0
    %492 = vmatpush.msra.mxu0 %v369
    %493 = vmatpush.msra.mxu0 %v365
    %494 = vmatpush.msra.mxu0 %v361
    %495 = vmatpush.msra.mxu0 %v357
    %496 = vmatpush.msra.mxu0 %v353
    %497 = vmatpush.msra.mxu0 %v349
    %498 = vmatpush.msra.mxu0 %v345
    %499 = vmatpush.msra.mxu0 %v341
    %500 = vmatpush.msra.mxu0 %v337
    %501 = vmatpush.msra.mxu0 %v333
    %502 = vmatpush.msra.mxu0 %v329
    %503 = vmatpush.msra.mxu0 %v325
    %504 = vmatpush.msra.mxu0 %v321
    %505 = vmatpush.msra.mxu0 %v317
    %506 = vmatpush.msra.mxu0 %v313
    %507 = vmatpush.msra.mxu0 %v309
    %508 = vmatmul.f32.gmra.mxu0 %v439
    %v509 = vpop.f32.mrf.mxu0
    %v510 = vadd.f32 %v490, %v509
    %511 = vdwg.mxu0
    %512 = vmatpush.msra.mxu0 %v242
    %513 = vmatpush.msra.mxu0 %v238
    %514 = vmatpush.msra.mxu0 %v234
    %515 = vmatpush.msra.mxu0 %v230
    %516 = vmatpush.msra.mxu0 %v226
    %517 = vmatpush.msra.mxu0 %v222
    %518 = vmatpush.msra.mxu0 %v218
    %519 = vmatpush.msra.mxu0 %v214
    %520 = vmatpush.msra.mxu0 %v210
    %521 = vmatpush.msra.mxu0 %v206
    %522 = vmatpush.msra.mxu0 %v202
    %523 = vmatpush.msra.mxu0 %v198
    %524 = vmatpush.msra.mxu0 %v194
    %525 = vmatpush.msra.mxu0 %v190
    %526 = vmatpush.msra.mxu0 %v186
    %527 = vmatpush.msra.mxu0 %v182
    %528 = vmatmul.f32.gmra.mxu0 %v442
    %v529 = vpop.f32.mrf.mxu0
    %v530 = vadd.f32 %v445, %v529
    %531 = vdwg.mxu0
    %532 = vmatpush.msra.mxu0 %v306
    %533 = vmatpush.msra.mxu0 %v302
    %534 = vmatpush.msra.mxu0 %v298
    %535 = vmatpush.msra.mxu0 %v294
    %536 = vmatpush.msra.mxu0 %v290
    %537 = vmatpush.msra.mxu0 %v286
    %538 = vmatpush.msra.mxu0 %v282
    %539 = vmatpush.msra.mxu0 %v278
    %540 = vmatpush.msra.mxu0 %v274
    %541 = vmatpush.msra.mxu0 %v270
    %542 = vmatpush.msra.mxu0 %v266
    %543 = vmatpush.msra.mxu0 %v262
    %544 = vmatpush.msra.mxu0 %v258
    %545 = vmatpush.msra.mxu0 %v254
    %546 = vmatpush.msra.mxu0 %v250
    %547 = vmatpush.msra.mxu0 %v246
    %548 = vmatmul.f32.gmra.mxu0 %v441
    %v549 = vpop.f32.mrf.mxu0
    %v550 = vadd.f32 %v530, %v549
    %551 = vdwg.mxu0
    %552 = vmatpush.msra.mxu0 %v370
    %553 = vmatpush.msra.mxu0 %v366
    %554 = vmatpush.msra.mxu0 %v362
    %555 = vmatpush.msra.mxu0 %v358
    %556 = vmatpush.msra.mxu0 %v354
    %557 = vmatpush.msra.mxu0 %v350
    %558 = vmatpush.msra.mxu0 %v346
    %559 = vmatpush.msra.mxu0 %v342
    %560 = vmatpush.msra.mxu0 %v338
    %561 = vmatpush.msra.mxu0 %v334
    %562 = vmatpush.msra.mxu0 %v330
    %563 = vmatpush.msra.mxu0 %v326
    %564 = vmatpush.msra.mxu0 %v322
    %565 = vmatpush.msra.mxu0 %v318
    %566 = vmatpush.msra.mxu0 %v314
    %567 = vmatpush.msra.mxu0 %v310
    %568 = vmatmul.f32.gmra.mxu0 %v439
    %v569 = vpop.f32.mrf.mxu0
    %v570 = vadd.f32 %v550, %v569
    %571 = vdwg.mxu0
    %572 = vmatpush.msra.mxu0 %v243
    %573 = vmatpush.msra.mxu0 %v239
    %574 = vmatpush.msra.mxu0 %v235
    %575 = vmatpush.msra.mxu0 %v231
    %576 = vmatpush.msra.mxu0 %v227
    %577 = vmatpush.msra.mxu0 %v223
    %578 = vmatpush.msra.mxu0 %v219
    %579 = vmatpush.msra.mxu0 %v215
    %580 = vmatpush.msra.mxu0 %v211
    %581 = vmatpush.msra.mxu0 %v207
    %582 = vmatpush.msra.mxu0 %v203
    %583 = vmatpush.msra.mxu0 %v199
    %584 = vmatpush.msra.mxu0 %v195
    %585 = vmatpush.msra.mxu0 %v191
    %586 = vmatpush.msra.mxu0 %v187
    %587 = vmatpush.msra.mxu0 %v183
    %588 = vmatmul.f32.gmra.mxu0 %v442
    %v589 = vpop.f32.mrf.mxu0
    %v590 = vadd.f32 %v446, %v589
    %591 = vdwg.mxu0
    %592 = vmatpush.msra.mxu0 %v307
    %593 = vmatpush.msra.mxu0 %v303
    %594 = vmatpush.msra.mxu0 %v299
    %595 = vmatpush.msra.mxu0 %v295
    %596 = vmatpush.msra.mxu0 %v291
    %597 = vmatpush.msra.mxu0 %v287
    %598 = vmatpush.msra.mxu0 %v283
    %599 = vmatpush.msra.mxu0 %v279
    %600 = vmatpush.msra.mxu0 %v275
    %601 = vmatpush.msra.mxu0 %v271
    %602 = vmatpush.msra.mxu0 %v267
    %603 = vmatpush.msra.mxu0 %v263
    %604 = vmatpush.msra.mxu0 %v259
    %605 = vmatpush.msra.mxu0 %v255
    %606 = vmatpush.msra.mxu0 %v251
    %607 = vmatpush.msra.mxu0 %v247
    %608 = vmatmul.f32.gmra.mxu0 %v441
    %v609 = vpop.f32.mrf.mxu0
    %v610 = vadd.f32 %v590, %v609
    %611 = vdwg.mxu0
    %612 = vmatpush.msra.mxu0 %v371
    %613 = vmatpush.msra.mxu0 %v367
    %614 = vmatpush.msra.mxu0 %v363
    %615 = vmatpush.msra.mxu0 %v359
    %616 = vmatpush.msra.mxu0 %v355
    %617 = vmatpush.msra.mxu0 %v351
    %618 = vmatpush.msra.mxu0 %v347
    %619 = vmatpush.msra.mxu0 %v343
    %620 = vmatpush.msra.mxu0 %v339
    %621 = vmatpush.msra.mxu0 %v335
    %622 = vmatpush.msra.mxu0 %v331
    %623 = vmatpush.msra.mxu0 %v327
    %624 = vmatpush.msra.mxu0 %v323
    %625 = vmatpush.msra.mxu0 %v319
    %626 = vmatpush.msra.mxu0 %v315
    %627 = vmatpush.msra.mxu0 %v311
    %628 = vmatmul.f32.gmra.mxu0 %v439
    %v629 = vpop.f32.mrf.mxu0
    %v630 = vadd.f32 %v610, %v629
    %631 = vdwg.mxu0
    %632 = vmatpush.msra.mxu0 %v244
    %633 = vmatpush.msra.mxu0 %v240
    %634 = vmatpush.msra.mxu0 %v236
    %635 = vmatpush.msra.mxu0 %v232
    %636 = vmatpush.msra.mxu0 %v228
    %637 = vmatpush.msra.mxu0 %v224
    %638 = vmatpush.msra.mxu0 %v220
    %639 = vmatpush.msra.mxu0 %v216
    %640 = vmatpush.msra.mxu0 %v212
    %641 = vmatpush.msra.mxu0 %v208
    %642 = vmatpush.msra.mxu0 %v204
    %643 = vmatpush.msra.mxu0 %v200
    %644 = vmatpush.msra.mxu0 %v196
    %645 = vmatpush.msra.mxu0 %v192
    %646 = vmatpush.msra.mxu0 %v188
    %647 = vmatpush.msra.mxu0 %v184
    %648 = vmatmul.f32.gmra.mxu0 %v442
    %v649 = vpop.f32.mrf.mxu0
    %v650 = vadd.f32 %v447, %v649
    %651 = vdwg.mxu0
    %652 = vmatpush.msra.mxu0 %v308
    %653 = vmatpush.msra.mxu0 %v304
    %654 = vmatpush.msra.mxu0 %v300
    %655 = vmatpush.msra.mxu0 %v296
    %656 = vmatpush.msra.mxu0 %v292
    %657 = vmatpush.msra.mxu0 %v288
    %658 = vmatpush.msra.mxu0 %v284
    %659 = vmatpush.msra.mxu0 %v280
    %660 = vmatpush.msra.mxu0 %v276
    %661 = vmatpush.msra.mxu0 %v272
    %662 = vmatpush.msra.mxu0 %v268
    %663 = vmatpush.msra.mxu0 %v264
    %664 = vmatpush.msra.mxu0 %v260
    %665 = vmatpush.msra.mxu0 %v256
    %666 = vmatpush.msra.mxu0 %v252
    %667 = vmatpush.msra.mxu0 %v248
    %668 = vmatmul.f32.gmra.mxu0 %v441
    %v669 = vpop.f32.mrf.mxu0
    %v670 = vadd.f32 %v650, %v669
    %671 = vdwg.mxu0
    %672 = vmatpush.msra.mxu0 %v372
    %673 = vmatpush.msra.mxu0 %v368
    %674 = vmatpush.msra.mxu0 %v364
    %675 = vmatpush.msra.mxu0 %v360
    %676 = vmatpush.msra.mxu0 %v356
    %677 = vmatpush.msra.mxu0 %v352
    %678 = vmatpush.msra.mxu0 %v348
    %679 = vmatpush.msra.mxu0 %v344
    %680 = vmatpush.msra.mxu0 %v340
    %681 = vmatpush.msra.mxu0 %v336
    %682 = vmatpush.msra.mxu0 %v332
    %683 = vmatpush.msra.mxu0 %v328
    %684 = vmatpush.msra.mxu0 %v324
    %685 = vmatpush.msra.mxu0 %v320
    %686 = vmatpush.msra.mxu0 %v316
    %687 = vmatpush.msra.mxu0 %v312
    %688 = vmatmul.f32.gmra.mxu0 %v439
    %v689 = vpop.f32.mrf.mxu0
    %v690 = vadd.f32 %v670, %v689
    %691 = vdwg.mxu0
    %v692 = vxor.u32 %v510, 2147483648
    %v693 = vmul.f32 %v692, 1.442695
    %v694 = vpow.pop %v693
    %v695 = vadd.f32 %v694, 1.0
    %v696 = vrcp.pop %v695
    %v697 = vmul.f32 %v695, %v696
    %v698 = vsub.f32 1.0, %v697
    %v699 = vmul.f32 %v696, %v698
    %v700 = vadd.f32 %v696, %v699
    %vm701 = vweird.f32 %v695
    %vm702 = vweird.f32 %v696
    %vm703 = vmor %vm701, %vm702
    %v704 = vsel %vm703, %v696, %v700
    %v705 = vand.u32 2147483647, %v695
    %vm706 = vcmp.eq.f32.partialorder %v705, 8.507059e+37
    %v707 = vand.u32 %v695, 2147483648
    %v708 = vor.u32 1.1754944e-38, %v707
    %v709 = vsel %vm706, %v708, %v704
    %v710 = vmul.f32 1.0, %v709
    %v711 = vxor.u32 %v570, 2147483648
    %v712 = vmul.f32 %v711, 1.442695
    %v713 = vpow.pop %v712
    %v714 = vadd.f32 %v713, 1.0
    %v715 = vrcp.pop %v714
    %v716 = vmul.f32 %v714, %v715
    %v717 = vsub.f32 1.0, %v716
    %v718 = vmul.f32 %v715, %v717
    %v719 = vadd.f32 %v715, %v718
    %vm720 = vweird.f32 %v714
    %vm721 = vweird.f32 %v715
    %vm722 = vmor %vm720, %vm721
    %v723 = vsel %vm722, %v715, %v719
    %v724 = vand.u32 2147483647, %v714
    %vm725 = vcmp.eq.f32.partialorder %v724, 8.507059e+37
    %v726 = vand.u32 %v714, 2147483648
    %v727 = vor.u32 1.1754944e-38, %v726
    %v728 = vsel %vm725, %v727, %v723
    %v729 = vmul.f32 1.0, %v728
    %v730 = vtanh.pop %v630
    %v731 = vxor.u32 %v690, 2147483648
    %v732 = vmul.f32 %v731, 1.442695
    %v733 = vpow.pop %v732
    %v734 = vadd.f32 %v733, 1.0
    %v735 = vrcp.pop %v734
    %v736 = vmul.f32 %v734, %v735
    %v737 = vsub.f32 1.0, %v736
    %v738 = vmul.f32 %v735, %v737
    %v739 = vadd.f32 %v735, %v738
    %vm740 = vweird.f32 %v734
    %vm741 = vweird.f32 %v735
    %vm742 = vmor %vm740, %vm741
    %v743 = vsel %vm742, %v735, %v739
    %v744 = vand.u32 2147483647, %v734
    %vm745 = vcmp.eq.f32.partialorder %v744, 8.507059e+37
    %v746 = vand.u32 %v734, 2147483648
    %v747 = vor.u32 1.1754944e-38, %v746
    %v748 = vsel %vm745, %v747, %v743
    %v749 = vmul.f32 1.0, %v748
    %v750 = vmul.f32 %v729, %v440
    %v751 = vmul.f32 %v710, %v730
    %v752 = vadd.f32 %v750, %v751
    %v753 = vtanh.pop %v752
    %v754 = vmul.f32 %v749, %v753
    %755 = vmatpush.msra.mxu0 %v389
    %756 = vmatpush.msra.mxu0 %v388
    %757 = vmatpush.msra.mxu0 %v387
    %758 = vmatpush.msra.mxu0 %v386
    %759 = vmatpush.msra.mxu0 %v385
    %760 = vmatpush.msra.mxu0 %v384
    %761 = vmatpush.msra.mxu0 %v383
    %762 = vmatpush.msra.mxu0 %v382
    %763 = vmatpush.msra.mxu0 %v381
    %764 = vmatpush.msra.mxu0 %v380
    %765 = vmatpush.msra.mxu0 %v379
    %766 = vmatpush.msra.mxu0 %v378
    %767 = vmatpush.msra.mxu0 %v377
    %768 = vmatpush.msra.mxu0 %v376
    %769 = vmatpush.msra.mxu0 %v375
    %770 = vmatpush.msra.mxu0 %v374
    %771 = vmatmul.f32.gmra.mxu0 %v754
    %v772 = vpop.f32.mrf.mxu0
    %v773 = vadd.f32 %v406, %v772
    %774 = vdwg.mxu0
    %775 = vmax.xlane.f32.xlu0 %v773
    %v776 = vpop.xlane.xlu0 %775
    %v777 = vsub.f32 %v773, %v776
    %v778 = vmul.f32 %v777, 1.442695
    %v779 = vpow.pop %v778
    %780 = vadd.xlane.f32.xlu0 %v779
    %v781 = vpop.xlane.xlu0 %780
    %v782 = vrcp.pop %v781
    %v783 = vmul.f32 %v779, %v782
    %784 = vmatpush.msra.mxu0 %v405
    %785 = vmatpush.msra.mxu0 %v404
    %786 = vmatpush.msra.mxu0 %v403
    %787 = vmatpush.msra.mxu0 %v402
    %788 = vmatpush.msra.mxu0 %v401
    %789 = vmatpush.msra.mxu0 %v400
    %790 = vmatpush.msra.mxu0 %v399
    %791 = vmatpush.msra.mxu0 %v398
    %792 = vmatpush.msra.mxu0 %v397
    %793 = vmatpush.msra.mxu0 %v396
    %794 = vmatpush.msra.mxu0 %v395
    %795 = vmatpush.msra.mxu0 %v394
    %796 = vmatpush.msra.mxu0 %v393
    %797 = vmatpush.msra.mxu0 %v392
    %798 = vmatpush.msra.mxu0 %v391
    %799 = vmatpush.msra.mxu0 %v390
    %800 = vmatmul.f32.gmra.mxu0 %v783
    %v801 = vpop.f32.mrf.mxu0
    %v802 = vadd.f32 0.0, %v801
    %803 = vdwg.mxu0
    %804 = vmatpush.msra.mxu0 %v422
    %805 = vmatpush.msra.mxu0 %v421
    %806 = vmatpush.msra.mxu0 %v420
    %807 = vmatpush.msra.mxu0 %v419
    %808 = vmatpush.msra.mxu0 %v418
    %809 = vmatpush.msra.mxu0 %v417
    %810 = vmatpush.msra.mxu0 %v416
    %811 = vmatpush.msra.mxu0 %v415
    %812 = vmatpush.msra.mxu0 %v414
    %813 = vmatpush.msra.mxu0 %v413
    %814 = vmatpush.msra.mxu0 %v412
    %815 = vmatpush.msra.mxu0 %v411
    %816 = vmatpush.msra.mxu0 %v410
    %817 = vmatpush.msra.mxu0 %v409
    %818 = vmatpush.msra.mxu0 %v408
    %819 = vmatpush.msra.mxu0 %v407
    %820 = vmatmul.f32.gmra.mxu0 %v802
    %v821 = vpop.f32.mrf.mxu0
    %v822 = vadd.f32 0.0, %v821
    %823 = vdwg.mxu0
    %824 = vmatpush.msra.mxu0 %v438
    %825 = vmatpush.msra.mxu0 %v437
    %826 = vmatpush.msra.mxu0 %v436
    %827 = vmatpush.msra.mxu0 %v435
    %828 = vmatpush.msra.mxu0 %v434
    %829 = vmatpush.msra.mxu0 %v433
    %830 = vmatpush.msra.mxu0 %v432
    %831 = vmatpush.msra.mxu0 %v431
    %832 = vmatpush.msra.mxu0 %v430
    %833 = vmatpush.msra.mxu0 %v429
    %834 = vmatpush.msra.mxu0 %v428
    %835 = vmatpush.msra.mxu0 %v427
    %836 = vmatpush.msra.mxu0 %v426
    %837 = vmatpush.msra.mxu0 %v425
    %838 = vmatpush.msra.mxu0 %v424
    %839 = vmatpush.msra.mxu0 %v423
    %840 = vmatmul.f32.gmra.mxu0 %v754
    %v841 = vpop.f32.mrf.mxu0
    %v842 = vadd.f32 %v822, %v841
    %843 = vdwg.mxu0
    %v844 = vtanh.pop %v842
    %845 = vst [vmem:[#allocation20] sm:$0xff] %v844
    %846 = vst [vmem:[#allocation21] sm:$0xff] %v783
    %s847 = scalar_lea.vmem [#allocation5], 8
    %v848 = vld [vmem:[%s847] sm:$0xff]
    %849 = vmatpush.msra.mxu0 %v241
    %850 = vmatpush.msra.mxu0 %v237
    %851 = vmatpush.msra.mxu0 %v233
    %852 = vmatpush.msra.mxu0 %v229
    %853 = vmatpush.msra.mxu0 %v225
    %854 = vmatpush.msra.mxu0 %v221
    %855 = vmatpush.msra.mxu0 %v217
    %856 = vmatpush.msra.mxu0 %v213
    %857 = vmatpush.msra.mxu0 %v209
    %858 = vmatpush.msra.mxu0 %v205
    %859 = vmatpush.msra.mxu0 %v201
    %860 = vmatpush.msra.mxu0 %v197
    %861 = vmatpush.msra.mxu0 %v193
    %862 = vmatpush.msra.mxu0 %v189
    %863 = vmatpush.msra.mxu0 %v185
    %864 = vmatpush.msra.mxu0 %v181
    %865 = vmatmul.f32.gmra.mxu0 %v848
    %v866 = vpop.f32.mrf.mxu0
    %v867 = vadd.f32 %v444, %v866
    %868 = vdwg.mxu0
    %869 = vmatpush.msra.mxu0 %v305
    %870 = vmatpush.msra.mxu0 %v301
    %871 = vmatpush.msra.mxu0 %v297
    %872 = vmatpush.msra.mxu0 %v293
    %873 = vmatpush.msra.mxu0 %v289
    %874 = vmatpush.msra.mxu0 %v285
    %875 = vmatpush.msra.mxu0 %v281
    %876 = vmatpush.msra.mxu0 %v277
    %877 = vmatpush.msra.mxu0 %v273
    %878 = vmatpush.msra.mxu0 %v269
    %879 = vmatpush.msra.mxu0 %v265
    %880 = vmatpush.msra.mxu0 %v261
    %881 = vmatpush.msra.mxu0 %v257
    %882 = vmatpush.msra.mxu0 %v253
    %883 = vmatpush.msra.mxu0 %v249
    %884 = vmatpush.msra.mxu0 %v245
    %885 = vmatmul.f32.gmra.mxu0 %v844
    %v886 = vpop.f32.mrf.mxu0
    %v887 = vadd.f32 %v867, %v886
    %888 = vdwg.mxu0
    %889 = vmatpush.msra.mxu0 %v369
    %890 = vmatpush.msra.mxu0 %v365
    %891 = vmatpush.msra.mxu0 %v361
    %892 = vmatpush.msra.mxu0 %v357
    %893 = vmatpush.msra.mxu0 %v353
    %894 = vmatpush.msra.mxu0 %v349
    %895 = vmatpush.msra.mxu0 %v345
    %896 = vmatpush.msra.mxu0 %v341
    %897 = vmatpush.msra.mxu0 %v337
    %898 = vmatpush.msra.mxu0 %v333
    %899 = vmatpush.msra.mxu0 %v329
    %900 = vmatpush.msra.mxu0 %v325
    %901 = vmatpush.msra.mxu0 %v321
    %902 = vmatpush.msra.mxu0 %v317
    %903 = vmatpush.msra.mxu0 %v313
    %904 = vmatpush.msra.mxu0 %v309
    %905 = vmatmul.f32.gmra.mxu0 %v754
    %v906 = vpop.f32.mrf.mxu0
    %v907 = vadd.f32 %v887, %v906
    %908 = vdwg.mxu0
    %909 = vmatpush.msra.mxu0 %v242
    %910 = vmatpush.msra.mxu0 %v238
    %911 = vmatpush.msra.mxu0 %v234
    %912 = vmatpush.msra.mxu0 %v230
    %913 = vmatpush.msra.mxu0 %v226
    %914 = vmatpush.msra.mxu0 %v222
    %915 = vmatpush.msra.mxu0 %v218
    %916 = vmatpush.msra.mxu0 %v214
    %917 = vmatpush.msra.mxu0 %v210
    %918 = vmatpush.msra.mxu0 %v206
    %919 = vmatpush.msra.mxu0 %v202
    %920 = vmatpush.msra.mxu0 %v198
    %921 = vmatpush.msra.mxu0 %v194
    %922 = vmatpush.msra.mxu0 %v190
    %923 = vmatpush.msra.mxu0 %v186
    %924 = vmatpush.msra.mxu0 %v182
    %925 = vmatmul.f32.gmra.mxu0 %v848
    %v926 = vpop.f32.mrf.mxu0
    %v927 = vadd.f32 %v445, %v926
    %928 = vdwg.mxu0
    %929 = vmatpush.msra.mxu0 %v306
    %930 = vmatpush.msra.mxu0 %v302
    %931 = vmatpush.msra.mxu0 %v298
    %932 = vmatpush.msra.mxu0 %v294
    %933 = vmatpush.msra.mxu0 %v290
    %934 = vmatpush.msra.mxu0 %v286
    %935 = vmatpush.msra.mxu0 %v282
    %936 = vmatpush.msra.mxu0 %v278
    %937 = vmatpush.msra.mxu0 %v274
    %938 = vmatpush.msra.mxu0 %v270
    %939 = vmatpush.msra.mxu0 %v266
    %940 = vmatpush.msra.mxu0 %v262
    %941 = vmatpush.msra.mxu0 %v258
    %942 = vmatpush.msra.mxu0 %v254
    %943 = vmatpush.msra.mxu0 %v250
    %944 = vmatpush.msra.mxu0 %v246
    %945 = vmatmul.f32.gmra.mxu0 %v844
    %v946 = vpop.f32.mrf.mxu0
    %v947 = vadd.f32 %v927, %v946
    %948 = vdwg.mxu0
    %949 = vmatpush.msra.mxu0 %v370
    %950 = vmatpush.msra.mxu0 %v366
    %951 = vmatpush.msra.mxu0 %v362
    %952 = vmatpush.msra.mxu0 %v358
    %953 = vmatpush.msra.mxu0 %v354
    %954 = vmatpush.msra.mxu0 %v350
    %955 = vmatpush.msra.mxu0 %v346
    %956 = vmatpush.msra.mxu0 %v342
    %957 = vmatpush.msra.mxu0 %v338
    %958 = vmatpush.msra.mxu0 %v334
    %959 = vmatpush.msra.mxu0 %v330
    %960 = vmatpush.msra.mxu0 %v326
    %961 = vmatpush.msra.mxu0 %v322
    %962 = vmatpush.msra.mxu0 %v318
    %963 = vmatpush.msra.mxu0 %v314
    %964 = vmatpush.msra.mxu0 %v310
    %965 = vmatmul.f32.gmra.mxu0 %v754
    %v966 = vpop.f32.mrf.mxu0
    %v967 = vadd.f32 %v947, %v966
    %968 = vdwg.mxu0
    %969 = vmatpush.msra.mxu0 %v243
    %970 = vmatpush.msra.mxu0 %v239
    %971 = vmatpush.msra.mxu0 %v235
    %972 = vmatpush.msra.mxu0 %v231
    %973 = vmatpush.msra.mxu0 %v227
    %974 = vmatpush.msra.mxu0 %v223
    %975 = vmatpush.msra.mxu0 %v219
    %976 = vmatpush.msra.mxu0 %v215
    %977 = vmatpush.msra.mxu0 %v211
    %978 = vmatpush.msra.mxu0 %v207
    %979 = vmatpush.msra.mxu0 %v203
    %980 = vmatpush.msra.mxu0 %v199
    %981 = vmatpush.msra.mxu0 %v195
    %982 = vmatpush.msra.mxu0 %v191
    %983 = vmatpush.msra.mxu0 %v187
    %984 = vmatpush.msra.mxu0 %v183
    %985 = vmatmul.f32.gmra.mxu0 %v848
    %v986 = vpop.f32.mrf.mxu0
    %v987 = vadd.f32 %v446, %v986
    %988 = vdwg.mxu0
    %989 = vmatpush.msra.mxu0 %v307
    %990 = vmatpush.msra.mxu0 %v303
    %991 = vmatpush.msra.mxu0 %v299
    %992 = vmatpush.msra.mxu0 %v295
    %993 = vmatpush.msra.mxu0 %v291
    %994 = vmatpush.msra.mxu0 %v287
    %995 = vmatpush.msra.mxu0 %v283
    %996 = vmatpush.msra.mxu0 %v279
    %997 = vmatpush.msra.mxu0 %v275
    %998 = vmatpush.msra.mxu0 %v271
    %999 = vmatpush.msra.mxu0 %v267
    %1000 = vmatpush.msra.mxu0 %v263
    %1001 = vmatpush.msra.mxu0 %v259
    %1002 = vmatpush.msra.mxu0 %v255
    %1003 = vmatpush.msra.mxu0 %v251
    %1004 = vmatpush.msra.mxu0 %v247
    %1005 = vmatmul.f32.gmra.mxu0 %v844
    %v1006 = vpop.f32.mrf.mxu0
    %v1007 = vadd.f32 %v987, %v1006
    %1008 = vdwg.mxu0
    %1009 = vmatpush.msra.mxu0 %v371
    %1010 = vmatpush.msra.mxu0 %v367
    %1011 = vmatpush.msra.mxu0 %v363
    %1012 = vmatpush.msra.mxu0 %v359
    %1013 = vmatpush.msra.mxu0 %v355
    %1014 = vmatpush.msra.mxu0 %v351
    %1015 = vmatpush.msra.mxu0 %v347
    %1016 = vmatpush.msra.mxu0 %v343
    %1017 = vmatpush.msra.mxu0 %v339
    %1018 = vmatpush.msra.mxu0 %v335
    %1019 = vmatpush.msra.mxu0 %v331
    %1020 = vmatpush.msra.mxu0 %v327
    %1021 = vmatpush.msra.mxu0 %v323
    %1022 = vmatpush.msra.mxu0 %v319
    %1023 = vmatpush.msra.mxu0 %v315
    %1024 = vmatpush.msra.mxu0 %v311
    %1025 = vmatmul.f32.gmra.mxu0 %v754
    %v1026 = vpop.f32.mrf.mxu0
    %v1027 = vadd.f32 %v1007, %v1026
    %1028 = vdwg.mxu0
    %1029 = vmatpush.msra.mxu0 %v244
    %1030 = vmatpush.msra.mxu0 %v240
    %1031 = vmatpush.msra.mxu0 %v236
    %1032 = vmatpush.msra.mxu0 %v232
    %1033 = vmatpush.msra.mxu0 %v228
    %1034 = vmatpush.msra.mxu0 %v224
    %1035 = vmatpush.msra.mxu0 %v220
    %1036 = vmatpush.msra.mxu0 %v216
    %1037 = vmatpush.msra.mxu0 %v212
    %1038 = vmatpush.msra.mxu0 %v208
    %1039 = vmatpush.msra.mxu0 %v204
    %1040 = vmatpush.msra.mxu0 %v200
    %1041 = vmatpush.msra.mxu0 %v196
    %1042 = vmatpush.msra.mxu0 %v192
    %1043 = vmatpush.msra.mxu0 %v188
    %1044 = vmatpush.msra.mxu0 %v184
    %1045 = vmatmul.f32.gmra.mxu0 %v848
    %v1046 = vpop.f32.mrf.mxu0
    %v1047 = vadd.f32 %v447, %v1046
    %1048 = vdwg.mxu0
    %1049 = vmatpush.msra.mxu0 %v308
    %1050 = vmatpush.msra.mxu0 %v304
    %1051 = vmatpush.msra.mxu0 %v300
    %1052 = vmatpush.msra.mxu0 %v296
    %1053 = vmatpush.msra.mxu0 %v292
    %1054 = vmatpush.msra.mxu0 %v288
    %1055 = vmatpush.msra.mxu0 %v284
    %1056 = vmatpush.msra.mxu0 %v280
    %1057 = vmatpush.msra.mxu0 %v276
    %1058 = vmatpush.msra.mxu0 %v272
    %1059 = vmatpush.msra.mxu0 %v268
    %1060 = vmatpush.msra.mxu0 %v264
    %1061 = vmatpush.msra.mxu0 %v260
    %1062 = vmatpush.msra.mxu0 %v256
    %1063 = vmatpush.msra.mxu0 %v252
    %1064 = vmatpush.msra.mxu0 %v248
    %1065 = vmatmul.f32.gmra.mxu0 %v844
    %v1066 = vpop.f32.mrf.mxu0
    %v1067 = vadd.f32 %v1047, %v1066
    %1068 = vdwg.mxu0
    %1069 = vmatpush.msra.mxu0 %v372
    %1070 = vmatpush.msra.mxu0 %v368
    %1071 = vmatpush.msra.mxu0 %v364
    %1072 = vmatpush.msra.mxu0 %v360
    %1073 = vmatpush.msra.mxu0 %v356
    %1074 = vmatpush.msra.mxu0 %v352
    %1075 = vmatpush.msra.mxu0 %v348
    %1076 = vmatpush.msra.mxu0 %v344
    %1077 = vmatpush.msra.mxu0 %v340
    %1078 = vmatpush.msra.mxu0 %v336
    %1079 = vmatpush.msra.mxu0 %v332
    %1080 = vmatpush.msra.mxu0 %v328
    %1081 = vmatpush.msra.mxu0 %v324
    %1082 = vmatpush.msra.mxu0 %v320
    %1083 = vmatpush.msra.mxu0 %v316
    %1084 = vmatpush.msra.mxu0 %v312
    %1085 = vmatmul.f32.gmra.mxu0 %v754
    %v1086 = vpop.f32.mrf.mxu0
    %v1087 = vadd.f32 %v1067, %v1086
    %1088 = vdwg.mxu0
    %v1089 = vxor.u32 %v907, 2147483648
    %v1090 = vmul.f32 %v1089, 1.442695
    %v1091 = vpow.pop %v1090
    %v1092 = vadd.f32 %v1091, 1.0
    %v1093 = vrcp.pop %v1092
    %v1094 = vmul.f32 %v1092, %v1093
    %v1095 = vsub.f32 1.0, %v1094
    %v1096 = vmul.f32 %v1093, %v1095
    %v1097 = vadd.f32 %v1093, %v1096
    %vm1098 = vweird.f32 %v1092
    %vm1099 = vweird.f32 %v1093
    %vm1100 = vmor %vm1098, %vm1099
    %v1101 = vsel %vm1100, %v1093, %v1097
    %v1102 = vand.u32 2147483647, %v1092
    %vm1103 = vcmp.eq.f32.partialorder %v1102, 8.507059e+37
    %v1104 = vand.u32 %v1092, 2147483648
    %v1105 = vor.u32 1.1754944e-38, %v1104
    %v1106 = vsel %vm1103, %v1105, %v1101
    %v1107 = vmul.f32 1.0, %v1106
    %v1108 = vxor.u32 %v967, 2147483648
    %v1109 = vmul.f32 %v1108, 1.442695
    %v1110 = vpow.pop %v1109
    %v1111 = vadd.f32 %v1110, 1.0
    %v1112 = vrcp.pop %v1111
    %v1113 = vmul.f32 %v1111, %v1112
    %v1114 = vsub.f32 1.0, %v1113
    %v1115 = vmul.f32 %v1112, %v1114
    %v1116 = vadd.f32 %v1112, %v1115
    %vm1117 = vweird.f32 %v1111
    %vm1118 = vweird.f32 %v1112
    %vm1119 = vmor %vm1117, %vm1118
    %v1120 = vsel %vm1119, %v1112, %v1116
    %v1121 = vand.u32 2147483647, %v1111
    %vm1122 = vcmp.eq.f32.partialorder %v1121, 8.507059e+37
    %v1123 = vand.u32 %v1111, 2147483648
    %v1124 = vor.u32 1.1754944e-38, %v1123
    %v1125 = vsel %vm1122, %v1124, %v1120
    %v1126 = vmul.f32 1.0, %v1125
    %v1127 = vtanh.pop %v1027
    %v1128 = vxor.u32 %v1087, 2147483648
    %v1129 = vmul.f32 %v1128, 1.442695
    %v1130 = vpow.pop %v1129
    %v1131 = vadd.f32 %v1130, 1.0
    %v1132 = vrcp.pop %v1131
    %v1133 = vmul.f32 %v1131, %v1132
    %v1134 = vsub.f32 1.0, %v1133
    %v1135 = vmul.f32 %v1132, %v1134
    %v1136 = vadd.f32 %v1132, %v1135
    %vm1137 = vweird.f32 %v1131
    %vm1138 = vweird.f32 %v1132
    %vm1139 = vmor %vm1137, %vm1138
    %v1140 = vsel %vm1139, %v1132, %v1136
    %v1141 = vand.u32 2147483647, %v1131
    %vm1142 = vcmp.eq.f32.partialorder %v1141, 8.507059e+37
    %v1143 = vand.u32 %v1131, 2147483648
    %v1144 = vor.u32 1.1754944e-38, %v1143
    %v1145 = vsel %vm1142, %v1144, %v1140
    %v1146 = vmul.f32 1.0, %v1145
    %v1147 = vmul.f32 %v1126, %v752
    %v1148 = vmul.f32 %v1107, %v1127
    %v1149 = vadd.f32 %v1147, %v1148
    %v1150 = vtanh.pop %v1149
    %v1151 = vmul.f32 %v1146, %v1150
    %1152 = vmatpush.msra.mxu0 %v389
    %1153 = vmatpush.msra.mxu0 %v388
    %1154 = vmatpush.msra.mxu0 %v387
    %1155 = vmatpush.msra.mxu0 %v386
    %1156 = vmatpush.msra.mxu0 %v385
    %1157 = vmatpush.msra.mxu0 %v384
    %1158 = vmatpush.msra.mxu0 %v383
    %1159 = vmatpush.msra.mxu0 %v382
    %1160 = vmatpush.msra.mxu0 %v381
    %1161 = vmatpush.msra.mxu0 %v380
    %1162 = vmatpush.msra.mxu0 %v379
    %1163 = vmatpush.msra.mxu0 %v378
    %1164 = vmatpush.msra.mxu0 %v377
    %1165 = vmatpush.msra.mxu0 %v376
    %1166 = vmatpush.msra.mxu0 %v375
    %1167 = vmatpush.msra.mxu0 %v374
    %1168 = vmatmul.f32.gmra.mxu0 %v1151
    %v1169 = vpop.f32.mrf.mxu0
    %v1170 = vadd.f32 %v406, %v1169
    %1171 = vdwg.mxu0
    %1172 = vmax.xlane.f32.xlu0 %v1170
    %v1173 = vpop.xlane.xlu0 %1172
    %v1174 = vsub.f32 %v1170, %v1173
    %v1175 = vmul.f32 %v1174, 1.442695
    %v1176 = vpow.pop %v1175
    %1177 = vadd.xlane.f32.xlu0 %v1176
    %v1178 = vpop.xlane.xlu0 %1177
    %v1179 = vrcp.pop %v1178
    %v1180 = vmul.f32 %v1176, %v1179
    %1181 = vmatpush.msra.mxu0 %v405
    %1182 = vmatpush.msra.mxu0 %v404
    %1183 = vmatpush.msra.mxu0 %v403
    %1184 = vmatpush.msra.mxu0 %v402
    %1185 = vmatpush.msra.mxu0 %v401
    %1186 = vmatpush.msra.mxu0 %v400
    %1187 = vmatpush.msra.mxu0 %v399
    %1188 = vmatpush.msra.mxu0 %v398
    %1189 = vmatpush.msra.mxu0 %v397
    %1190 = vmatpush.msra.mxu0 %v396
    %1191 = vmatpush.msra.mxu0 %v395
    %1192 = vmatpush.msra.mxu0 %v394
    %1193 = vmatpush.msra.mxu0 %v393
    %1194 = vmatpush.msra.mxu0 %v392
    %1195 = vmatpush.msra.mxu0 %v391
    %1196 = vmatpush.msra.mxu0 %v390
    %1197 = vmatmul.f32.gmra.mxu0 %v1180
    %v1198 = vpop.f32.mrf.mxu0
    %v1199 = vadd.f32 0.0, %v1198
    %1200 = vdwg.mxu0
    %1201 = vmatpush.msra.mxu0 %v422
    %1202 = vmatpush.msra.mxu0 %v421
    %1203 = vmatpush.msra.mxu0 %v420
    %1204 = vmatpush.msra.mxu0 %v419
    %1205 = vmatpush.msra.mxu0 %v418
    %1206 = vmatpush.msra.mxu0 %v417
    %1207 = vmatpush.msra.mxu0 %v416
    %1208 = vmatpush.msra.mxu0 %v415
    %1209 = vmatpush.msra.mxu0 %v414
    %1210 = vmatpush.msra.mxu0 %v413
    %1211 = vmatpush.msra.mxu0 %v412
    %1212 = vmatpush.msra.mxu0 %v411
    %1213 = vmatpush.msra.mxu0 %v410
    %1214 = vmatpush.msra.mxu0 %v409
    %1215 = vmatpush.msra.mxu0 %v408
    %1216 = vmatpush.msra.mxu0 %v407
    %1217 = vmatmul.f32.gmra.mxu0 %v1199
    %v1218 = vpop.f32.mrf.mxu0
    %v1219 = vadd.f32 0.0, %v1218
    %1220 = vdwg.mxu0
    %1221 = vmatpush.msra.mxu0 %v438
    %1222 = vmatpush.msra.mxu0 %v437
    %1223 = vmatpush.msra.mxu0 %v436
    %1224 = vmatpush.msra.mxu0 %v435
    %1225 = vmatpush.msra.mxu0 %v434
    %1226 = vmatpush.msra.mxu0 %v433
    %1227 = vmatpush.msra.mxu0 %v432
    %1228 = vmatpush.msra.mxu0 %v431
    %1229 = vmatpush.msra.mxu0 %v430
    %1230 = vmatpush.msra.mxu0 %v429
    %1231 = vmatpush.msra.mxu0 %v428
    %1232 = vmatpush.msra.mxu0 %v427
    %1233 = vmatpush.msra.mxu0 %v426
    %1234 = vmatpush.msra.mxu0 %v425
    %1235 = vmatpush.msra.mxu0 %v424
    %1236 = vmatpush.msra.mxu0 %v423
    %1237 = vmatmul.f32.gmra.mxu0 %v1151
    %v1238 = vpop.f32.mrf.mxu0
    %v1239 = vadd.f32 %v1219, %v1238
    %1240 = vdwg.mxu0
    %v1241 = vtanh.pop %v1239
    %s1242 = scalar_lea.vmem [#allocation20], 8
    %1243 = vst [vmem:[%s1242] sm:$0xff] %v1241
    %s1244 = scalar_lea.vmem [#allocation21], 8
    %1245 = vst [vmem:[%s1244] sm:$0xff] %v1180
    %s1246 = scalar_lea.vmem [#allocation5], 16
    %v1247 = vld [vmem:[%s1246] sm:$0xff]
    %1248 = vmatpush.msra.mxu0 %v241
    %1249 = vmatpush.msra.mxu0 %v237
    %1250 = vmatpush.msra.mxu0 %v233
    %1251 = vmatpush.msra.mxu0 %v229
    %1252 = vmatpush.msra.mxu0 %v225
    %1253 = vmatpush.msra.mxu0 %v221
    %1254 = vmatpush.msra.mxu0 %v217
    %1255 = vmatpush.msra.mxu0 %v213
    %1256 = vmatpush.msra.mxu0 %v209
    %1257 = vmatpush.msra.mxu0 %v205
    %1258 = vmatpush.msra.mxu0 %v201
    %1259 = vmatpush.msra.mxu0 %v197
    %1260 = vmatpush.msra.mxu0 %v193
    %1261 = vmatpush.msra.mxu0 %v189
    %1262 = vmatpush.msra.mxu0 %v185
    %1263 = vmatpush.msra.mxu0 %v181
    %1264 = vmatmul.f32.gmra.mxu0 %v1247
    %v1265 = vpop.f32.mrf.mxu0
    %v1266 = vadd.f32 %v444, %v1265
    %1267 = vdwg.mxu0
    %1268 = vmatpush.msra.mxu0 %v305
    %1269 = vmatpush.msra.mxu0 %v301
    %1270 = vmatpush.msra.mxu0 %v297
    %1271 = vmatpush.msra.mxu0 %v293
    %1272 = vmatpush.msra.mxu0 %v289
    %1273 = vmatpush.msra.mxu0 %v285
    %1274 = vmatpush.msra.mxu0 %v281
    %1275 = vmatpush.msra.mxu0 %v277
    %1276 = vmatpush.msra.mxu0 %v273
    %1277 = vmatpush.msra.mxu0 %v269
    %1278 = vmatpush.msra.mxu0 %v265
    %1279 = vmatpush.msra.mxu0 %v261
    %1280 = vmatpush.msra.mxu0 %v257
    %1281 = vmatpush.msra.mxu0 %v253
    %1282 = vmatpush.msra.mxu0 %v249
    %1283 = vmatpush.msra.mxu0 %v245
    %1284 = vmatmul.f32.gmra.mxu0 %v1241
    %v1285 = vpop.f32.mrf.mxu0
    %v1286 = vadd.f32 %v1266, %v1285
    %1287 = vdwg.mxu0
    %1288 = vmatpush.msra.mxu0 %v369
    %1289 = vmatpush.msra.mxu0 %v365
    %1290 = vmatpush.msra.mxu0 %v361
    %1291 = vmatpush.msra.mxu0 %v357
    %1292 = vmatpush.msra.mxu0 %v353
    %1293 = vmatpush.msra.mxu0 %v349
    %1294 = vmatpush.msra.mxu0 %v345
    %1295 = vmatpush.msra.mxu0 %v341
    %1296 = vmatpush.msra.mxu0 %v337
    %1297 = vmatpush.msra.mxu0 %v333
    %1298 = vmatpush.msra.mxu0 %v329
    %1299 = vmatpush.msra.mxu0 %v325
    %1300 = vmatpush.msra.mxu0 %v321
    %1301 = vmatpush.msra.mxu0 %v317
    %1302 = vmatpush.msra.mxu0 %v313
    %1303 = vmatpush.msra.mxu0 %v309
    %1304 = vmatmul.f32.gmra.mxu0 %v1151
    %v1305 = vpop.f32.mrf.mxu0
    %v1306 = vadd.f32 %v1286, %v1305
    %1307 = vdwg.mxu0
    %1308 = vmatpush.msra.mxu0 %v242
    %1309 = vmatpush.msra.mxu0 %v238
    %1310 = vmatpush.msra.mxu0 %v234
    %1311 = vmatpush.msra.mxu0 %v230
    %1312 = vmatpush.msra.mxu0 %v226
    %1313 = vmatpush.msra.mxu0 %v222
    %1314 = vmatpush.msra.mxu0 %v218
    %1315 = vmatpush.msra.mxu0 %v214
    %1316 = vmatpush.msra.mxu0 %v210
    %1317 = vmatpush.msra.mxu0 %v206
    %1318 = vmatpush.msra.mxu0 %v202
    %1319 = vmatpush.msra.mxu0 %v198
    %1320 = vmatpush.msra.mxu0 %v194
    %1321 = vmatpush.msra.mxu0 %v190
    %1322 = vmatpush.msra.mxu0 %v186
    %1323 = vmatpush.msra.mxu0 %v182
    %1324 = vmatmul.f32.gmra.mxu0 %v1247
    %v1325 = vpop.f32.mrf.mxu0
    %v1326 = vadd.f32 %v445, %v1325
    %1327 = vdwg.mxu0
    %1328 = vmatpush.msra.mxu0 %v306
    %1329 = vmatpush.msra.mxu0 %v302
    %1330 = vmatpush.msra.mxu0 %v298
    %1331 = vmatpush.msra.mxu0 %v294
    %1332 = vmatpush.msra.mxu0 %v290
    %1333 = vmatpush.msra.mxu0 %v286
    %1334 = vmatpush.msra.mxu0 %v282
    %1335 = vmatpush.msra.mxu0 %v278
    %1336 = vmatpush.msra.mxu0 %v274
    %1337 = vmatpush.msra.mxu0 %v270
    %1338 = vmatpush.msra.mxu0 %v266
    %1339 = vmatpush.msra.mxu0 %v262
    %1340 = vmatpush.msra.mxu0 %v258
    %1341 = vmatpush.msra.mxu0 %v254
    %1342 = vmatpush.msra.mxu0 %v250
    %1343 = vmatpush.msra.mxu0 %v246
    %1344 = vmatmul.f32.gmra.mxu0 %v1241
    %v1345 = vpop.f32.mrf.mxu0
    %v1346 = vadd.f32 %v1326, %v1345
    %1347 = vdwg.mxu0
    %1348 = vmatpush.msra.mxu0 %v370
    %1349 = vmatpush.msra.mxu0 %v366
    %1350 = vmatpush.msra.mxu0 %v362
    %1351 = vmatpush.msra.mxu0 %v358
    %1352 = vmatpush.msra.mxu0 %v354
    %1353 = vmatpush.msra.mxu0 %v350
    %1354 = vmatpush.msra.mxu0 %v346
    %1355 = vmatpush.msra.mxu0 %v342
    %1356 = vmatpush.msra.mxu0 %v338
    %1357 = vmatpush.msra.mxu0 %v334
    %1358 = vmatpush.msra.mxu0 %v330
    %1359 = vmatpush.msra.mxu0 %v326
    %1360 = vmatpush.msra.mxu0 %v322
    %1361 = vmatpush.msra.mxu0 %v318
    %1362 = vmatpush.msra.mxu0 %v314
    %1363 = vmatpush.msra.mxu0 %v310
    %1364 = vmatmul.f32.gmra.mxu0 %v1151
    %v1365 = vpop.f32.mrf.mxu0
    %v1366 = vadd.f32 %v1346, %v1365
    %1367 = vdwg.mxu0
    %1368 = vmatpush.msra.mxu0 %v243
    %1369 = vmatpush.msra.mxu0 %v239
    %1370 = vmatpush.msra.mxu0 %v235
    %1371 = vmatpush.msra.mxu0 %v231
    %1372 = vmatpush.msra.mxu0 %v227
    %1373 = vmatpush.msra.mxu0 %v223
    %1374 = vmatpush.msra.mxu0 %v219
    %1375 = vmatpush.msra.mxu0 %v215
    %1376 = vmatpush.msra.mxu0 %v211
    %1377 = vmatpush.msra.mxu0 %v207
    %1378 = vmatpush.msra.mxu0 %v203
    %1379 = vmatpush.msra.mxu0 %v199
    %1380 = vmatpush.msra.mxu0 %v195
    %1381 = vmatpush.msra.mxu0 %v191
    %1382 = vmatpush.msra.mxu0 %v187
    %1383 = vmatpush.msra.mxu0 %v183
    %1384 = vmatmul.f32.gmra.mxu0 %v1247
    %v1385 = vpop.f32.mrf.mxu0
    %v1386 = vadd.f32 %v446, %v1385
    %1387 = vdwg.mxu0
    %1388 = vmatpush.msra.mxu0 %v307
    %1389 = vmatpush.msra.mxu0 %v303
    %1390 = vmatpush.msra.mxu0 %v299
    %1391 = vmatpush.msra.mxu0 %v295
    %1392 = vmatpush.msra.mxu0 %v291
    %1393 = vmatpush.msra.mxu0 %v287
    %1394 = vmatpush.msra.mxu0 %v283
    %1395 = vmatpush.msra.mxu0 %v279
    %1396 = vmatpush.msra.mxu0 %v275
    %1397 = vmatpush.msra.mxu0 %v271
    %1398 = vmatpush.msra.mxu0 %v267
    %1399 = vmatpush.msra.mxu0 %v263
    %1400 = vmatpush.msra.mxu0 %v259
    %1401 = vmatpush.msra.mxu0 %v255
    %1402 = vmatpush.msra.mxu0 %v251
    %1403 = vmatpush.msra.mxu0 %v247
    %1404 = vmatmul.f32.gmra.mxu0 %v1241
    %v1405 = vpop.f32.mrf.mxu0
    %v1406 = vadd.f32 %v1386, %v1405
    %1407 = vdwg.mxu0
    %1408 = vmatpush.msra.mxu0 %v371
    %1409 = vmatpush.msra.mxu0 %v367
    %1410 = vmatpush.msra.mxu0 %v363
    %1411 = vmatpush.msra.mxu0 %v359
    %1412 = vmatpush.msra.mxu0 %v355
    %1413 = vmatpush.msra.mxu0 %v351
    %1414 = vmatpush.msra.mxu0 %v347
    %1415 = vmatpush.msra.mxu0 %v343
    %1416 = vmatpush.msra.mxu0 %v339
    %1417 = vmatpush.msra.mxu0 %v335
    %1418 = vmatpush.msra.mxu0 %v331
    %1419 = vmatpush.msra.mxu0 %v327
    %1420 = vmatpush.msra.mxu0 %v323
    %1421 = vmatpush.msra.mxu0 %v319
    %1422 = vmatpush.msra.mxu0 %v315
    %1423 = vmatpush.msra.mxu0 %v311
    %1424 = vmatmul.f32.gmra.mxu0 %v1151
    %v1425 = vpop.f32.mrf.mxu0
    %v1426 = vadd.f32 %v1406, %v1425
    %1427 = vdwg.mxu0
    %1428 = vmatpush.msra.mxu0 %v244
    %1429 = vmatpush.msra.mxu0 %v240
    %1430 = vmatpush.msra.mxu0 %v236
    %1431 = vmatpush.msra.mxu0 %v232
    %1432 = vmatpush.msra.mxu0 %v228
    %1433 = vmatpush.msra.mxu0 %v224
    %1434 = vmatpush.msra.mxu0 %v220
    %1435 = vmatpush.msra.mxu0 %v216
    %1436 = vmatpush.msra.mxu0 %v212
    %1437 = vmatpush.msra.mxu0 %v208
    %1438 = vmatpush.msra.mxu0 %v204
    %1439 = vmatpush.msra.mxu0 %v200
    %1440 = vmatpush.msra.mxu0 %v196
    %1441 = vmatpush.msra.mxu0 %v192
    %1442 = vmatpush.msra.mxu0 %v188
    %1443 = vmatpush.msra.mxu0 %v184
    %1444 = vmatmul.f32.gmra.mxu0 %v1247
    %v1445 = vpop.f32.mrf.mxu0
    %v1446 = vadd.f32 %v447, %v1445
    %1447 = vdwg.mxu0
    %1448 = vmatpush.msra.mxu0 %v308
    %1449 = vmatpush.msra.mxu0 %v304
    %1450 = vmatpush.msra.mxu0 %v300
    %1451 = vmatpush.msra.mxu0 %v296
    %1452 = vmatpush.msra.mxu0 %v292
    %1453 = vmatpush.msra.mxu0 %v288
    %1454 = vmatpush.msra.mxu0 %v284
    %1455 = vmatpush.msra.mxu0 %v280
    %1456 = vmatpush.msra.mxu0 %v276
    %1457 = vmatpush.msra.mxu0 %v272
    %1458 = vmatpush.msra.mxu0 %v268
    %1459 = vmatpush.msra.mxu0 %v264
    %1460 = vmatpush.msra.mxu0 %v260
    %1461 = vmatpush.msra.mxu0 %v256
    %1462 = vmatpush.msra.mxu0 %v252
    %1463 = vmatpush.msra.mxu0 %v248
    %1464 = vmatmul.f32.gmra.mxu0 %v1241
    %v1465 = vpop.f32.mrf.mxu0
    %v1466 = vadd.f32 %v1446, %v1465
    %1467 = vdwg.mxu0
    %1468 = vmatpush.msra.mxu0 %v372
    %1469 = vmatpush.msra.mxu0 %v368
    %1470 = vmatpush.msra.mxu0 %v364
    %1471 = vmatpush.msra.mxu0 %v360
    %1472 = vmatpush.msra.mxu0 %v356
    %1473 = vmatpush.msra.mxu0 %v352
    %1474 = vmatpush.msra.mxu0 %v348
    %1475 = vmatpush.msra.mxu0 %v344
    %1476 = vmatpush.msra.mxu0 %v340
    %1477 = vmatpush.msra.mxu0 %v336
    %1478 = vmatpush.msra.mxu0 %v332
    %1479 = vmatpush.msra.mxu0 %v328
    %1480 = vmatpush.msra.mxu0 %v324
    %1481 = vmatpush.msra.mxu0 %v320
    %1482 = vmatpush.msra.mxu0 %v316
    %1483 = vmatpush.msra.mxu0 %v312
    %1484 = vmatmul.f32.gmra.mxu0 %v1151
    %v1485 = vpop.f32.mrf.mxu0
    %v1486 = vadd.f32 %v1466, %v1485
    %1487 = vdwg.mxu0
    %v1488 = vxor.u32 %v1306, 2147483648
    %v1489 = vmul.f32 %v1488, 1.442695
    %v1490 = vpow.pop %v1489
    %v1491 = vadd.f32 %v1490, 1.0
    %v1492 = vrcp.pop %v1491
    %v1493 = vmul.f32 %v1491, %v1492
    %v1494 = vsub.f32 1.0, %v1493
    %v1495 = vmul.f32 %v1492, %v1494
    %v1496 = vadd.f32 %v1492, %v1495
    %vm1497 = vweird.f32 %v1491
    %vm1498 = vweird.f32 %v1492
    %vm1499 = vmor %vm1497, %vm1498
    %v1500 = vsel %vm1499, %v1492, %v1496
    %v1501 = vand.u32 2147483647, %v1491
    %vm1502 = vcmp.eq.f32.partialorder %v1501, 8.507059e+37
    %v1503 = vand.u32 %v1491, 2147483648
    %v1504 = vor.u32 1.1754944e-38, %v1503
    %v1505 = vsel %vm1502, %v1504, %v1500
    %v1506 = vmul.f32 1.0, %v1505
    %v1507 = vxor.u32 %v1366, 2147483648
    %v1508 = vmul.f32 %v1507, 1.442695
    %v1509 = vpow.pop %v1508
    %v1510 = vadd.f32 %v1509, 1.0
    %v1511 = vrcp.pop %v1510
    %v1512 = vmul.f32 %v1510, %v1511
    %v1513 = vsub.f32 1.0, %v1512
    %v1514 = vmul.f32 %v1511, %v1513
    %v1515 = vadd.f32 %v1511, %v1514
    %vm1516 = vweird.f32 %v1510
    %vm1517 = vweird.f32 %v1511
    %vm1518 = vmor %vm1516, %vm1517
    %v1519 = vsel %vm1518, %v1511, %v1515
    %v1520 = vand.u32 2147483647, %v1510
    %vm1521 = vcmp.eq.f32.partialorder %v1520, 8.507059e+37
    %v1522 = vand.u32 %v1510, 2147483648
    %v1523 = vor.u32 1.1754944e-38, %v1522
    %v1524 = vsel %vm1521, %v1523, %v1519
    %v1525 = vmul.f32 1.0, %v1524
    %v1526 = vtanh.pop %v1426
    %v1527 = vxor.u32 %v1486, 2147483648
    %v1528 = vmul.f32 %v1527, 1.442695
    %v1529 = vpow.pop %v1528
    %v1530 = vadd.f32 %v1529, 1.0
    %v1531 = vrcp.pop %v1530
    %v1532 = vmul.f32 %v1530, %v1531
    %v1533 = vsub.f32 1.0, %v1532
    %v1534 = vmul.f32 %v1531, %v1533
    %v1535 = vadd.f32 %v1531, %v1534
    %vm1536 = vweird.f32 %v1530
    %vm1537 = vweird.f32 %v1531
    %vm1538 = vmor %vm1536, %vm1537
    %v1539 = vsel %vm1538, %v1531, %v1535
    %v1540 = vand.u32 2147483647, %v1530
    %vm1541 = vcmp.eq.f32.partialorder %v1540, 8.507059e+37
    %v1542 = vand.u32 %v1530, 2147483648
    %v1543 = vor.u32 1.1754944e-38, %v1542
    %v1544 = vsel %vm1541, %v1543, %v1539
    %v1545 = vmul.f32 1.0, %v1544
    %v1546 = vmul.f32 %v1525, %v1149
    %v1547 = vmul.f32 %v1506, %v1526
    %v1548 = vadd.f32 %v1546, %v1547
    %v1549 = vtanh.pop %v1548
    %v1550 = vmul.f32 %v1545, %v1549
    %1551 = vmatpush.msra.mxu0 %v389
    %1552 = vmatpush.msra.mxu0 %v388
    %1553 = vmatpush.msra.mxu0 %v387
    %1554 = vmatpush.msra.mxu0 %v386
    %1555 = vmatpush.msra.mxu0 %v385
    %1556 = vmatpush.msra.mxu0 %v384
    %1557 = vmatpush.msra.mxu0 %v383
    %1558 = vmatpush.msra.mxu0 %v382
    %1559 = vmatpush.msra.mxu0 %v381
    %1560 = vmatpush.msra.mxu0 %v380
    %1561 = vmatpush.msra.mxu0 %v379
    %1562 = vmatpush.msra.mxu0 %v378
    %1563 = vmatpush.msra.mxu0 %v377
    %1564 = vmatpush.msra.mxu0 %v376
    %1565 = vmatpush.msra.mxu0 %v375
    %1566 = vmatpush.msra.mxu0 %v374
    %1567 = vmatmul.f32.gmra.mxu0 %v1550
    %v1568 = vpop.f32.mrf.mxu0
    %v1569 = vadd.f32 %v406, %v1568
    %1570 = vdwg.mxu0
    %1571 = vmax.xlane.f32.xlu0 %v1569
    %v1572 = vpop.xlane.xlu0 %1571
    %v1573 = vsub.f32 %v1569, %v1572
    %v1574 = vmul.f32 %v1573, 1.442695
    %v1575 = vpow.pop %v1574
    %1576 = vadd.xlane.f32.xlu0 %v1575
    %v1577 = vpop.xlane.xlu0 %1576
    %v1578 = vrcp.pop %v1577
    %v1579 = vmul.f32 %v1575, %v1578
    %1580 = vmatpush.msra.mxu0 %v405
    %1581 = vmatpush.msra.mxu0 %v404
    %1582 = vmatpush.msra.mxu0 %v403
    %1583 = vmatpush.msra.mxu0 %v402
    %1584 = vmatpush.msra.mxu0 %v401
    %1585 = vmatpush.msra.mxu0 %v400
    %1586 = vmatpush.msra.mxu0 %v399
    %1587 = vmatpush.msra.mxu0 %v398
    %1588 = vmatpush.msra.mxu0 %v397
    %1589 = vmatpush.msra.mxu0 %v396
    %1590 = vmatpush.msra.mxu0 %v395
    %1591 = vmatpush.msra.mxu0 %v394
    %1592 = vmatpush.msra.mxu0 %v393
    %1593 = vmatpush.msra.mxu0 %v392
    %1594 = vmatpush.msra.mxu0 %v391
    %1595 = vmatpush.msra.mxu0 %v390
    %1596 = vmatmul.f32.gmra.mxu0 %v1579
    %v1597 = vpop.f32.mrf.mxu0
    %v1598 = vadd.f32 0.0, %v1597
    %1599 = vdwg.mxu0
    %1600 = vmatpush.msra.mxu0 %v422
    %1601 = vmatpush.msra.mxu0 %v421
    %1602 = vmatpush.msra.mxu0 %v420
    %1603 = vmatpush.msra.mxu0 %v419
    %1604 = vmatpush.msra.mxu0 %v418
    %1605 = vmatpush.msra.mxu0 %v417
    %1606 = vmatpush.msra.mxu0 %v416
    %1607 = vmatpush.msra.mxu0 %v415
    %1608 = vmatpush.msra.mxu0 %v414
    %1609 = vmatpush.msra.mxu0 %v413
    %1610 = vmatpush.msra.mxu0 %v412
    %1611 = vmatpush.msra.mxu0 %v411
    %1612 = vmatpush.msra.mxu0 %v410
    %1613 = vmatpush.msra.mxu0 %v409
    %1614 = vmatpush.msra.mxu0 %v408
    %1615 = vmatpush.msra.mxu0 %v407
    %1616 = vmatmul.f32.gmra.mxu0 %v1598
    %v1617 = vpop.f32.mrf.mxu0
    %v1618 = vadd.f32 0.0, %v1617
    %1619 = vdwg.mxu0
    %1620 = vmatpush.msra.mxu0 %v438
    %1621 = vmatpush.msra.mxu0 %v437
    %1622 = vmatpush.msra.mxu0 %v436
    %1623 = vmatpush.msra.mxu0 %v435
    %1624 = vmatpush.msra.mxu0 %v434
    %1625 = vmatpush.msra.mxu0 %v433
    %1626 = vmatpush.msra.mxu0 %v432
    %1627 = vmatpush.msra.mxu0 %v431
    %1628 = vmatpush.msra.mxu0 %v430
    %1629 = vmatpush.msra.mxu0 %v429
    %1630 = vmatpush.msra.mxu0 %v428
    %1631 = vmatpush.msra.mxu0 %v427
    %1632 = vmatpush.msra.mxu0 %v426
    %1633 = vmatpush.msra.mxu0 %v425
    %1634 = vmatpush.msra.mxu0 %v424
    %1635 = vmatpush.msra.mxu0 %v423
    %1636 = vmatmul.f32.gmra.mxu0 %v1550
    %v1637 = vpop.f32.mrf.mxu0
    %v1638 = vadd.f32 %v1618, %v1637
    %1639 = vdwg.mxu0
    %v1640 = vtanh.pop %v1638
    %s1641 = scalar_lea.vmem [#allocation20], 16
    %1642 = vst [vmem:[%s1641] sm:$0xff] %v1640
    %s1643 = scalar_lea.vmem [#allocation21], 16
    %1644 = vst [vmem:[%s1643] sm:$0xff] %v1579
    %s1645 = scalar_lea.vmem [#allocation5], 24
    %v1646 = vld [vmem:[%s1645] sm:$0xff]
    %1647 = vmatpush.msra.mxu0 %v241
    %1648 = vmatpush.msra.mxu0 %v237
    %1649 = vmatpush.msra.mxu0 %v233
    %1650 = vmatpush.msra.mxu0 %v229
    %1651 = vmatpush.msra.mxu0 %v225
    %1652 = vmatpush.msra.mxu0 %v221
    %1653 = vmatpush.msra.mxu0 %v217
    %1654 = vmatpush.msra.mxu0 %v213
    %1655 = vmatpush.msra.mxu0 %v209
    %1656 = vmatpush.msra.mxu0 %v205
    %1657 = vmatpush.msra.mxu0 %v201
    %1658 = vmatpush.msra.mxu0 %v197
    %1659 = vmatpush.msra.mxu0 %v193
    %1660 = vmatpush.msra.mxu0 %v189
    %1661 = vmatpush.msra.mxu0 %v185
    %1662 = vmatpush.msra.mxu0 %v181
    %1663 = vmatmul.f32.gmra.mxu0 %v1646
    %v1664 = vpop.f32.mrf.mxu0
    %v1665 = vadd.f32 %v444, %v1664
    %1666 = vdwg.mxu0
    %1667 = vmatpush.msra.mxu0 %v305
    %1668 = vmatpush.msra.mxu0 %v301
    %1669 = vmatpush.msra.mxu0 %v297
    %1670 = vmatpush.msra.mxu0 %v293
    %1671 = vmatpush.msra.mxu0 %v289
    %1672 = vmatpush.msra.mxu0 %v285
    %1673 = vmatpush.msra.mxu0 %v281
    %1674 = vmatpush.msra.mxu0 %v277
    %1675 = vmatpush.msra.mxu0 %v273
    %1676 = vmatpush.msra.mxu0 %v269
    %1677 = vmatpush.msra.mxu0 %v265
    %1678 = vmatpush.msra.mxu0 %v261
    %1679 = vmatpush.msra.mxu0 %v257
    %1680 = vmatpush.msra.mxu0 %v253
    %1681 = vmatpush.msra.mxu0 %v249
    %1682 = vmatpush.msra.mxu0 %v245
    %1683 = vmatmul.f32.gmra.mxu0 %v1640
    %v1684 = vpop.f32.mrf.mxu0
    %v1685 = vadd.f32 %v1665, %v1684
    %1686 = vdwg.mxu0
    %1687 = vmatpush.msra.mxu0 %v369
    %1688 = vmatpush.msra.mxu0 %v365
    %1689 = vmatpush.msra.mxu0 %v361
    %1690 = vmatpush.msra.mxu0 %v357
    %1691 = vmatpush.msra.mxu0 %v353
    %1692 = vmatpush.msra.mxu0 %v349
    %1693 = vmatpush.msra.mxu0 %v345
    %1694 = vmatpush.msra.mxu0 %v341
    %1695 = vmatpush.msra.mxu0 %v337
    %1696 = vmatpush.msra.mxu0 %v333
    %1697 = vmatpush.msra.mxu0 %v329
    %1698 = vmatpush.msra.mxu0 %v325
    %1699 = vmatpush.msra.mxu0 %v321
    %1700 = vmatpush.msra.mxu0 %v317
    %1701 = vmatpush.msra.mxu0 %v313
    %1702 = vmatpush.msra.mxu0 %v309
    %1703 = vmatmul.f32.gmra.mxu0 %v1550
    %v1704 = vpop.f32.mrf.mxu0
    %v1705 = vadd.f32 %v1685, %v1704
    %1706 = vdwg.mxu0
    %1707 = vmatpush.msra.mxu0 %v242
    %1708 = vmatpush.msra.mxu0 %v238
    %1709 = vmatpush.msra.mxu0 %v234
    %1710 = vmatpush.msra.mxu0 %v230
    %1711 = vmatpush.msra.mxu0 %v226
    %1712 = vmatpush.msra.mxu0 %v222
    %1713 = vmatpush.msra.mxu0 %v218
    %1714 = vmatpush.msra.mxu0 %v214
    %1715 = vmatpush.msra.mxu0 %v210
    %1716 = vmatpush.msra.mxu0 %v206
    %1717 = vmatpush.msra.mxu0 %v202
    %1718 = vmatpush.msra.mxu0 %v198
    %1719 = vmatpush.msra.mxu0 %v194
    %1720 = vmatpush.msra.mxu0 %v190
    %1721 = vmatpush.msra.mxu0 %v186
    %1722 = vmatpush.msra.mxu0 %v182
    %1723 = vmatmul.f32.gmra.mxu0 %v1646
    %v1724 = vpop.f32.mrf.mxu0
    %v1725 = vadd.f32 %v445, %v1724
    %1726 = vdwg.mxu0
    %1727 = vmatpush.msra.mxu0 %v306
    %1728 = vmatpush.msra.mxu0 %v302
    %1729 = vmatpush.msra.mxu0 %v298
    %1730 = vmatpush.msra.mxu0 %v294
    %1731 = vmatpush.msra.mxu0 %v290
    %1732 = vmatpush.msra.mxu0 %v286
    %1733 = vmatpush.msra.mxu0 %v282
    %1734 = vmatpush.msra.mxu0 %v278
    %1735 = vmatpush.msra.mxu0 %v274
    %1736 = vmatpush.msra.mxu0 %v270
    %1737 = vmatpush.msra.mxu0 %v266
    %1738 = vmatpush.msra.mxu0 %v262
    %1739 = vmatpush.msra.mxu0 %v258
    %1740 = vmatpush.msra.mxu0 %v254
    %1741 = vmatpush.msra.mxu0 %v250
    %1742 = vmatpush.msra.mxu0 %v246
    %1743 = vmatmul.f32.gmra.mxu0 %v1640
    %v1744 = vpop.f32.mrf.mxu0
    %v1745 = vadd.f32 %v1725, %v1744
    %1746 = vdwg.mxu0
    %1747 = vmatpush.msra.mxu0 %v370
    %1748 = vmatpush.msra.mxu0 %v366
    %1749 = vmatpush.msra.mxu0 %v362
    %1750 = vmatpush.msra.mxu0 %v358
    %1751 = vmatpush.msra.mxu0 %v354
    %1752 = vmatpush.msra.mxu0 %v350
    %1753 = vmatpush.msra.mxu0 %v346
    %1754 = vmatpush.msra.mxu0 %v342
    %1755 = vmatpush.msra.mxu0 %v338
    %1756 = vmatpush.msra.mxu0 %v334
    %1757 = vmatpush.msra.mxu0 %v330
    %1758 = vmatpush.msra.mxu0 %v326
    %1759 = vmatpush.msra.mxu0 %v322
    %1760 = vmatpush.msra.mxu0 %v318
    %1761 = vmatpush.msra.mxu0 %v314
    %1762 = vmatpush.msra.mxu0 %v310
    %1763 = vmatmul.f32.gmra.mxu0 %v1550
    %v1764 = vpop.f32.mrf.mxu0
    %v1765 = vadd.f32 %v1745, %v1764
    %1766 = vdwg.mxu0
    %1767 = vmatpush.msra.mxu0 %v243
    %1768 = vmatpush.msra.mxu0 %v239
    %1769 = vmatpush.msra.mxu0 %v235
    %1770 = vmatpush.msra.mxu0 %v231
    %1771 = vmatpush.msra.mxu0 %v227
    %1772 = vmatpush.msra.mxu0 %v223
    %1773 = vmatpush.msra.mxu0 %v219
    %1774 = vmatpush.msra.mxu0 %v215
    %1775 = vmatpush.msra.mxu0 %v211
    %1776 = vmatpush.msra.mxu0 %v207
    %1777 = vmatpush.msra.mxu0 %v203
    %1778 = vmatpush.msra.mxu0 %v199
    %1779 = vmatpush.msra.mxu0 %v195
    %1780 = vmatpush.msra.mxu0 %v191
    %1781 = vmatpush.msra.mxu0 %v187
    %1782 = vmatpush.msra.mxu0 %v183
    %1783 = vmatmul.f32.gmra.mxu0 %v1646
    %v1784 = vpop.f32.mrf.mxu0
    %v1785 = vadd.f32 %v446, %v1784
    %1786 = vdwg.mxu0
    %1787 = vmatpush.msra.mxu0 %v307
    %1788 = vmatpush.msra.mxu0 %v303
    %1789 = vmatpush.msra.mxu0 %v299
    %1790 = vmatpush.msra.mxu0 %v295
    %1791 = vmatpush.msra.mxu0 %v291
    %1792 = vmatpush.msra.mxu0 %v287
    %1793 = vmatpush.msra.mxu0 %v283
    %1794 = vmatpush.msra.mxu0 %v279
    %1795 = vmatpush.msra.mxu0 %v275
    %1796 = vmatpush.msra.mxu0 %v271
    %1797 = vmatpush.msra.mxu0 %v267
    %1798 = vmatpush.msra.mxu0 %v263
    %1799 = vmatpush.msra.mxu0 %v259
    %1800 = vmatpush.msra.mxu0 %v255
    %1801 = vmatpush.msra.mxu0 %v251
    %1802 = vmatpush.msra.mxu0 %v247
    %1803 = vmatmul.f32.gmra.mxu0 %v1640
    %v1804 = vpop.f32.mrf.mxu0
    %v1805 = vadd.f32 %v1785, %v1804
    %1806 = vdwg.mxu0
    %1807 = vmatpush.msra.mxu0 %v371
    %1808 = vmatpush.msra.mxu0 %v367
    %1809 = vmatpush.msra.mxu0 %v363
    %1810 = vmatpush.msra.mxu0 %v359
    %1811 = vmatpush.msra.mxu0 %v355
    %1812 = vmatpush.msra.mxu0 %v351
    %1813 = vmatpush.msra.mxu0 %v347
    %1814 = vmatpush.msra.mxu0 %v343
    %1815 = vmatpush.msra.mxu0 %v339
    %1816 = vmatpush.msra.mxu0 %v335
    %1817 = vmatpush.msra.mxu0 %v331
    %1818 = vmatpush.msra.mxu0 %v327
    %1819 = vmatpush.msra.mxu0 %v323
    %1820 = vmatpush.msra.mxu0 %v319
    %1821 = vmatpush.msra.mxu0 %v315
    %1822 = vmatpush.msra.mxu0 %v311
    %1823 = vmatmul.f32.gmra.mxu0 %v1550
    %v1824 = vpop.f32.mrf.mxu0
    %v1825 = vadd.f32 %v1805, %v1824
    %1826 = vdwg.mxu0
    %1827 = vmatpush.msra.mxu0 %v244
    %1828 = vmatpush.msra.mxu0 %v240
    %1829 = vmatpush.msra.mxu0 %v236
    %1830 = vmatpush.msra.mxu0 %v232
    %1831 = vmatpush.msra.mxu0 %v228
    %1832 = vmatpush.msra.mxu0 %v224
    %1833 = vmatpush.msra.mxu0 %v220
    %1834 = vmatpush.msra.mxu0 %v216
    %1835 = vmatpush.msra.mxu0 %v212
    %1836 = vmatpush.msra.mxu0 %v208
    %1837 = vmatpush.msra.mxu0 %v204
    %1838 = vmatpush.msra.mxu0 %v200
    %1839 = vmatpush.msra.mxu0 %v196
    %1840 = vmatpush.msra.mxu0 %v192
    %1841 = vmatpush.msra.mxu0 %v188
    %1842 = vmatpush.msra.mxu0 %v184
    %1843 = vmatmul.f32.gmra.mxu0 %v1646
    %v1844 = vpop.f32.mrf.mxu0
    %v1845 = vadd.f32 %v447, %v1844
    %1846 = vdwg.mxu0
    %1847 = vmatpush.msra.mxu0 %v308
    %1848 = vmatpush.msra.mxu0 %v304
    %1849 = vmatpush.msra.mxu0 %v300
    %1850 = vmatpush.msra.mxu0 %v296
    %1851 = vmatpush.msra.mxu0 %v292
    %1852 = vmatpush.msra.mxu0 %v288
    %1853 = vmatpush.msra.mxu0 %v284
    %1854 = vmatpush.msra.mxu0 %v280
    %1855 = vmatpush.msra.mxu0 %v276
    %1856 = vmatpush.msra.mxu0 %v272
    %1857 = vmatpush.msra.mxu0 %v268
    %1858 = vmatpush.msra.mxu0 %v264
    %1859 = vmatpush.msra.mxu0 %v260
    %1860 = vmatpush.msra.mxu0 %v256
    %1861 = vmatpush.msra.mxu0 %v252
    %1862 = vmatpush.msra.mxu0 %v248
    %1863 = vmatmul.f32.gmra.mxu0 %v1640
    %v1864 = vpop.f32.mrf.mxu0
    %v1865 = vadd.f32 %v1845, %v1864
    %1866 = vdwg.mxu0
    %1867 = vmatpush.msra.mxu0 %v372
    %1868 = vmatpush.msra.mxu0 %v368
    %1869 = vmatpush.msra.mxu0 %v364
    %1870 = vmatpush.msra.mxu0 %v360
    %1871 = vmatpush.msra.mxu0 %v356
    %1872 = vmatpush.msra.mxu0 %v352
    %1873 = vmatpush.msra.mxu0 %v348
    %1874 = vmatpush.msra.mxu0 %v344
    %1875 = vmatpush.msra.mxu0 %v340
    %1876 = vmatpush.msra.mxu0 %v336
    %1877 = vmatpush.msra.mxu0 %v332
    %1878 = vmatpush.msra.mxu0 %v328
    %1879 = vmatpush.msra.mxu0 %v324
    %1880 = vmatpush.msra.mxu0 %v320
    %1881 = vmatpush.msra.mxu0 %v316
    %1882 = vmatpush.msra.mxu0 %v312
    %1883 = vmatmul.f32.gmra.mxu0 %v1550
    %v1884 = vpop.f32.mrf.mxu0
    %v1885 = vadd.f32 %v1865, %v1884
    %1886 = vdwg.mxu0
    %v1887 = vxor.u32 %v1705, 2147483648
    %v1888 = vmul.f32 %v1887, 1.442695
    %v1889 = vpow.pop %v1888
    %v1890 = vadd.f32 %v1889, 1.0
    %v1891 = vrcp.pop %v1890
    %v1892 = vmul.f32 %v1890, %v1891
    %v1893 = vsub.f32 1.0, %v1892
    %v1894 = vmul.f32 %v1891, %v1893
    %v1895 = vadd.f32 %v1891, %v1894
    %vm1896 = vweird.f32 %v1890
    %vm1897 = vweird.f32 %v1891
    %vm1898 = vmor %vm1896, %vm1897
    %v1899 = vsel %vm1898, %v1891, %v1895
    %v1900 = vand.u32 2147483647, %v1890
    %vm1901 = vcmp.eq.f32.partialorder %v1900, 8.507059e+37
    %v1902 = vand.u32 %v1890, 2147483648
    %v1903 = vor.u32 1.1754944e-38, %v1902
    %v1904 = vsel %vm1901, %v1903, %v1899
    %v1905 = vmul.f32 1.0, %v1904
    %v1906 = vxor.u32 %v1765, 2147483648
    %v1907 = vmul.f32 %v1906, 1.442695
    %v1908 = vpow.pop %v1907
    %v1909 = vadd.f32 %v1908, 1.0
    %v1910 = vrcp.pop %v1909
    %v1911 = vmul.f32 %v1909, %v1910
    %v1912 = vsub.f32 1.0, %v1911
    %v1913 = vmul.f32 %v1910, %v1912
    %v1914 = vadd.f32 %v1910, %v1913
    %vm1915 = vweird.f32 %v1909
    %vm1916 = vweird.f32 %v1910
    %vm1917 = vmor %vm1915, %vm1916
    %v1918 = vsel %vm1917, %v1910, %v1914
    %v1919 = vand.u32 2147483647, %v1909
    %vm1920 = vcmp.eq.f32.partialorder %v1919, 8.507059e+37
    %v1921 = vand.u32 %v1909, 2147483648
    %v1922 = vor.u32 1.1754944e-38, %v1921
    %v1923 = vsel %vm1920, %v1922, %v1918
    %v1924 = vmul.f32 1.0, %v1923
    %v1925 = vtanh.pop %v1825
    %v1926 = vxor.u32 %v1885, 2147483648
    %v1927 = vmul.f32 %v1926, 1.442695
    %v1928 = vpow.pop %v1927
    %v1929 = vadd.f32 %v1928, 1.0
    %v1930 = vrcp.pop %v1929
    %v1931 = vmul.f32 %v1929, %v1930
    %v1932 = vsub.f32 1.0, %v1931
    %v1933 = vmul.f32 %v1930, %v1932
    %v1934 = vadd.f32 %v1930, %v1933
    %vm1935 = vweird.f32 %v1929
    %vm1936 = vweird.f32 %v1930
    %vm1937 = vmor %vm1935, %vm1936
    %v1938 = vsel %vm1937, %v1930, %v1934
    %v1939 = vand.u32 2147483647, %v1929
    %vm1940 = vcmp.eq.f32.partialorder %v1939, 8.507059e+37
    %v1941 = vand.u32 %v1929, 2147483648
    %v1942 = vor.u32 1.1754944e-38, %v1941
    %v1943 = vsel %vm1940, %v1942, %v1938
    %v1944 = vmul.f32 1.0, %v1943
    %v1945 = vmul.f32 %v1924, %v1548
    %v1946 = vmul.f32 %v1905, %v1925
    %v1947 = vadd.f32 %v1945, %v1946
    %v1948 = vtanh.pop %v1947
    %v1949 = vmul.f32 %v1944, %v1948
    %1950 = vmatpush.msra.mxu0 %v389
    %1951 = vmatpush.msra.mxu0 %v388
    %1952 = vmatpush.msra.mxu0 %v387
    %1953 = vmatpush.msra.mxu0 %v386
    %1954 = vmatpush.msra.mxu0 %v385
    %1955 = vmatpush.msra.mxu0 %v384
    %1956 = vmatpush.msra.mxu0 %v383
    %1957 = vmatpush.msra.mxu0 %v382
    %1958 = vmatpush.msra.mxu0 %v381
    %1959 = vmatpush.msra.mxu0 %v380
    %1960 = vmatpush.msra.mxu0 %v379
    %1961 = vmatpush.msra.mxu0 %v378
    %1962 = vmatpush.msra.mxu0 %v377
    %1963 = vmatpush.msra.mxu0 %v376
    %1964 = vmatpush.msra.mxu0 %v375
    %1965 = vmatpush.msra.mxu0 %v374
    %1966 = vmatmul.f32.gmra.mxu0 %v1949
    %v1967 = vpop.f32.mrf.mxu0
    %v1968 = vadd.f32 %v406, %v1967
    %1969 = vdwg.mxu0
    %1970 = vmax.xlane.f32.xlu0 %v1968
    %v1971 = vpop.xlane.xlu0 %1970
    %v1972 = vsub.f32 %v1968, %v1971
    %v1973 = vmul.f32 %v1972, 1.442695
    %v1974 = vpow.pop %v1973
    %1975 = vadd.xlane.f32.xlu0 %v1974
    %v1976 = vpop.xlane.xlu0 %1975
    %v1977 = vrcp.pop %v1976
    %v1978 = vmul.f32 %v1974, %v1977
    %1979 = vmatpush.msra.mxu0 %v405
    %1980 = vmatpush.msra.mxu0 %v404
    %1981 = vmatpush.msra.mxu0 %v403
    %1982 = vmatpush.msra.mxu0 %v402
    %1983 = vmatpush.msra.mxu0 %v401
    %1984 = vmatpush.msra.mxu0 %v400
    %1985 = vmatpush.msra.mxu0 %v399
    %1986 = vmatpush.msra.mxu0 %v398
    %1987 = vmatpush.msra.mxu0 %v397
    %1988 = vmatpush.msra.mxu0 %v396
    %1989 = vmatpush.msra.mxu0 %v395
    %1990 = vmatpush.msra.mxu0 %v394
    %1991 = vmatpush.msra.mxu0 %v393
    %1992 = vmatpush.msra.mxu0 %v392
    %1993 = vmatpush.msra.mxu0 %v391
    %1994 = vmatpush.msra.mxu0 %v390
    %1995 = vmatmul.f32.gmra.mxu0 %v1978
    %v1996 = vpop.f32.mrf.mxu0
    %v1997 = vadd.f32 0.0, %v1996
    %1998 = vdwg.mxu0
    %1999 = vmatpush.msra.mxu0 %v422
    %2000 = vmatpush.msra.mxu0 %v421
    %2001 = vmatpush.msra.mxu0 %v420
    %2002 = vmatpush.msra.mxu0 %v419
    %2003 = vmatpush.msra.mxu0 %v418
    %2004 = vmatpush.msra.mxu0 %v417
    %2005 = vmatpush.msra.mxu0 %v416
    %2006 = vmatpush.msra.mxu0 %v415
    %2007 = vmatpush.msra.mxu0 %v414
    %2008 = vmatpush.msra.mxu0 %v413
    %2009 = vmatpush.msra.mxu0 %v412
    %2010 = vmatpush.msra.mxu0 %v411
    %2011 = vmatpush.msra.mxu0 %v410
    %2012 = vmatpush.msra.mxu0 %v409
    %2013 = vmatpush.msra.mxu0 %v408
    %2014 = vmatpush.msra.mxu0 %v407
    %2015 = vmatmul.f32.gmra.mxu0 %v1997
    %v2016 = vpop.f32.mrf.mxu0
    %v2017 = vadd.f32 0.0, %v2016
    %2018 = vdwg.mxu0
    %2019 = vmatpush.msra.mxu0 %v438
    %2020 = vmatpush.msra.mxu0 %v437
    %2021 = vmatpush.msra.mxu0 %v436
    %2022 = vmatpush.msra.mxu0 %v435
    %2023 = vmatpush.msra.mxu0 %v434
    %2024 = vmatpush.msra.mxu0 %v433
    %2025 = vmatpush.msra.mxu0 %v432
    %2026 = vmatpush.msra.mxu0 %v431
    %2027 = vmatpush.msra.mxu0 %v430
    %2028 = vmatpush.msra.mxu0 %v429
    %2029 = vmatpush.msra.mxu0 %v428
    %2030 = vmatpush.msra.mxu0 %v427
    %2031 = vmatpush.msra.mxu0 %v426
    %2032 = vmatpush.msra.mxu0 %v425
    %2033 = vmatpush.msra.mxu0 %v424
    %2034 = vmatpush.msra.mxu0 %v423
    %2035 = vmatmul.f32.gmra.mxu0 %v1949
    %v2036 = vpop.f32.mrf.mxu0
    %v2037 = vadd.f32 %v2017, %v2036
    %2038 = vdwg.mxu0
    %v2039 = vtanh.pop %v2037
    %s2040 = scalar_lea.vmem [#allocation20], 24
    %2041 = vst [vmem:[%s2040] sm:$0xff] %v2039
    %s2042 = scalar_lea.vmem [#allocation21], 24
    %2043 = vst [vmem:[%s2042] sm:$0xff] %v1978
    %s2044 = scalar_lea.vmem [#allocation5], 32
    %v2045 = vld [vmem:[%s2044] sm:$0xff]
    %2046 = vmatpush.msra.mxu0 %v241
    %2047 = vmatpush.msra.mxu0 %v237
    %2048 = vmatpush.msra.mxu0 %v233
    %2049 = vmatpush.msra.mxu0 %v229
    %2050 = vmatpush.msra.mxu0 %v225
    %2051 = vmatpush.msra.mxu0 %v221
    %2052 = vmatpush.msra.mxu0 %v217
    %2053 = vmatpush.msra.mxu0 %v213
    %2054 = vmatpush.msra.mxu0 %v209
    %2055 = vmatpush.msra.mxu0 %v205
    %2056 = vmatpush.msra.mxu0 %v201
    %2057 = vmatpush.msra.mxu0 %v197
    %2058 = vmatpush.msra.mxu0 %v193
    %2059 = vmatpush.msra.mxu0 %v189
    %2060 = vmatpush.msra.mxu0 %v185
    %2061 = vmatpush.msra.mxu0 %v181
    %2062 = vmatmul.f32.gmra.mxu0 %v2045
    %v2063 = vpop.f32.mrf.mxu0
    %v2064 = vadd.f32 %v444, %v2063
    %2065 = vdwg.mxu0
    %2066 = vmatpush.msra.mxu0 %v305
    %2067 = vmatpush.msra.mxu0 %v301
    %2068 = vmatpush.msra.mxu0 %v297
    %2069 = vmatpush.msra.mxu0 %v293
    %2070 = vmatpush.msra.mxu0 %v289
    %2071 = vmatpush.msra.mxu0 %v285
    %2072 = vmatpush.msra.mxu0 %v281
    %2073 = vmatpush.msra.mxu0 %v277
    %2074 = vmatpush.msra.mxu0 %v273
    %2075 = vmatpush.msra.mxu0 %v269
    %2076 = vmatpush.msra.mxu0 %v265
    %2077 = vmatpush.msra.mxu0 %v261
    %2078 = vmatpush.msra.mxu0 %v257
    %2079 = vmatpush.msra.mxu0 %v253
    %2080 = vmatpush.msra.mxu0 %v249
    %2081 = vmatpush.msra.mxu0 %v245
    %2082 = vmatmul.f32.gmra.mxu0 %v2039
    %v2083 = vpop.f32.mrf.mxu0
    %v2084 = vadd.f32 %v2064, %v2083
    %2085 = vdwg.mxu0
    %2086 = vmatpush.msra.mxu0 %v369
    %2087 = vmatpush.msra.mxu0 %v365
    %2088 = vmatpush.msra.mxu0 %v361
    %2089 = vmatpush.msra.mxu0 %v357
    %2090 = vmatpush.msra.mxu0 %v353
    %2091 = vmatpush.msra.mxu0 %v349
    %2092 = vmatpush.msra.mxu0 %v345
    %2093 = vmatpush.msra.mxu0 %v341
    %2094 = vmatpush.msra.mxu0 %v337
    %2095 = vmatpush.msra.mxu0 %v333
    %2096 = vmatpush.msra.mxu0 %v329
    %2097 = vmatpush.msra.mxu0 %v325
    %2098 = vmatpush.msra.mxu0 %v321
    %2099 = vmatpush.msra.mxu0 %v317
    %2100 = vmatpush.msra.mxu0 %v313
    %2101 = vmatpush.msra.mxu0 %v309
    %2102 = vmatmul.f32.gmra.mxu0 %v1949
    %v2103 = vpop.f32.mrf.mxu0
    %v2104 = vadd.f32 %v2084, %v2103
    %2105 = vdwg.mxu0
    %2106 = vmatpush.msra.mxu0 %v242
    %2107 = vmatpush.msra.mxu0 %v238
    %2108 = vmatpush.msra.mxu0 %v234
    %2109 = vmatpush.msra.mxu0 %v230
    %2110 = vmatpush.msra.mxu0 %v226
    %2111 = vmatpush.msra.mxu0 %v222
    %2112 = vmatpush.msra.mxu0 %v218
    %2113 = vmatpush.msra.mxu0 %v214
    %2114 = vmatpush.msra.mxu0 %v210
    %2115 = vmatpush.msra.mxu0 %v206
    %2116 = vmatpush.msra.mxu0 %v202
    %2117 = vmatpush.msra.mxu0 %v198
    %2118 = vmatpush.msra.mxu0 %v194
    %2119 = vmatpush.msra.mxu0 %v190
    %2120 = vmatpush.msra.mxu0 %v186
    %2121 = vmatpush.msra.mxu0 %v182
    %2122 = vmatmul.f32.gmra.mxu0 %v2045
    %v2123 = vpop.f32.mrf.mxu0
    %v2124 = vadd.f32 %v445, %v2123
    %2125 = vdwg.mxu0
    %2126 = vmatpush.msra.mxu0 %v306
    %2127 = vmatpush.msra.mxu0 %v302
    %2128 = vmatpush.msra.mxu0 %v298
    %2129 = vmatpush.msra.mxu0 %v294
    %2130 = vmatpush.msra.mxu0 %v290
    %2131 = vmatpush.msra.mxu0 %v286
    %2132 = vmatpush.msra.mxu0 %v282
    %2133 = vmatpush.msra.mxu0 %v278
    %2134 = vmatpush.msra.mxu0 %v274
    %2135 = vmatpush.msra.mxu0 %v270
    %2136 = vmatpush.msra.mxu0 %v266
    %2137 = vmatpush.msra.mxu0 %v262
    %2138 = vmatpush.msra.mxu0 %v258
    %2139 = vmatpush.msra.mxu0 %v254
    %2140 = vmatpush.msra.mxu0 %v250
    %2141 = vmatpush.msra.mxu0 %v246
    %2142 = vmatmul.f32.gmra.mxu0 %v2039
    %v2143 = vpop.f32.mrf.mxu0
    %v2144 = vadd.f32 %v2124, %v2143
    %2145 = vdwg.mxu0
    %2146 = vmatpush.msra.mxu0 %v370
    %2147 = vmatpush.msra.mxu0 %v366
    %2148 = vmatpush.msra.mxu0 %v362
    %2149 = vmatpush.msra.mxu0 %v358
    %2150 = vmatpush.msra.mxu0 %v354
    %2151 = vmatpush.msra.mxu0 %v350
    %2152 = vmatpush.msra.mxu0 %v346
    %2153 = vmatpush.msra.mxu0 %v342
    %2154 = vmatpush.msra.mxu0 %v338
    %2155 = vmatpush.msra.mxu0 %v334
    %2156 = vmatpush.msra.mxu0 %v330
    %2157 = vmatpush.msra.mxu0 %v326
    %2158 = vmatpush.msra.mxu0 %v322
    %2159 = vmatpush.msra.mxu0 %v318
    %2160 = vmatpush.msra.mxu0 %v314
    %2161 = vmatpush.msra.mxu0 %v310
    %2162 = vmatmul.f32.gmra.mxu0 %v1949
    %v2163 = vpop.f32.mrf.mxu0
    %v2164 = vadd.f32 %v2144, %v2163
    %2165 = vdwg.mxu0
    %2166 = vmatpush.msra.mxu0 %v243
    %2167 = vmatpush.msra.mxu0 %v239
    %2168 = vmatpush.msra.mxu0 %v235
    %2169 = vmatpush.msra.mxu0 %v231
    %2170 = vmatpush.msra.mxu0 %v227
    %2171 = vmatpush.msra.mxu0 %v223
    %2172 = vmatpush.msra.mxu0 %v219
    %2173 = vmatpush.msra.mxu0 %v215
    %2174 = vmatpush.msra.mxu0 %v211
    %2175 = vmatpush.msra.mxu0 %v207
    %2176 = vmatpush.msra.mxu0 %v203
    %2177 = vmatpush.msra.mxu0 %v199
    %2178 = vmatpush.msra.mxu0 %v195
    %2179 = vmatpush.msra.mxu0 %v191
    %2180 = vmatpush.msra.mxu0 %v187
    %2181 = vmatpush.msra.mxu0 %v183
    %2182 = vmatmul.f32.gmra.mxu0 %v2045
    %v2183 = vpop.f32.mrf.mxu0
    %v2184 = vadd.f32 %v446, %v2183
    %2185 = vdwg.mxu0
    %2186 = vmatpush.msra.mxu0 %v307
    %2187 = vmatpush.msra.mxu0 %v303
    %2188 = vmatpush.msra.mxu0 %v299
    %2189 = vmatpush.msra.mxu0 %v295
    %2190 = vmatpush.msra.mxu0 %v291
    %2191 = vmatpush.msra.mxu0 %v287
    %2192 = vmatpush.msra.mxu0 %v283
    %2193 = vmatpush.msra.mxu0 %v279
    %2194 = vmatpush.msra.mxu0 %v275
    %2195 = vmatpush.msra.mxu0 %v271
    %2196 = vmatpush.msra.mxu0 %v267
    %2197 = vmatpush.msra.mxu0 %v263
    %2198 = vmatpush.msra.mxu0 %v259
    %2199 = vmatpush.msra.mxu0 %v255
    %2200 = vmatpush.msra.mxu0 %v251
    %2201 = vmatpush.msra.mxu0 %v247
    %2202 = vmatmul.f32.gmra.mxu0 %v2039
    %v2203 = vpop.f32.mrf.mxu0
    %v2204 = vadd.f32 %v2184, %v2203
    %2205 = vdwg.mxu0
    %2206 = vmatpush.msra.mxu0 %v371
    %2207 = vmatpush.msra.mxu0 %v367
    %2208 = vmatpush.msra.mxu0 %v363
    %2209 = vmatpush.msra.mxu0 %v359
    %2210 = vmatpush.msra.mxu0 %v355
    %2211 = vmatpush.msra.mxu0 %v351
    %2212 = vmatpush.msra.mxu0 %v347
    %2213 = vmatpush.msra.mxu0 %v343
    %2214 = vmatpush.msra.mxu0 %v339
    %2215 = vmatpush.msra.mxu0 %v335
    %2216 = vmatpush.msra.mxu0 %v331
    %2217 = vmatpush.msra.mxu0 %v327
    %2218 = vmatpush.msra.mxu0 %v323
    %2219 = vmatpush.msra.mxu0 %v319
    %2220 = vmatpush.msra.mxu0 %v315
    %2221 = vmatpush.msra.mxu0 %v311
    %2222 = vmatmul.f32.gmra.mxu0 %v1949
    %v2223 = vpop.f32.mrf.mxu0
    %v2224 = vadd.f32 %v2204, %v2223
    %2225 = vdwg.mxu0
    %2226 = vmatpush.msra.mxu0 %v244
    %2227 = vmatpush.msra.mxu0 %v240
    %2228 = vmatpush.msra.mxu0 %v236
    %2229 = vmatpush.msra.mxu0 %v232
    %2230 = vmatpush.msra.mxu0 %v228
    %2231 = vmatpush.msra.mxu0 %v224
    %2232 = vmatpush.msra.mxu0 %v220
    %2233 = vmatpush.msra.mxu0 %v216
    %2234 = vmatpush.msra.mxu0 %v212
    %2235 = vmatpush.msra.mxu0 %v208
    %2236 = vmatpush.msra.mxu0 %v204
    %2237 = vmatpush.msra.mxu0 %v200
    %2238 = vmatpush.msra.mxu0 %v196
    %2239 = vmatpush.msra.mxu0 %v192
    %2240 = vmatpush.msra.mxu0 %v188
    %2241 = vmatpush.msra.mxu0 %v184
    %2242 = vmatmul.f32.gmra.mxu0 %v2045
    %v2243 = vpop.f32.mrf.mxu0
    %v2244 = vadd.f32 %v447, %v2243
    %2245 = vdwg.mxu0
    %2246 = vmatpush.msra.mxu0 %v308
    %2247 = vmatpush.msra.mxu0 %v304
    %2248 = vmatpush.msra.mxu0 %v300
    %2249 = vmatpush.msra.mxu0 %v296
    %2250 = vmatpush.msra.mxu0 %v292
    %2251 = vmatpush.msra.mxu0 %v288
    %2252 = vmatpush.msra.mxu0 %v284
    %2253 = vmatpush.msra.mxu0 %v280
    %2254 = vmatpush.msra.mxu0 %v276
    %2255 = vmatpush.msra.mxu0 %v272
    %2256 = vmatpush.msra.mxu0 %v268
    %2257 = vmatpush.msra.mxu0 %v264
    %2258 = vmatpush.msra.mxu0 %v260
    %2259 = vmatpush.msra.mxu0 %v256
    %2260 = vmatpush.msra.mxu0 %v252
    %2261 = vmatpush.msra.mxu0 %v248
    %2262 = vmatmul.f32.gmra.mxu0 %v2039
    %v2263 = vpop.f32.mrf.mxu0
    %v2264 = vadd.f32 %v2244, %v2263
    %2265 = vdwg.mxu0
    %2266 = vmatpush.msra.mxu0 %v372
    %2267 = vmatpush.msra.mxu0 %v368
    %2268 = vmatpush.msra.mxu0 %v364
    %2269 = vmatpush.msra.mxu0 %v360
    %2270 = vmatpush.msra.mxu0 %v356
    %2271 = vmatpush.msra.mxu0 %v352
    %2272 = vmatpush.msra.mxu0 %v348
    %2273 = vmatpush.msra.mxu0 %v344
    %2274 = vmatpush.msra.mxu0 %v340
    %2275 = vmatpush.msra.mxu0 %v336
    %2276 = vmatpush.msra.mxu0 %v332
    %2277 = vmatpush.msra.mxu0 %v328
    %2278 = vmatpush.msra.mxu0 %v324
    %2279 = vmatpush.msra.mxu0 %v320
    %2280 = vmatpush.msra.mxu0 %v316
    %2281 = vmatpush.msra.mxu0 %v312
    %2282 = vmatmul.f32.gmra.mxu0 %v1949
    %v2283 = vpop.f32.mrf.mxu0
    %v2284 = vadd.f32 %v2264, %v2283
    %2285 = vdwg.mxu0
    %v2286 = vxor.u32 %v2104, 2147483648
    %v2287 = vmul.f32 %v2286, 1.442695
    %v2288 = vpow.pop %v2287
    %v2289 = vadd.f32 %v2288, 1.0
    %v2290 = vrcp.pop %v2289
    %v2291 = vmul.f32 %v2289, %v2290
    %v2292 = vsub.f32 1.0, %v2291
    %v2293 = vmul.f32 %v2290, %v2292
    %v2294 = vadd.f32 %v2290, %v2293
    %vm2295 = vweird.f32 %v2289
    %vm2296 = vweird.f32 %v2290
    %vm2297 = vmor %vm2295, %vm2296
    %v2298 = vsel %vm2297, %v2290, %v2294
    %v2299 = vand.u32 2147483647, %v2289
    %vm2300 = vcmp.eq.f32.partialorder %v2299, 8.507059e+37
    %v2301 = vand.u32 %v2289, 2147483648
    %v2302 = vor.u32 1.1754944e-38, %v2301
    %v2303 = vsel %vm2300, %v2302, %v2298
    %v2304 = vmul.f32 1.0, %v2303
    %v2305 = vxor.u32 %v2164, 2147483648
    %v2306 = vmul.f32 %v2305, 1.442695
    %v2307 = vpow.pop %v2306
    %v2308 = vadd.f32 %v2307, 1.0
    %v2309 = vrcp.pop %v2308
    %v2310 = vmul.f32 %v2308, %v2309
    %v2311 = vsub.f32 1.0, %v2310
    %v2312 = vmul.f32 %v2309, %v2311
    %v2313 = vadd.f32 %v2309, %v2312
    %vm2314 = vweird.f32 %v2308
    %vm2315 = vweird.f32 %v2309
    %vm2316 = vmor %vm2314, %vm2315
    %v2317 = vsel %vm2316, %v2309, %v2313
    %v2318 = vand.u32 2147483647, %v2308
    %vm2319 = vcmp.eq.f32.partialorder %v2318, 8.507059e+37
    %v2320 = vand.u32 %v2308, 2147483648
    %v2321 = vor.u32 1.1754944e-38, %v2320
    %v2322 = vsel %vm2319, %v2321, %v2317
    %v2323 = vmul.f32 1.0, %v2322
    %v2324 = vtanh.pop %v2224
    %v2325 = vxor.u32 %v2284, 2147483648
    %v2326 = vmul.f32 %v2325, 1.442695
    %v2327 = vpow.pop %v2326
    %v2328 = vadd.f32 %v2327, 1.0
    %v2329 = vrcp.pop %v2328
    %v2330 = vmul.f32 %v2328, %v2329
    %v2331 = vsub.f32 1.0, %v2330
    %v2332 = vmul.f32 %v2329, %v2331
    %v2333 = vadd.f32 %v2329, %v2332
    %vm2334 = vweird.f32 %v2328
    %vm2335 = vweird.f32 %v2329
    %vm2336 = vmor %vm2334, %vm2335
    %v2337 = vsel %vm2336, %v2329, %v2333
    %v2338 = vand.u32 2147483647, %v2328
    %vm2339 = vcmp.eq.f32.partialorder %v2338, 8.507059e+37
    %v2340 = vand.u32 %v2328, 2147483648
    %v2341 = vor.u32 1.1754944e-38, %v2340
    %v2342 = vsel %vm2339, %v2341, %v2337
    %v2343 = vmul.f32 1.0, %v2342
    %v2344 = vmul.f32 %v2323, %v1947
    %v2345 = vmul.f32 %v2304, %v2324
    %v2346 = vadd.f32 %v2344, %v2345
    %v2347 = vtanh.pop %v2346
    %v2348 = vmul.f32 %v2343, %v2347
    %2349 = vmatpush.msra.mxu0 %v389
    %2350 = vmatpush.msra.mxu0 %v388
    %2351 = vmatpush.msra.mxu0 %v387
    %2352 = vmatpush.msra.mxu0 %v386
    %2353 = vmatpush.msra.mxu0 %v385
    %2354 = vmatpush.msra.mxu0 %v384
    %2355 = vmatpush.msra.mxu0 %v383
    %2356 = vmatpush.msra.mxu0 %v382
    %2357 = vmatpush.msra.mxu0 %v381
    %2358 = vmatpush.msra.mxu0 %v380
    %2359 = vmatpush.msra.mxu0 %v379
    %2360 = vmatpush.msra.mxu0 %v378
    %2361 = vmatpush.msra.mxu0 %v377
    %2362 = vmatpush.msra.mxu0 %v376
    %2363 = vmatpush.msra.mxu0 %v375
    %2364 = vmatpush.msra.mxu0 %v374
    %2365 = vmatmul.f32.gmra.mxu0 %v2348
    %v2366 = vpop.f32.mrf.mxu0
    %v2367 = vadd.f32 %v406, %v2366
    %2368 = vdwg.mxu0
    %2369 = vmax.xlane.f32.xlu0 %v2367
    %v2370 = vpop.xlane.xlu0 %2369
    %v2371 = vsub.f32 %v2367, %v2370
    %v2372 = vmul.f32 %v2371, 1.442695
    %v2373 = vpow.pop %v2372
    %2374 = vadd.xlane.f32.xlu0 %v2373
    %v2375 = vpop.xlane.xlu0 %2374
    %v2376 = vrcp.pop %v2375
    %v2377 = vmul.f32 %v2373, %v2376
    %2378 = vmatpush.msra.mxu0 %v405
    %2379 = vmatpush.msra.mxu0 %v404
    %2380 = vmatpush.msra.mxu0 %v403
    %2381 = vmatpush.msra.mxu0 %v402
    %2382 = vmatpush.msra.mxu0 %v401
    %2383 = vmatpush.msra.mxu0 %v400
    %2384 = vmatpush.msra.mxu0 %v399
    %2385 = vmatpush.msra.mxu0 %v398
    %2386 = vmatpush.msra.mxu0 %v397
    %2387 = vmatpush.msra.mxu0 %v396
    %2388 = vmatpush.msra.mxu0 %v395
    %2389 = vmatpush.msra.mxu0 %v394
    %2390 = vmatpush.msra.mxu0 %v393
    %2391 = vmatpush.msra.mxu0 %v392
    %2392 = vmatpush.msra.mxu0 %v391
    %2393 = vmatpush.msra.mxu0 %v390
    %2394 = vmatmul.f32.gmra.mxu0 %v2377
    %v2395 = vpop.f32.mrf.mxu0
    %v2396 = vadd.f32 0.0, %v2395
    %2397 = vdwg.mxu0
    %2398 = vmatpush.msra.mxu0 %v422
    %2399 = vmatpush.msra.mxu0 %v421
    %2400 = vmatpush.msra.mxu0 %v420
    %2401 = vmatpush.msra.mxu0 %v419
    %2402 = vmatpush.msra.mxu0 %v418
    %2403 = vmatpush.msra.mxu0 %v417
    %2404 = vmatpush.msra.mxu0 %v416
    %2405 = vmatpush.msra.mxu0 %v415
    %2406 = vmatpush.msra.mxu0 %v414
    %2407 = vmatpush.msra.mxu0 %v413
    %2408 = vmatpush.msra.mxu0 %v412
    %2409 = vmatpush.msra.mxu0 %v411
    %2410 = vmatpush.msra.mxu0 %v410
    %2411 = vmatpush.msra.mxu0 %v409
    %2412 = vmatpush.msra.mxu0 %v408
    %2413 = vmatpush.msra.mxu0 %v407
    %2414 = vmatmul.f32.gmra.mxu0 %v2396
    %v2415 = vpop.f32.mrf.mxu0
    %v2416 = vadd.f32 0.0, %v2415
    %2417 = vdwg.mxu0
    %2418 = vmatpush.msra.mxu0 %v438
    %2419 = vmatpush.msra.mxu0 %v437
    %2420 = vmatpush.msra.mxu0 %v436
    %2421 = vmatpush.msra.mxu0 %v435
    %2422 = vmatpush.msra.mxu0 %v434
    %2423 = vmatpush.msra.mxu0 %v433
    %2424 = vmatpush.msra.mxu0 %v432
    %2425 = vmatpush.msra.mxu0 %v431
    %2426 = vmatpush.msra.mxu0 %v430
    %2427 = vmatpush.msra.mxu0 %v429
    %2428 = vmatpush.msra.mxu0 %v428
    %2429 = vmatpush.msra.mxu0 %v427
    %2430 = vmatpush.msra.mxu0 %v426
    %2431 = vmatpush.msra.mxu0 %v425
    %2432 = vmatpush.msra.mxu0 %v424
    %2433 = vmatpush.msra.mxu0 %v423
    %2434 = vmatmul.f32.gmra.mxu0 %v2348
    %v2435 = vpop.f32.mrf.mxu0
    %v2436 = vadd.f32 %v2416, %v2435
    %2437 = vdwg.mxu0
    %v2438 = vtanh.pop %v2436
    %s2439 = scalar_lea.vmem [#allocation20], 32
    %2440 = vst [vmem:[%s2439] sm:$0xff] %v2438
    %s2441 = scalar_lea.vmem [#allocation21], 32
    %2442 = vst [vmem:[%s2441] sm:$0xff] %v2377
    %s2443 = scalar_lea.vmem [#allocation5], 40
    %v2444 = vld [vmem:[%s2443] sm:$0xff]
    %2445 = vmatpush.msra.mxu0 %v241
    %2446 = vmatpush.msra.mxu0 %v237
    %2447 = vmatpush.msra.mxu0 %v233
    %2448 = vmatpush.msra.mxu0 %v229
    %2449 = vmatpush.msra.mxu0 %v225
    %2450 = vmatpush.msra.mxu0 %v221
    %2451 = vmatpush.msra.mxu0 %v217
    %2452 = vmatpush.msra.mxu0 %v213
    %2453 = vmatpush.msra.mxu0 %v209
    %2454 = vmatpush.msra.mxu0 %v205
    %2455 = vmatpush.msra.mxu0 %v201
    %2456 = vmatpush.msra.mxu0 %v197
    %2457 = vmatpush.msra.mxu0 %v193
    %2458 = vmatpush.msra.mxu0 %v189
    %2459 = vmatpush.msra.mxu0 %v185
    %2460 = vmatpush.msra.mxu0 %v181
    %2461 = vmatmul.f32.gmra.mxu0 %v2444
    %v2462 = vpop.f32.mrf.mxu0
    %v2463 = vadd.f32 %v444, %v2462
    %2464 = vdwg.mxu0
    %2465 = vmatpush.msra.mxu0 %v305
    %2466 = vmatpush.msra.mxu0 %v301
    %2467 = vmatpush.msra.mxu0 %v297
    %2468 = vmatpush.msra.mxu0 %v293
    %2469 = vmatpush.msra.mxu0 %v289
    %2470 = vmatpush.msra.mxu0 %v285
    %2471 = vmatpush.msra.mxu0 %v281
    %2472 = vmatpush.msra.mxu0 %v277
    %2473 = vmatpush.msra.mxu0 %v273
    %2474 = vmatpush.msra.mxu0 %v269
    %2475 = vmatpush.msra.mxu0 %v265
    %2476 = vmatpush.msra.mxu0 %v261
    %2477 = vmatpush.msra.mxu0 %v257
    %2478 = vmatpush.msra.mxu0 %v253
    %2479 = vmatpush.msra.mxu0 %v249
    %2480 = vmatpush.msra.mxu0 %v245
    %2481 = vmatmul.f32.gmra.mxu0 %v2438
    %v2482 = vpop.f32.mrf.mxu0
    %v2483 = vadd.f32 %v2463, %v2482
    %2484 = vdwg.mxu0
    %2485 = vmatpush.msra.mxu0 %v369
    %2486 = vmatpush.msra.mxu0 %v365
    %2487 = vmatpush.msra.mxu0 %v361
    %2488 = vmatpush.msra.mxu0 %v357
    %2489 = vmatpush.msra.mxu0 %v353
    %2490 = vmatpush.msra.mxu0 %v349
    %2491 = vmatpush.msra.mxu0 %v345
    %2492 = vmatpush.msra.mxu0 %v341
    %2493 = vmatpush.msra.mxu0 %v337
    %2494 = vmatpush.msra.mxu0 %v333
    %2495 = vmatpush.msra.mxu0 %v329
    %2496 = vmatpush.msra.mxu0 %v325
    %2497 = vmatpush.msra.mxu0 %v321
    %2498 = vmatpush.msra.mxu0 %v317
    %2499 = vmatpush.msra.mxu0 %v313
    %2500 = vmatpush.msra.mxu0 %v309
    %2501 = vmatmul.f32.gmra.mxu0 %v2348
    %v2502 = vpop.f32.mrf.mxu0
    %v2503 = vadd.f32 %v2483, %v2502
    %2504 = vdwg.mxu0
    %2505 = vmatpush.msra.mxu0 %v242
    %2506 = vmatpush.msra.mxu0 %v238
    %2507 = vmatpush.msra.mxu0 %v234
    %2508 = vmatpush.msra.mxu0 %v230
    %2509 = vmatpush.msra.mxu0 %v226
    %2510 = vmatpush.msra.mxu0 %v222
    %2511 = vmatpush.msra.mxu0 %v218
    %2512 = vmatpush.msra.mxu0 %v214
    %2513 = vmatpush.msra.mxu0 %v210
    %2514 = vmatpush.msra.mxu0 %v206
    %2515 = vmatpush.msra.mxu0 %v202
    %2516 = vmatpush.msra.mxu0 %v198
    %2517 = vmatpush.msra.mxu0 %v194
    %2518 = vmatpush.msra.mxu0 %v190
    %2519 = vmatpush.msra.mxu0 %v186
    %2520 = vmatpush.msra.mxu0 %v182
    %2521 = vmatmul.f32.gmra.mxu0 %v2444
    %v2522 = vpop.f32.mrf.mxu0
    %v2523 = vadd.f32 %v445, %v2522
    %2524 = vdwg.mxu0
    %2525 = vmatpush.msra.mxu0 %v306
    %2526 = vmatpush.msra.mxu0 %v302
    %2527 = vmatpush.msra.mxu0 %v298
    %2528 = vmatpush.msra.mxu0 %v294
    %2529 = vmatpush.msra.mxu0 %v290
    %2530 = vmatpush.msra.mxu0 %v286
    %2531 = vmatpush.msra.mxu0 %v282
    %2532 = vmatpush.msra.mxu0 %v278
    %2533 = vmatpush.msra.mxu0 %v274
    %2534 = vmatpush.msra.mxu0 %v270
    %2535 = vmatpush.msra.mxu0 %v266
    %2536 = vmatpush.msra.mxu0 %v262
    %2537 = vmatpush.msra.mxu0 %v258
    %2538 = vmatpush.msra.mxu0 %v254
    %2539 = vmatpush.msra.mxu0 %v250
    %2540 = vmatpush.msra.mxu0 %v246
    %2541 = vmatmul.f32.gmra.mxu0 %v2438
    %v2542 = vpop.f32.mrf.mxu0
    %v2543 = vadd.f32 %v2523, %v2542
    %2544 = vdwg.mxu0
    %2545 = vmatpush.msra.mxu0 %v370
    %2546 = vmatpush.msra.mxu0 %v366
    %2547 = vmatpush.msra.mxu0 %v362
    %2548 = vmatpush.msra.mxu0 %v358
    %2549 = vmatpush.msra.mxu0 %v354
    %2550 = vmatpush.msra.mxu0 %v350
    %2551 = vmatpush.msra.mxu0 %v346
    %2552 = vmatpush.msra.mxu0 %v342
    %2553 = vmatpush.msra.mxu0 %v338
    %2554 = vmatpush.msra.mxu0 %v334
    %2555 = vmatpush.msra.mxu0 %v330
    %2556 = vmatpush.msra.mxu0 %v326
    %2557 = vmatpush.msra.mxu0 %v322
    %2558 = vmatpush.msra.mxu0 %v318
    %2559 = vmatpush.msra.mxu0 %v314
    %2560 = vmatpush.msra.mxu0 %v310
    %2561 = vmatmul.f32.gmra.mxu0 %v2348
    %v2562 = vpop.f32.mrf.mxu0
    %v2563 = vadd.f32 %v2543, %v2562
    %2564 = vdwg.mxu0
    %2565 = vmatpush.msra.mxu0 %v243
    %2566 = vmatpush.msra.mxu0 %v239
    %2567 = vmatpush.msra.mxu0 %v235
    %2568 = vmatpush.msra.mxu0 %v231
    %2569 = vmatpush.msra.mxu0 %v227
    %2570 = vmatpush.msra.mxu0 %v223
    %2571 = vmatpush.msra.mxu0 %v219
    %2572 = vmatpush.msra.mxu0 %v215
    %2573 = vmatpush.msra.mxu0 %v211
    %2574 = vmatpush.msra.mxu0 %v207
    %2575 = vmatpush.msra.mxu0 %v203
    %2576 = vmatpush.msra.mxu0 %v199
    %2577 = vmatpush.msra.mxu0 %v195
    %2578 = vmatpush.msra.mxu0 %v191
    %2579 = vmatpush.msra.mxu0 %v187
    %2580 = vmatpush.msra.mxu0 %v183
    %2581 = vmatmul.f32.gmra.mxu0 %v2444
    %v2582 = vpop.f32.mrf.mxu0
    %v2583 = vadd.f32 %v446, %v2582
    %2584 = vdwg.mxu0
    %2585 = vmatpush.msra.mxu0 %v307
    %2586 = vmatpush.msra.mxu0 %v303
    %2587 = vmatpush.msra.mxu0 %v299
    %2588 = vmatpush.msra.mxu0 %v295
    %2589 = vmatpush.msra.mxu0 %v291
    %2590 = vmatpush.msra.mxu0 %v287
    %2591 = vmatpush.msra.mxu0 %v283
    %2592 = vmatpush.msra.mxu0 %v279
    %2593 = vmatpush.msra.mxu0 %v275
    %2594 = vmatpush.msra.mxu0 %v271
    %2595 = vmatpush.msra.mxu0 %v267
    %2596 = vmatpush.msra.mxu0 %v263
    %2597 = vmatpush.msra.mxu0 %v259
    %2598 = vmatpush.msra.mxu0 %v255
    %2599 = vmatpush.msra.mxu0 %v251
    %2600 = vmatpush.msra.mxu0 %v247
    %2601 = vmatmul.f32.gmra.mxu0 %v2438
    %v2602 = vpop.f32.mrf.mxu0
    %v2603 = vadd.f32 %v2583, %v2602
    %2604 = vdwg.mxu0
    %2605 = vmatpush.msra.mxu0 %v371
    %2606 = vmatpush.msra.mxu0 %v367
    %2607 = vmatpush.msra.mxu0 %v363
    %2608 = vmatpush.msra.mxu0 %v359
    %2609 = vmatpush.msra.mxu0 %v355
    %2610 = vmatpush.msra.mxu0 %v351
    %2611 = vmatpush.msra.mxu0 %v347
    %2612 = vmatpush.msra.mxu0 %v343
    %2613 = vmatpush.msra.mxu0 %v339
    %2614 = vmatpush.msra.mxu0 %v335
    %2615 = vmatpush.msra.mxu0 %v331
    %2616 = vmatpush.msra.mxu0 %v327
    %2617 = vmatpush.msra.mxu0 %v323
    %2618 = vmatpush.msra.mxu0 %v319
    %2619 = vmatpush.msra.mxu0 %v315
    %2620 = vmatpush.msra.mxu0 %v311
    %2621 = vmatmul.f32.gmra.mxu0 %v2348
    %v2622 = vpop.f32.mrf.mxu0
    %v2623 = vadd.f32 %v2603, %v2622
    %2624 = vdwg.mxu0
    %2625 = vmatpush.msra.mxu0 %v244
    %2626 = vmatpush.msra.mxu0 %v240
    %2627 = vmatpush.msra.mxu0 %v236
    %2628 = vmatpush.msra.mxu0 %v232
    %2629 = vmatpush.msra.mxu0 %v228
    %2630 = vmatpush.msra.mxu0 %v224
    %2631 = vmatpush.msra.mxu0 %v220
    %2632 = vmatpush.msra.mxu0 %v216
    %2633 = vmatpush.msra.mxu0 %v212
    %2634 = vmatpush.msra.mxu0 %v208
    %2635 = vmatpush.msra.mxu0 %v204
    %2636 = vmatpush.msra.mxu0 %v200
    %2637 = vmatpush.msra.mxu0 %v196
    %2638 = vmatpush.msra.mxu0 %v192
    %2639 = vmatpush.msra.mxu0 %v188
    %2640 = vmatpush.msra.mxu0 %v184
    %2641 = vmatmul.f32.gmra.mxu0 %v2444
    %v2642 = vpop.f32.mrf.mxu0
    %v2643 = vadd.f32 %v447, %v2642
    %2644 = vdwg.mxu0
    %2645 = vmatpush.msra.mxu0 %v308
    %2646 = vmatpush.msra.mxu0 %v304
    %2647 = vmatpush.msra.mxu0 %v300
    %2648 = vmatpush.msra.mxu0 %v296
    %2649 = vmatpush.msra.mxu0 %v292
    %2650 = vmatpush.msra.mxu0 %v288
    %2651 = vmatpush.msra.mxu0 %v284
    %2652 = vmatpush.msra.mxu0 %v280
    %2653 = vmatpush.msra.mxu0 %v276
    %2654 = vmatpush.msra.mxu0 %v272
    %2655 = vmatpush.msra.mxu0 %v268
    %2656 = vmatpush.msra.mxu0 %v264
    %2657 = vmatpush.msra.mxu0 %v260
    %2658 = vmatpush.msra.mxu0 %v256
    %2659 = vmatpush.msra.mxu0 %v252
    %2660 = vmatpush.msra.mxu0 %v248
    %2661 = vmatmul.f32.gmra.mxu0 %v2438
    %v2662 = vpop.f32.mrf.mxu0
    %v2663 = vadd.f32 %v2643, %v2662
    %2664 = vdwg.mxu0
    %2665 = vmatpush.msra.mxu0 %v372
    %2666 = vmatpush.msra.mxu0 %v368
    %2667 = vmatpush.msra.mxu0 %v364
    %2668 = vmatpush.msra.mxu0 %v360
    %2669 = vmatpush.msra.mxu0 %v356
    %2670 = vmatpush.msra.mxu0 %v352
    %2671 = vmatpush.msra.mxu0 %v348
    %2672 = vmatpush.msra.mxu0 %v344
    %2673 = vmatpush.msra.mxu0 %v340
    %2674 = vmatpush.msra.mxu0 %v336
    %2675 = vmatpush.msra.mxu0 %v332
    %2676 = vmatpush.msra.mxu0 %v328
    %2677 = vmatpush.msra.mxu0 %v324
    %2678 = vmatpush.msra.mxu0 %v320
    %2679 = vmatpush.msra.mxu0 %v316
    %2680 = vmatpush.msra.mxu0 %v312
    %2681 = vmatmul.f32.gmra.mxu0 %v2348
    %v2682 = vpop.f32.mrf.mxu0
    %v2683 = vadd.f32 %v2663, %v2682
    %2684 = vdwg.mxu0
    %v2685 = vxor.u32 %v2503, 2147483648
    %v2686 = vmul.f32 %v2685, 1.442695
    %v2687 = vpow.pop %v2686
    %v2688 = vadd.f32 %v2687, 1.0
    %v2689 = vrcp.pop %v2688
    %v2690 = vmul.f32 %v2688, %v2689
    %v2691 = vsub.f32 1.0, %v2690
    %v2692 = vmul.f32 %v2689, %v2691
    %v2693 = vadd.f32 %v2689, %v2692
    %vm2694 = vweird.f32 %v2688
    %vm2695 = vweird.f32 %v2689
    %vm2696 = vmor %vm2694, %vm2695
    %v2697 = vsel %vm2696, %v2689, %v2693
    %v2698 = vand.u32 2147483647, %v2688
    %vm2699 = vcmp.eq.f32.partialorder %v2698, 8.507059e+37
    %v2700 = vand.u32 %v2688, 2147483648
    %v2701 = vor.u32 1.1754944e-38, %v2700
    %v2702 = vsel %vm2699, %v2701, %v2697
    %v2703 = vmul.f32 1.0, %v2702
    %v2704 = vxor.u32 %v2563, 2147483648
    %v2705 = vmul.f32 %v2704, 1.442695
    %v2706 = vpow.pop %v2705
    %v2707 = vadd.f32 %v2706, 1.0
    %v2708 = vrcp.pop %v2707
    %v2709 = vmul.f32 %v2707, %v2708
    %v2710 = vsub.f32 1.0, %v2709
    %v2711 = vmul.f32 %v2708, %v2710
    %v2712 = vadd.f32 %v2708, %v2711
    %vm2713 = vweird.f32 %v2707
    %vm2714 = vweird.f32 %v2708
    %vm2715 = vmor %vm2713, %vm2714
    %v2716 = vsel %vm2715, %v2708, %v2712
    %v2717 = vand.u32 2147483647, %v2707
    %vm2718 = vcmp.eq.f32.partialorder %v2717, 8.507059e+37
    %v2719 = vand.u32 %v2707, 2147483648
    %v2720 = vor.u32 1.1754944e-38, %v2719
    %v2721 = vsel %vm2718, %v2720, %v2716
    %v2722 = vmul.f32 1.0, %v2721
    %v2723 = vtanh.pop %v2623
    %v2724 = vxor.u32 %v2683, 2147483648
    %v2725 = vmul.f32 %v2724, 1.442695
    %v2726 = vpow.pop %v2725
    %v2727 = vadd.f32 %v2726, 1.0
    %v2728 = vrcp.pop %v2727
    %v2729 = vmul.f32 %v2727, %v2728
    %v2730 = vsub.f32 1.0, %v2729
    %v2731 = vmul.f32 %v2728, %v2730
    %v2732 = vadd.f32 %v2728, %v2731
    %vm2733 = vweird.f32 %v2727
    %vm2734 = vweird.f32 %v2728
    %vm2735 = vmor %vm2733, %vm2734
    %v2736 = vsel %vm2735, %v2728, %v2732
    %v2737 = vand.u32 2147483647, %v2727
    %vm2738 = vcmp.eq.f32.partialorder %v2737, 8.507059e+37
    %v2739 = vand.u32 %v2727, 2147483648
    %v2740 = vor.u32 1.1754944e-38, %v2739
    %v2741 = vsel %vm2738, %v2740, %v2736
    %v2742 = vmul.f32 1.0, %v2741
    %v2743 = vmul.f32 %v2722, %v2346
    %v2744 = vmul.f32 %v2703, %v2723
    %v2745 = vadd.f32 %v2743, %v2744
    %v2746 = vtanh.pop %v2745
    %v2747 = vmul.f32 %v2742, %v2746
    %2748 = vmatpush.msra.mxu0 %v389
    %2749 = vmatpush.msra.mxu0 %v388
    %2750 = vmatpush.msra.mxu0 %v387
    %2751 = vmatpush.msra.mxu0 %v386
    %2752 = vmatpush.msra.mxu0 %v385
    %2753 = vmatpush.msra.mxu0 %v384
    %2754 = vmatpush.msra.mxu0 %v383
    %2755 = vmatpush.msra.mxu0 %v382
    %2756 = vmatpush.msra.mxu0 %v381
    %2757 = vmatpush.msra.mxu0 %v380
    %2758 = vmatpush.msra.mxu0 %v379
    %2759 = vmatpush.msra.mxu0 %v378
    %2760 = vmatpush.msra.mxu0 %v377
    %2761 = vmatpush.msra.mxu0 %v376
    %2762 = vmatpush.msra.mxu0 %v375
    %2763 = vmatpush.msra.mxu0 %v374
    %2764 = vmatmul.f32.gmra.mxu0 %v2747
    %v2765 = vpop.f32.mrf.mxu0
    %v2766 = vadd.f32 %v406, %v2765
    %2767 = vdwg.mxu0
    %2768 = vmax.xlane.f32.xlu0 %v2766
    %v2769 = vpop.xlane.xlu0 %2768
    %v2770 = vsub.f32 %v2766, %v2769
    %v2771 = vmul.f32 %v2770, 1.442695
    %v2772 = vpow.pop %v2771
    %2773 = vadd.xlane.f32.xlu0 %v2772
    %v2774 = vpop.xlane.xlu0 %2773
    %v2775 = vrcp.pop %v2774
    %v2776 = vmul.f32 %v2772, %v2775
    %2777 = vmatpush.msra.mxu0 %v405
    %2778 = vmatpush.msra.mxu0 %v404
    %2779 = vmatpush.msra.mxu0 %v403
    %2780 = vmatpush.msra.mxu0 %v402
    %2781 = vmatpush.msra.mxu0 %v401
    %2782 = vmatpush.msra.mxu0 %v400
    %2783 = vmatpush.msra.mxu0 %v399
    %2784 = vmatpush.msra.mxu0 %v398
    %2785 = vmatpush.msra.mxu0 %v397
    %2786 = vmatpush.msra.mxu0 %v396
    %2787 = vmatpush.msra.mxu0 %v395
    %2788 = vmatpush.msra.mxu0 %v394
    %2789 = vmatpush.msra.mxu0 %v393
    %2790 = vmatpush.msra.mxu0 %v392
    %2791 = vmatpush.msra.mxu0 %v391
    %2792 = vmatpush.msra.mxu0 %v390
    %2793 = vmatmul.f32.gmra.mxu0 %v2776
    %v2794 = vpop.f32.mrf.mxu0
    %v2795 = vadd.f32 0.0, %v2794
    %2796 = vdwg.mxu0
    %2797 = vmatpush.msra.mxu0 %v422
    %2798 = vmatpush.msra.mxu0 %v421
    %2799 = vmatpush.msra.mxu0 %v420
    %2800 = vmatpush.msra.mxu0 %v419
    %2801 = vmatpush.msra.mxu0 %v418
    %2802 = vmatpush.msra.mxu0 %v417
    %2803 = vmatpush.msra.mxu0 %v416
    %2804 = vmatpush.msra.mxu0 %v415
    %2805 = vmatpush.msra.mxu0 %v414
    %2806 = vmatpush.msra.mxu0 %v413
    %2807 = vmatpush.msra.mxu0 %v412
    %2808 = vmatpush.msra.mxu0 %v411
    %2809 = vmatpush.msra.mxu0 %v410
    %2810 = vmatpush.msra.mxu0 %v409
    %2811 = vmatpush.msra.mxu0 %v408
    %2812 = vmatpush.msra.mxu0 %v407
    %2813 = vmatmul.f32.gmra.mxu0 %v2795
    %v2814 = vpop.f32.mrf.mxu0
    %v2815 = vadd.f32 0.0, %v2814
    %2816 = vdwg.mxu0
    %2817 = vmatpush.msra.mxu0 %v438
    %2818 = vmatpush.msra.mxu0 %v437
    %2819 = vmatpush.msra.mxu0 %v436
    %2820 = vmatpush.msra.mxu0 %v435
    %2821 = vmatpush.msra.mxu0 %v434
    %2822 = vmatpush.msra.mxu0 %v433
    %2823 = vmatpush.msra.mxu0 %v432
    %2824 = vmatpush.msra.mxu0 %v431
    %2825 = vmatpush.msra.mxu0 %v430
    %2826 = vmatpush.msra.mxu0 %v429
    %2827 = vmatpush.msra.mxu0 %v428
    %2828 = vmatpush.msra.mxu0 %v427
    %2829 = vmatpush.msra.mxu0 %v426
    %2830 = vmatpush.msra.mxu0 %v425
    %2831 = vmatpush.msra.mxu0 %v424
    %2832 = vmatpush.msra.mxu0 %v423
    %2833 = vmatmul.f32.gmra.mxu0 %v2747
    %v2834 = vpop.f32.mrf.mxu0
    %v2835 = vadd.f32 %v2815, %v2834
    %2836 = vdwg.mxu0
    %v2837 = vtanh.pop %v2835
    %s2838 = scalar_lea.vmem [#allocation20], 40
    %2839 = vst [vmem:[%s2838] sm:$0xff] %v2837
    %s2840 = scalar_lea.vmem [#allocation21], 40
    %2841 = vst [vmem:[%s2840] sm:$0xff] %v2776
    %s2842 = scalar_lea.vmem [#allocation5], 48
    %v2843 = vld [vmem:[%s2842] sm:$0xff]
    %2844 = vmatpush.msra.mxu0 %v241
    %2845 = vmatpush.msra.mxu0 %v237
    %2846 = vmatpush.msra.mxu0 %v233
    %2847 = vmatpush.msra.mxu0 %v229
    %2848 = vmatpush.msra.mxu0 %v225
    %2849 = vmatpush.msra.mxu0 %v221
    %2850 = vmatpush.msra.mxu0 %v217
    %2851 = vmatpush.msra.mxu0 %v213
    %2852 = vmatpush.msra.mxu0 %v209
    %2853 = vmatpush.msra.mxu0 %v205
    %2854 = vmatpush.msra.mxu0 %v201
    %2855 = vmatpush.msra.mxu0 %v197
    %2856 = vmatpush.msra.mxu0 %v193
    %2857 = vmatpush.msra.mxu0 %v189
    %2858 = vmatpush.msra.mxu0 %v185
    %2859 = vmatpush.msra.mxu0 %v181
    %2860 = vmatmul.f32.gmra.mxu0 %v2843
    %v2861 = vpop.f32.mrf.mxu0
    %v2862 = vadd.f32 %v444, %v2861
    %2863 = vdwg.mxu0
    %2864 = vmatpush.msra.mxu0 %v305
    %2865 = vmatpush.msra.mxu0 %v301
    %2866 = vmatpush.msra.mxu0 %v297
    %2867 = vmatpush.msra.mxu0 %v293
    %2868 = vmatpush.msra.mxu0 %v289
    %2869 = vmatpush.msra.mxu0 %v285
    %2870 = vmatpush.msra.mxu0 %v281
    %2871 = vmatpush.msra.mxu0 %v277
    %2872 = vmatpush.msra.mxu0 %v273
    %2873 = vmatpush.msra.mxu0 %v269
    %2874 = vmatpush.msra.mxu0 %v265
    %2875 = vmatpush.msra.mxu0 %v261
    %2876 = vmatpush.msra.mxu0 %v257
    %2877 = vmatpush.msra.mxu0 %v253
    %2878 = vmatpush.msra.mxu0 %v249
    %2879 = vmatpush.msra.mxu0 %v245
    %2880 = vmatmul.f32.gmra.mxu0 %v2837
    %v2881 = vpop.f32.mrf.mxu0
    %v2882 = vadd.f32 %v2862, %v2881
    %2883 = vdwg.mxu0
    %2884 = vmatpush.msra.mxu0 %v369
    %2885 = vmatpush.msra.mxu0 %v365
    %2886 = vmatpush.msra.mxu0 %v361
    %2887 = vmatpush.msra.mxu0 %v357
    %2888 = vmatpush.msra.mxu0 %v353
    %2889 = vmatpush.msra.mxu0 %v349
    %2890 = vmatpush.msra.mxu0 %v345
    %2891 = vmatpush.msra.mxu0 %v341
    %2892 = vmatpush.msra.mxu0 %v337
    %2893 = vmatpush.msra.mxu0 %v333
    %2894 = vmatpush.msra.mxu0 %v329
    %2895 = vmatpush.msra.mxu0 %v325
    %2896 = vmatpush.msra.mxu0 %v321
    %2897 = vmatpush.msra.mxu0 %v317
    %2898 = vmatpush.msra.mxu0 %v313
    %2899 = vmatpush.msra.mxu0 %v309
    %2900 = vmatmul.f32.gmra.mxu0 %v2747
    %v2901 = vpop.f32.mrf.mxu0
    %v2902 = vadd.f32 %v2882, %v2901
    %2903 = vdwg.mxu0
    %2904 = vmatpush.msra.mxu0 %v242
    %2905 = vmatpush.msra.mxu0 %v238
    %2906 = vmatpush.msra.mxu0 %v234
    %2907 = vmatpush.msra.mxu0 %v230
    %2908 = vmatpush.msra.mxu0 %v226
    %2909 = vmatpush.msra.mxu0 %v222
    %2910 = vmatpush.msra.mxu0 %v218
    %2911 = vmatpush.msra.mxu0 %v214
    %2912 = vmatpush.msra.mxu0 %v210
    %2913 = vmatpush.msra.mxu0 %v206
    %2914 = vmatpush.msra.mxu0 %v202
    %2915 = vmatpush.msra.mxu0 %v198
    %2916 = vmatpush.msra.mxu0 %v194
    %2917 = vmatpush.msra.mxu0 %v190
    %2918 = vmatpush.msra.mxu0 %v186
    %2919 = vmatpush.msra.mxu0 %v182
    %2920 = vmatmul.f32.gmra.mxu0 %v2843
    %v2921 = vpop.f32.mrf.mxu0
    %v2922 = vadd.f32 %v445, %v2921
    %2923 = vdwg.mxu0
    %2924 = vmatpush.msra.mxu0 %v306
    %2925 = vmatpush.msra.mxu0 %v302
    %2926 = vmatpush.msra.mxu0 %v298
    %2927 = vmatpush.msra.mxu0 %v294
    %2928 = vmatpush.msra.mxu0 %v290
    %2929 = vmatpush.msra.mxu0 %v286
    %2930 = vmatpush.msra.mxu0 %v282
    %2931 = vmatpush.msra.mxu0 %v278
    %2932 = vmatpush.msra.mxu0 %v274
    %2933 = vmatpush.msra.mxu0 %v270
    %2934 = vmatpush.msra.mxu0 %v266
    %2935 = vmatpush.msra.mxu0 %v262
    %2936 = vmatpush.msra.mxu0 %v258
    %2937 = vmatpush.msra.mxu0 %v254
    %2938 = vmatpush.msra.mxu0 %v250
    %2939 = vmatpush.msra.mxu0 %v246
    %2940 = vmatmul.f32.gmra.mxu0 %v2837
    %v2941 = vpop.f32.mrf.mxu0
    %v2942 = vadd.f32 %v2922, %v2941
    %2943 = vdwg.mxu0
    %2944 = vmatpush.msra.mxu0 %v370
    %2945 = vmatpush.msra.mxu0 %v366
    %2946 = vmatpush.msra.mxu0 %v362
    %2947 = vmatpush.msra.mxu0 %v358
    %2948 = vmatpush.msra.mxu0 %v354
    %2949 = vmatpush.msra.mxu0 %v350
    %2950 = vmatpush.msra.mxu0 %v346
    %2951 = vmatpush.msra.mxu0 %v342
    %2952 = vmatpush.msra.mxu0 %v338
    %2953 = vmatpush.msra.mxu0 %v334
    %2954 = vmatpush.msra.mxu0 %v330
    %2955 = vmatpush.msra.mxu0 %v326
    %2956 = vmatpush.msra.mxu0 %v322
    %2957 = vmatpush.msra.mxu0 %v318
    %2958 = vmatpush.msra.mxu0 %v314
    %2959 = vmatpush.msra.mxu0 %v310
    %2960 = vmatmul.f32.gmra.mxu0 %v2747
    %v2961 = vpop.f32.mrf.mxu0
    %v2962 = vadd.f32 %v2942, %v2961
    %2963 = vdwg.mxu0
    %2964 = vmatpush.msra.mxu0 %v243
    %2965 = vmatpush.msra.mxu0 %v239
    %2966 = vmatpush.msra.mxu0 %v235
    %2967 = vmatpush.msra.mxu0 %v231
    %2968 = vmatpush.msra.mxu0 %v227
    %2969 = vmatpush.msra.mxu0 %v223
    %2970 = vmatpush.msra.mxu0 %v219
    %2971 = vmatpush.msra.mxu0 %v215
    %2972 = vmatpush.msra.mxu0 %v211
    %2973 = vmatpush.msra.mxu0 %v207
    %2974 = vmatpush.msra.mxu0 %v203
    %2975 = vmatpush.msra.mxu0 %v199
    %2976 = vmatpush.msra.mxu0 %v195
    %2977 = vmatpush.msra.mxu0 %v191
    %2978 = vmatpush.msra.mxu0 %v187
    %2979 = vmatpush.msra.mxu0 %v183
    %2980 = vmatmul.f32.gmra.mxu0 %v2843
    %v2981 = vpop.f32.mrf.mxu0
    %v2982 = vadd.f32 %v446, %v2981
    %2983 = vdwg.mxu0
    %2984 = vmatpush.msra.mxu0 %v307
    %2985 = vmatpush.msra.mxu0 %v303
    %2986 = vmatpush.msra.mxu0 %v299
    %2987 = vmatpush.msra.mxu0 %v295
    %2988 = vmatpush.msra.mxu0 %v291
    %2989 = vmatpush.msra.mxu0 %v287
    %2990 = vmatpush.msra.mxu0 %v283
    %2991 = vmatpush.msra.mxu0 %v279
    %2992 = vmatpush.msra.mxu0 %v275
    %2993 = vmatpush.msra.mxu0 %v271
    %2994 = vmatpush.msra.mxu0 %v267
    %2995 = vmatpush.msra.mxu0 %v263
    %2996 = vmatpush.msra.mxu0 %v259
    %2997 = vmatpush.msra.mxu0 %v255
    %2998 = vmatpush.msra.mxu0 %v251
    %2999 = vmatpush.msra.mxu0 %v247
    %3000 = vmatmul.f32.gmra.mxu0 %v2837
    %v3001 = vpop.f32.mrf.mxu0
    %v3002 = vadd.f32 %v2982, %v3001
    %3003 = vdwg.mxu0
    %3004 = vmatpush.msra.mxu0 %v371
    %3005 = vmatpush.msra.mxu0 %v367
    %3006 = vmatpush.msra.mxu0 %v363
    %3007 = vmatpush.msra.mxu0 %v359
    %3008 = vmatpush.msra.mxu0 %v355
    %3009 = vmatpush.msra.mxu0 %v351
    %3010 = vmatpush.msra.mxu0 %v347
    %3011 = vmatpush.msra.mxu0 %v343
    %3012 = vmatpush.msra.mxu0 %v339
    %3013 = vmatpush.msra.mxu0 %v335
    %3014 = vmatpush.msra.mxu0 %v331
    %3015 = vmatpush.msra.mxu0 %v327
    %3016 = vmatpush.msra.mxu0 %v323
    %3017 = vmatpush.msra.mxu0 %v319
    %3018 = vmatpush.msra.mxu0 %v315
    %3019 = vmatpush.msra.mxu0 %v311
    %3020 = vmatmul.f32.gmra.mxu0 %v2747
    %v3021 = vpop.f32.mrf.mxu0
    %v3022 = vadd.f32 %v3002, %v3021
    %3023 = vdwg.mxu0
    %3024 = vmatpush.msra.mxu0 %v244
    %3025 = vmatpush.msra.mxu0 %v240
    %3026 = vmatpush.msra.mxu0 %v236
    %3027 = vmatpush.msra.mxu0 %v232
    %3028 = vmatpush.msra.mxu0 %v228
    %3029 = vmatpush.msra.mxu0 %v224
    %3030 = vmatpush.msra.mxu0 %v220
    %3031 = vmatpush.msra.mxu0 %v216
    %3032 = vmatpush.msra.mxu0 %v212
    %3033 = vmatpush.msra.mxu0 %v208
    %3034 = vmatpush.msra.mxu0 %v204
    %3035 = vmatpush.msra.mxu0 %v200
    %3036 = vmatpush.msra.mxu0 %v196
    %3037 = vmatpush.msra.mxu0 %v192
    %3038 = vmatpush.msra.mxu0 %v188
    %3039 = vmatpush.msra.mxu0 %v184
    %3040 = vmatmul.f32.gmra.mxu0 %v2843
    %v3041 = vpop.f32.mrf.mxu0
    %v3042 = vadd.f32 %v447, %v3041
    %3043 = vdwg.mxu0
    %3044 = vmatpush.msra.mxu0 %v308
    %3045 = vmatpush.msra.mxu0 %v304
    %3046 = vmatpush.msra.mxu0 %v300
    %3047 = vmatpush.msra.mxu0 %v296
    %3048 = vmatpush.msra.mxu0 %v292
    %3049 = vmatpush.msra.mxu0 %v288
    %3050 = vmatpush.msra.mxu0 %v284
    %3051 = vmatpush.msra.mxu0 %v280
    %3052 = vmatpush.msra.mxu0 %v276
    %3053 = vmatpush.msra.mxu0 %v272
    %3054 = vmatpush.msra.mxu0 %v268
    %3055 = vmatpush.msra.mxu0 %v264
    %3056 = vmatpush.msra.mxu0 %v260
    %3057 = vmatpush.msra.mxu0 %v256
    %3058 = vmatpush.msra.mxu0 %v252
    %3059 = vmatpush.msra.mxu0 %v248
    %3060 = vmatmul.f32.gmra.mxu0 %v2837
    %v3061 = vpop.f32.mrf.mxu0
    %v3062 = vadd.f32 %v3042, %v3061
    %3063 = vdwg.mxu0
    %3064 = vmatpush.msra.mxu0 %v372
    %3065 = vmatpush.msra.mxu0 %v368
    %3066 = vmatpush.msra.mxu0 %v364
    %3067 = vmatpush.msra.mxu0 %v360
    %3068 = vmatpush.msra.mxu0 %v356
    %3069 = vmatpush.msra.mxu0 %v352
    %3070 = vmatpush.msra.mxu0 %v348
    %3071 = vmatpush.msra.mxu0 %v344
    %3072 = vmatpush.msra.mxu0 %v340
    %3073 = vmatpush.msra.mxu0 %v336
    %3074 = vmatpush.msra.mxu0 %v332
    %3075 = vmatpush.msra.mxu0 %v328
    %3076 = vmatpush.msra.mxu0 %v324
    %3077 = vmatpush.msra.mxu0 %v320
    %3078 = vmatpush.msra.mxu0 %v316
    %3079 = vmatpush.msra.mxu0 %v312
    %3080 = vmatmul.f32.gmra.mxu0 %v2747
    %v3081 = vpop.f32.mrf.mxu0
    %v3082 = vadd.f32 %v3062, %v3081
    %3083 = vdwg.mxu0
    %v3084 = vxor.u32 %v2902, 2147483648
    %v3085 = vmul.f32 %v3084, 1.442695
    %v3086 = vpow.pop %v3085
    %v3087 = vadd.f32 %v3086, 1.0
    %v3088 = vrcp.pop %v3087
    %v3089 = vmul.f32 %v3087, %v3088
    %v3090 = vsub.f32 1.0, %v3089
    %v3091 = vmul.f32 %v3088, %v3090
    %v3092 = vadd.f32 %v3088, %v3091
    %vm3093 = vweird.f32 %v3087
    %vm3094 = vweird.f32 %v3088
    %vm3095 = vmor %vm3093, %vm3094
    %v3096 = vsel %vm3095, %v3088, %v3092
    %v3097 = vand.u32 2147483647, %v3087
    %vm3098 = vcmp.eq.f32.partialorder %v3097, 8.507059e+37
    %v3099 = vand.u32 %v3087, 2147483648
    %v3100 = vor.u32 1.1754944e-38, %v3099
    %v3101 = vsel %vm3098, %v3100, %v3096
    %v3102 = vmul.f32 1.0, %v3101
    %v3103 = vxor.u32 %v2962, 2147483648
    %v3104 = vmul.f32 %v3103, 1.442695
    %v3105 = vpow.pop %v3104
    %v3106 = vadd.f32 %v3105, 1.0
    %v3107 = vrcp.pop %v3106
    %v3108 = vmul.f32 %v3106, %v3107
    %v3109 = vsub.f32 1.0, %v3108
    %v3110 = vmul.f32 %v3107, %v3109
    %v3111 = vadd.f32 %v3107, %v3110
    %vm3112 = vweird.f32 %v3106
    %vm3113 = vweird.f32 %v3107
    %vm3114 = vmor %vm3112, %vm3113
    %v3115 = vsel %vm3114, %v3107, %v3111
    %v3116 = vand.u32 2147483647, %v3106
    %vm3117 = vcmp.eq.f32.partialorder %v3116, 8.507059e+37
    %v3118 = vand.u32 %v3106, 2147483648
    %v3119 = vor.u32 1.1754944e-38, %v3118
    %v3120 = vsel %vm3117, %v3119, %v3115
    %v3121 = vmul.f32 1.0, %v3120
    %v3122 = vtanh.pop %v3022
    %v3123 = vxor.u32 %v3082, 2147483648
    %v3124 = vmul.f32 %v3123, 1.442695
    %v3125 = vpow.pop %v3124
    %v3126 = vadd.f32 %v3125, 1.0
    %v3127 = vrcp.pop %v3126
    %v3128 = vmul.f32 %v3126, %v3127
    %v3129 = vsub.f32 1.0, %v3128
    %v3130 = vmul.f32 %v3127, %v3129
    %v3131 = vadd.f32 %v3127, %v3130
    %vm3132 = vweird.f32 %v3126
    %vm3133 = vweird.f32 %v3127
    %vm3134 = vmor %vm3132, %vm3133
    %v3135 = vsel %vm3134, %v3127, %v3131
    %v3136 = vand.u32 2147483647, %v3126
    %vm3137 = vcmp.eq.f32.partialorder %v3136, 8.507059e+37
    %v3138 = vand.u32 %v3126, 2147483648
    %v3139 = vor.u32 1.1754944e-38, %v3138
    %v3140 = vsel %vm3137, %v3139, %v3135
    %v3141 = vmul.f32 1.0, %v3140
    %v3142 = vmul.f32 %v3121, %v2745
    %v3143 = vmul.f32 %v3102, %v3122
    %v3144 = vadd.f32 %v3142, %v3143
    %v3145 = vtanh.pop %v3144
    %v3146 = vmul.f32 %v3141, %v3145
    %3147 = vmatpush.msra.mxu0 %v389
    %3148 = vmatpush.msra.mxu0 %v388
    %3149 = vmatpush.msra.mxu0 %v387
    %3150 = vmatpush.msra.mxu0 %v386
    %3151 = vmatpush.msra.mxu0 %v385
    %3152 = vmatpush.msra.mxu0 %v384
    %3153 = vmatpush.msra.mxu0 %v383
    %3154 = vmatpush.msra.mxu0 %v382
    %3155 = vmatpush.msra.mxu0 %v381
    %3156 = vmatpush.msra.mxu0 %v380
    %3157 = vmatpush.msra.mxu0 %v379
    %3158 = vmatpush.msra.mxu0 %v378
    %3159 = vmatpush.msra.mxu0 %v377
    %3160 = vmatpush.msra.mxu0 %v376
    %3161 = vmatpush.msra.mxu0 %v375
    %3162 = vmatpush.msra.mxu0 %v374
    %3163 = vmatmul.f32.gmra.mxu0 %v3146
    %v3164 = vpop.f32.mrf.mxu0
    %v3165 = vadd.f32 %v406, %v3164
    %3166 = vdwg.mxu0
    %3167 = vmax.xlane.f32.xlu0 %v3165
    %v3168 = vpop.xlane.xlu0 %3167
    %v3169 = vsub.f32 %v3165, %v3168
    %v3170 = vmul.f32 %v3169, 1.442695
    %v3171 = vpow.pop %v3170
    %3172 = vadd.xlane.f32.xlu0 %v3171
    %v3173 = vpop.xlane.xlu0 %3172
    %v3174 = vrcp.pop %v3173
    %v3175 = vmul.f32 %v3171, %v3174
    %3176 = vmatpush.msra.mxu0 %v405
    %3177 = vmatpush.msra.mxu0 %v404
    %3178 = vmatpush.msra.mxu0 %v403
    %3179 = vmatpush.msra.mxu0 %v402
    %3180 = vmatpush.msra.mxu0 %v401
    %3181 = vmatpush.msra.mxu0 %v400
    %3182 = vmatpush.msra.mxu0 %v399
    %3183 = vmatpush.msra.mxu0 %v398
    %3184 = vmatpush.msra.mxu0 %v397
    %3185 = vmatpush.msra.mxu0 %v396
    %3186 = vmatpush.msra.mxu0 %v395
    %3187 = vmatpush.msra.mxu0 %v394
    %3188 = vmatpush.msra.mxu0 %v393
    %3189 = vmatpush.msra.mxu0 %v392
    %3190 = vmatpush.msra.mxu0 %v391
    %3191 = vmatpush.msra.mxu0 %v390
    %3192 = vmatmul.f32.gmra.mxu0 %v3175
    %v3193 = vpop.f32.mrf.mxu0
    %v3194 = vadd.f32 0.0, %v3193
    %3195 = vdwg.mxu0
    %3196 = vmatpush.msra.mxu0 %v422
    %3197 = vmatpush.msra.mxu0 %v421
    %3198 = vmatpush.msra.mxu0 %v420
    %3199 = vmatpush.msra.mxu0 %v419
    %3200 = vmatpush.msra.mxu0 %v418
    %3201 = vmatpush.msra.mxu0 %v417
    %3202 = vmatpush.msra.mxu0 %v416
    %3203 = vmatpush.msra.mxu0 %v415
    %3204 = vmatpush.msra.mxu0 %v414
    %3205 = vmatpush.msra.mxu0 %v413
    %3206 = vmatpush.msra.mxu0 %v412
    %3207 = vmatpush.msra.mxu0 %v411
    %3208 = vmatpush.msra.mxu0 %v410
    %3209 = vmatpush.msra.mxu0 %v409
    %3210 = vmatpush.msra.mxu0 %v408
    %3211 = vmatpush.msra.mxu0 %v407
    %3212 = vmatmul.f32.gmra.mxu0 %v3194
    %v3213 = vpop.f32.mrf.mxu0
    %v3214 = vadd.f32 0.0, %v3213
    %3215 = vdwg.mxu0
    %3216 = vmatpush.msra.mxu0 %v438
    %3217 = vmatpush.msra.mxu0 %v437
    %3218 = vmatpush.msra.mxu0 %v436
    %3219 = vmatpush.msra.mxu0 %v435
    %3220 = vmatpush.msra.mxu0 %v434
    %3221 = vmatpush.msra.mxu0 %v433
    %3222 = vmatpush.msra.mxu0 %v432
    %3223 = vmatpush.msra.mxu0 %v431
    %3224 = vmatpush.msra.mxu0 %v430
    %3225 = vmatpush.msra.mxu0 %v429
    %3226 = vmatpush.msra.mxu0 %v428
    %3227 = vmatpush.msra.mxu0 %v427
    %3228 = vmatpush.msra.mxu0 %v426
    %3229 = vmatpush.msra.mxu0 %v425
    %3230 = vmatpush.msra.mxu0 %v424
    %3231 = vmatpush.msra.mxu0 %v423
    %3232 = vmatmul.f32.gmra.mxu0 %v3146
    %v3233 = vpop.f32.mrf.mxu0
    %v3234 = vadd.f32 %v3214, %v3233
    %3235 = vdwg.mxu0
    %v3236 = vtanh.pop %v3234
    %s3237 = scalar_lea.vmem [#allocation20], 48
    %3238 = vst [vmem:[%s3237] sm:$0xff] %v3236
    %s3239 = scalar_lea.vmem [#allocation21], 48
    %3240 = vst [vmem:[%s3239] sm:$0xff] %v3175
    %s3241 = scalar_lea.vmem [#allocation5], 56
    %v3242 = vld [vmem:[%s3241] sm:$0xff]
    %3243 = vmatpush.msra.mxu0 %v241
    %3244 = vmatpush.msra.mxu0 %v237
    %3245 = vmatpush.msra.mxu0 %v233
    %3246 = vmatpush.msra.mxu0 %v229
    %3247 = vmatpush.msra.mxu0 %v225
    %3248 = vmatpush.msra.mxu0 %v221
    %3249 = vmatpush.msra.mxu0 %v217
    %3250 = vmatpush.msra.mxu0 %v213
    %3251 = vmatpush.msra.mxu0 %v209
    %3252 = vmatpush.msra.mxu0 %v205
    %3253 = vmatpush.msra.mxu0 %v201
    %3254 = vmatpush.msra.mxu0 %v197
    %3255 = vmatpush.msra.mxu0 %v193
    %3256 = vmatpush.msra.mxu0 %v189
    %3257 = vmatpush.msra.mxu0 %v185
    %3258 = vmatpush.msra.mxu0 %v181
    %3259 = vmatmul.f32.gmra.mxu0 %v3242
    %v3260 = vpop.f32.mrf.mxu0
    %v3261 = vadd.f32 %v444, %v3260
    %3262 = vdwg.mxu0
    %3263 = vmatpush.msra.mxu0 %v305
    %3264 = vmatpush.msra.mxu0 %v301
    %3265 = vmatpush.msra.mxu0 %v297
    %3266 = vmatpush.msra.mxu0 %v293
    %3267 = vmatpush.msra.mxu0 %v289
    %3268 = vmatpush.msra.mxu0 %v285
    %3269 = vmatpush.msra.mxu0 %v281
    %3270 = vmatpush.msra.mxu0 %v277
    %3271 = vmatpush.msra.mxu0 %v273
    %3272 = vmatpush.msra.mxu0 %v269
    %3273 = vmatpush.msra.mxu0 %v265
    %3274 = vmatpush.msra.mxu0 %v261
    %3275 = vmatpush.msra.mxu0 %v257
    %3276 = vmatpush.msra.mxu0 %v253
    %3277 = vmatpush.msra.mxu0 %v249
    %3278 = vmatpush.msra.mxu0 %v245
    %3279 = vmatmul.f32.gmra.mxu0 %v3236
    %v3280 = vpop.f32.mrf.mxu0
    %v3281 = vadd.f32 %v3261, %v3280
    %3282 = vdwg.mxu0
    %3283 = vmatpush.msra.mxu0 %v369
    %3284 = vmatpush.msra.mxu0 %v365
    %3285 = vmatpush.msra.mxu0 %v361
    %3286 = vmatpush.msra.mxu0 %v357
    %3287 = vmatpush.msra.mxu0 %v353
    %3288 = vmatpush.msra.mxu0 %v349
    %3289 = vmatpush.msra.mxu0 %v345
    %3290 = vmatpush.msra.mxu0 %v341
    %3291 = vmatpush.msra.mxu0 %v337
    %3292 = vmatpush.msra.mxu0 %v333
    %3293 = vmatpush.msra.mxu0 %v329
    %3294 = vmatpush.msra.mxu0 %v325
    %3295 = vmatpush.msra.mxu0 %v321
    %3296 = vmatpush.msra.mxu0 %v317
    %3297 = vmatpush.msra.mxu0 %v313
    %3298 = vmatpush.msra.mxu0 %v309
    %3299 = vmatmul.f32.gmra.mxu0 %v3146
    %v3300 = vpop.f32.mrf.mxu0
    %v3301 = vadd.f32 %v3281, %v3300
    %3302 = vdwg.mxu0
    %3303 = vmatpush.msra.mxu0 %v242
    %3304 = vmatpush.msra.mxu0 %v238
    %3305 = vmatpush.msra.mxu0 %v234
    %3306 = vmatpush.msra.mxu0 %v230
    %3307 = vmatpush.msra.mxu0 %v226
    %3308 = vmatpush.msra.mxu0 %v222
    %3309 = vmatpush.msra.mxu0 %v218
    %3310 = vmatpush.msra.mxu0 %v214
    %3311 = vmatpush.msra.mxu0 %v210
    %3312 = vmatpush.msra.mxu0 %v206
    %3313 = vmatpush.msra.mxu0 %v202
    %3314 = vmatpush.msra.mxu0 %v198
    %3315 = vmatpush.msra.mxu0 %v194
    %3316 = vmatpush.msra.mxu0 %v190
    %3317 = vmatpush.msra.mxu0 %v186
    %3318 = vmatpush.msra.mxu0 %v182
    %3319 = vmatmul.f32.gmra.mxu0 %v3242
    %v3320 = vpop.f32.mrf.mxu0
    %v3321 = vadd.f32 %v445, %v3320
    %3322 = vdwg.mxu0
    %3323 = vmatpush.msra.mxu0 %v306
    %3324 = vmatpush.msra.mxu0 %v302
    %3325 = vmatpush.msra.mxu0 %v298
    %3326 = vmatpush.msra.mxu0 %v294
    %3327 = vmatpush.msra.mxu0 %v290
    %3328 = vmatpush.msra.mxu0 %v286
    %3329 = vmatpush.msra.mxu0 %v282
    %3330 = vmatpush.msra.mxu0 %v278
    %3331 = vmatpush.msra.mxu0 %v274
    %3332 = vmatpush.msra.mxu0 %v270
    %3333 = vmatpush.msra.mxu0 %v266
    %3334 = vmatpush.msra.mxu0 %v262
    %3335 = vmatpush.msra.mxu0 %v258
    %3336 = vmatpush.msra.mxu0 %v254
    %3337 = vmatpush.msra.mxu0 %v250
    %3338 = vmatpush.msra.mxu0 %v246
    %3339 = vmatmul.f32.gmra.mxu0 %v3236
    %v3340 = vpop.f32.mrf.mxu0
    %v3341 = vadd.f32 %v3321, %v3340
    %3342 = vdwg.mxu0
    %3343 = vmatpush.msra.mxu0 %v370
    %3344 = vmatpush.msra.mxu0 %v366
    %3345 = vmatpush.msra.mxu0 %v362
    %3346 = vmatpush.msra.mxu0 %v358
    %3347 = vmatpush.msra.mxu0 %v354
    %3348 = vmatpush.msra.mxu0 %v350
    %3349 = vmatpush.msra.mxu0 %v346
    %3350 = vmatpush.msra.mxu0 %v342
    %3351 = vmatpush.msra.mxu0 %v338
    %3352 = vmatpush.msra.mxu0 %v334
    %3353 = vmatpush.msra.mxu0 %v330
    %3354 = vmatpush.msra.mxu0 %v326
    %3355 = vmatpush.msra.mxu0 %v322
    %3356 = vmatpush.msra.mxu0 %v318
    %3357 = vmatpush.msra.mxu0 %v314
    %3358 = vmatpush.msra.mxu0 %v310
    %3359 = vmatmul.f32.gmra.mxu0 %v3146
    %v3360 = vpop.f32.mrf.mxu0
    %v3361 = vadd.f32 %v3341, %v3360
    %3362 = vdwg.mxu0
    %3363 = vmatpush.msra.mxu0 %v243
    %3364 = vmatpush.msra.mxu0 %v239
    %3365 = vmatpush.msra.mxu0 %v235
    %3366 = vmatpush.msra.mxu0 %v231
    %3367 = vmatpush.msra.mxu0 %v227
    %3368 = vmatpush.msra.mxu0 %v223
    %3369 = vmatpush.msra.mxu0 %v219
    %3370 = vmatpush.msra.mxu0 %v215
    %3371 = vmatpush.msra.mxu0 %v211
    %3372 = vmatpush.msra.mxu0 %v207
    %3373 = vmatpush.msra.mxu0 %v203
    %3374 = vmatpush.msra.mxu0 %v199
    %3375 = vmatpush.msra.mxu0 %v195
    %3376 = vmatpush.msra.mxu0 %v191
    %3377 = vmatpush.msra.mxu0 %v187
    %3378 = vmatpush.msra.mxu0 %v183
    %3379 = vmatmul.f32.gmra.mxu0 %v3242
    %v3380 = vpop.f32.mrf.mxu0
    %v3381 = vadd.f32 %v446, %v3380
    %3382 = vdwg.mxu0
    %3383 = vmatpush.msra.mxu0 %v307
    %3384 = vmatpush.msra.mxu0 %v303
    %3385 = vmatpush.msra.mxu0 %v299
    %3386 = vmatpush.msra.mxu0 %v295
    %3387 = vmatpush.msra.mxu0 %v291
    %3388 = vmatpush.msra.mxu0 %v287
    %3389 = vmatpush.msra.mxu0 %v283
    %3390 = vmatpush.msra.mxu0 %v279
    %3391 = vmatpush.msra.mxu0 %v275
    %3392 = vmatpush.msra.mxu0 %v271
    %3393 = vmatpush.msra.mxu0 %v267
    %3394 = vmatpush.msra.mxu0 %v263
    %3395 = vmatpush.msra.mxu0 %v259
    %3396 = vmatpush.msra.mxu0 %v255
    %3397 = vmatpush.msra.mxu0 %v251
    %3398 = vmatpush.msra.mxu0 %v247
    %3399 = vmatmul.f32.gmra.mxu0 %v3236
    %v3400 = vpop.f32.mrf.mxu0
    %v3401 = vadd.f32 %v3381, %v3400
    %3402 = vdwg.mxu0
    %3403 = vmatpush.msra.mxu0 %v371
    %3404 = vmatpush.msra.mxu0 %v367
    %3405 = vmatpush.msra.mxu0 %v363
    %3406 = vmatpush.msra.mxu0 %v359
    %3407 = vmatpush.msra.mxu0 %v355
    %3408 = vmatpush.msra.mxu0 %v351
    %3409 = vmatpush.msra.mxu0 %v347
    %3410 = vmatpush.msra.mxu0 %v343
    %3411 = vmatpush.msra.mxu0 %v339
    %3412 = vmatpush.msra.mxu0 %v335
    %3413 = vmatpush.msra.mxu0 %v331
    %3414 = vmatpush.msra.mxu0 %v327
    %3415 = vmatpush.msra.mxu0 %v323
    %3416 = vmatpush.msra.mxu0 %v319
    %3417 = vmatpush.msra.mxu0 %v315
    %3418 = vmatpush.msra.mxu0 %v311
    %3419 = vmatmul.f32.gmra.mxu0 %v3146
    %v3420 = vpop.f32.mrf.mxu0
    %v3421 = vadd.f32 %v3401, %v3420
    %3422 = vdwg.mxu0
    %3423 = vmatpush.msra.mxu0 %v244
    %3424 = vmatpush.msra.mxu0 %v240
    %3425 = vmatpush.msra.mxu0 %v236
    %3426 = vmatpush.msra.mxu0 %v232
    %3427 = vmatpush.msra.mxu0 %v228
    %3428 = vmatpush.msra.mxu0 %v224
    %3429 = vmatpush.msra.mxu0 %v220
    %3430 = vmatpush.msra.mxu0 %v216
    %3431 = vmatpush.msra.mxu0 %v212
    %3432 = vmatpush.msra.mxu0 %v208
    %3433 = vmatpush.msra.mxu0 %v204
    %3434 = vmatpush.msra.mxu0 %v200
    %3435 = vmatpush.msra.mxu0 %v196
    %3436 = vmatpush.msra.mxu0 %v192
    %3437 = vmatpush.msra.mxu0 %v188
    %3438 = vmatpush.msra.mxu0 %v184
    %3439 = vmatmul.f32.gmra.mxu0 %v3242
    %v3440 = vpop.f32.mrf.mxu0
    %v3441 = vadd.f32 %v447, %v3440
    %3442 = vdwg.mxu0
    %3443 = vmatpush.msra.mxu0 %v308
    %3444 = vmatpush.msra.mxu0 %v304
    %3445 = vmatpush.msra.mxu0 %v300
    %3446 = vmatpush.msra.mxu0 %v296
    %3447 = vmatpush.msra.mxu0 %v292
    %3448 = vmatpush.msra.mxu0 %v288
    %3449 = vmatpush.msra.mxu0 %v284
    %3450 = vmatpush.msra.mxu0 %v280
    %3451 = vmatpush.msra.mxu0 %v276
    %3452 = vmatpush.msra.mxu0 %v272
    %3453 = vmatpush.msra.mxu0 %v268
    %3454 = vmatpush.msra.mxu0 %v264
    %3455 = vmatpush.msra.mxu0 %v260
    %3456 = vmatpush.msra.mxu0 %v256
    %3457 = vmatpush.msra.mxu0 %v252
    %3458 = vmatpush.msra.mxu0 %v248
    %3459 = vmatmul.f32.gmra.mxu0 %v3236
    %v3460 = vpop.f32.mrf.mxu0
    %v3461 = vadd.f32 %v3441, %v3460
    %3462 = vdwg.mxu0
    %3463 = vmatpush.msra.mxu0 %v372
    %3464 = vmatpush.msra.mxu0 %v368
    %3465 = vmatpush.msra.mxu0 %v364
    %3466 = vmatpush.msra.mxu0 %v360
    %3467 = vmatpush.msra.mxu0 %v356
    %3468 = vmatpush.msra.mxu0 %v352
    %3469 = vmatpush.msra.mxu0 %v348
    %3470 = vmatpush.msra.mxu0 %v344
    %3471 = vmatpush.msra.mxu0 %v340
    %3472 = vmatpush.msra.mxu0 %v336
    %3473 = vmatpush.msra.mxu0 %v332
    %3474 = vmatpush.msra.mxu0 %v328
    %3475 = vmatpush.msra.mxu0 %v324
    %3476 = vmatpush.msra.mxu0 %v320
    %3477 = vmatpush.msra.mxu0 %v316
    %3478 = vmatpush.msra.mxu0 %v312
    %3479 = vmatmul.f32.gmra.mxu0 %v3146
    %v3480 = vpop.f32.mrf.mxu0
    %v3481 = vadd.f32 %v3461, %v3480
    %3482 = vdwg.mxu0
    %v3483 = vxor.u32 %v3301, 2147483648
    %v3484 = vmul.f32 %v3483, 1.442695
    %v3485 = vpow.pop %v3484
    %v3486 = vadd.f32 %v3485, 1.0
    %v3487 = vrcp.pop %v3486
    %v3488 = vmul.f32 %v3486, %v3487
    %v3489 = vsub.f32 1.0, %v3488
    %v3490 = vmul.f32 %v3487, %v3489
    %v3491 = vadd.f32 %v3487, %v3490
    %vm3492 = vweird.f32 %v3486
    %vm3493 = vweird.f32 %v3487
    %vm3494 = vmor %vm3492, %vm3493
    %v3495 = vsel %vm3494, %v3487, %v3491
    %v3496 = vand.u32 2147483647, %v3486
    %vm3497 = vcmp.eq.f32.partialorder %v3496, 8.507059e+37
    %v3498 = vand.u32 %v3486, 2147483648
    %v3499 = vor.u32 1.1754944e-38, %v3498
    %v3500 = vsel %vm3497, %v3499, %v3495
    %v3501 = vmul.f32 1.0, %v3500
    %v3502 = vxor.u32 %v3361, 2147483648
    %v3503 = vmul.f32 %v3502, 1.442695
    %v3504 = vpow.pop %v3503
    %v3505 = vadd.f32 %v3504, 1.0
    %v3506 = vrcp.pop %v3505
    %v3507 = vmul.f32 %v3505, %v3506
    %v3508 = vsub.f32 1.0, %v3507
    %v3509 = vmul.f32 %v3506, %v3508
    %v3510 = vadd.f32 %v3506, %v3509
    %vm3511 = vweird.f32 %v3505
    %vm3512 = vweird.f32 %v3506
    %vm3513 = vmor %vm3511, %vm3512
    %v3514 = vsel %vm3513, %v3506, %v3510
    %v3515 = vand.u32 2147483647, %v3505
    %vm3516 = vcmp.eq.f32.partialorder %v3515, 8.507059e+37
    %v3517 = vand.u32 %v3505, 2147483648
    %v3518 = vor.u32 1.1754944e-38, %v3517
    %v3519 = vsel %vm3516, %v3518, %v3514
    %v3520 = vmul.f32 1.0, %v3519
    %v3521 = vtanh.pop %v3421
    %v3522 = vxor.u32 %v3481, 2147483648
    %v3523 = vmul.f32 %v3522, 1.442695
    %v3524 = vpow.pop %v3523
    %v3525 = vadd.f32 %v3524, 1.0
    %v3526 = vrcp.pop %v3525
    %v3527 = vmul.f32 %v3525, %v3526
    %v3528 = vsub.f32 1.0, %v3527
    %v3529 = vmul.f32 %v3526, %v3528
    %v3530 = vadd.f32 %v3526, %v3529
    %vm3531 = vweird.f32 %v3525
    %vm3532 = vweird.f32 %v3526
    %vm3533 = vmor %vm3531, %vm3532
    %v3534 = vsel %vm3533, %v3526, %v3530
    %v3535 = vand.u32 2147483647, %v3525
    %vm3536 = vcmp.eq.f32.partialorder %v3535, 8.507059e+37
    %v3537 = vand.u32 %v3525, 2147483648
    %v3538 = vor.u32 1.1754944e-38, %v3537
    %v3539 = vsel %vm3536, %v3538, %v3534
    %v3540 = vmul.f32 1.0, %v3539
    %v3541 = vmul.f32 %v3520, %v3144
    %v3542 = vmul.f32 %v3501, %v3521
    %v3543 = vadd.f32 %v3541, %v3542
    %v3544 = vtanh.pop %v3543
    %v3545 = vmul.f32 %v3540, %v3544
    %3546 = vmatpush.msra.mxu0 %v389
    %3547 = vmatpush.msra.mxu0 %v388
    %3548 = vmatpush.msra.mxu0 %v387
    %3549 = vmatpush.msra.mxu0 %v386
    %3550 = vmatpush.msra.mxu0 %v385
    %3551 = vmatpush.msra.mxu0 %v384
    %3552 = vmatpush.msra.mxu0 %v383
    %3553 = vmatpush.msra.mxu0 %v382
    %3554 = vmatpush.msra.mxu0 %v381
    %3555 = vmatpush.msra.mxu0 %v380
    %3556 = vmatpush.msra.mxu0 %v379
    %3557 = vmatpush.msra.mxu0 %v378
    %3558 = vmatpush.msra.mxu0 %v377
    %3559 = vmatpush.msra.mxu0 %v376
    %3560 = vmatpush.msra.mxu0 %v375
    %3561 = vmatpush.msra.mxu0 %v374
    %3562 = vmatmul.f32.gmra.mxu0 %v3545
    %v3563 = vpop.f32.mrf.mxu0
    %v3564 = vadd.f32 %v406, %v3563
    %3565 = vdwg.mxu0
    %3566 = vmax.xlane.f32.xlu0 %v3564
    %v3567 = vpop.xlane.xlu0 %3566
    %v3568 = vsub.f32 %v3564, %v3567
    %v3569 = vmul.f32 %v3568, 1.442695
    %v3570 = vpow.pop %v3569
    %3571 = vadd.xlane.f32.xlu0 %v3570
    %v3572 = vpop.xlane.xlu0 %3571
    %v3573 = vrcp.pop %v3572
    %v3574 = vmul.f32 %v3570, %v3573
    %3575 = vmatpush.msra.mxu0 %v405
    %3576 = vmatpush.msra.mxu0 %v404
    %3577 = vmatpush.msra.mxu0 %v403
    %3578 = vmatpush.msra.mxu0 %v402
    %3579 = vmatpush.msra.mxu0 %v401
    %3580 = vmatpush.msra.mxu0 %v400
    %3581 = vmatpush.msra.mxu0 %v399
    %3582 = vmatpush.msra.mxu0 %v398
    %3583 = vmatpush.msra.mxu0 %v397
    %3584 = vmatpush.msra.mxu0 %v396
    %3585 = vmatpush.msra.mxu0 %v395
    %3586 = vmatpush.msra.mxu0 %v394
    %3587 = vmatpush.msra.mxu0 %v393
    %3588 = vmatpush.msra.mxu0 %v392
    %3589 = vmatpush.msra.mxu0 %v391
    %3590 = vmatpush.msra.mxu0 %v390
    %3591 = vmatmul.f32.gmra.mxu0 %v3574
    %v3592 = vpop.f32.mrf.mxu0
    %v3593 = vadd.f32 0.0, %v3592
    %3594 = vdwg.mxu0
    %3595 = vmatpush.msra.mxu0 %v422
    %3596 = vmatpush.msra.mxu0 %v421
    %3597 = vmatpush.msra.mxu0 %v420
    %3598 = vmatpush.msra.mxu0 %v419
    %3599 = vmatpush.msra.mxu0 %v418
    %3600 = vmatpush.msra.mxu0 %v417
    %3601 = vmatpush.msra.mxu0 %v416
    %3602 = vmatpush.msra.mxu0 %v415
    %3603 = vmatpush.msra.mxu0 %v414
    %3604 = vmatpush.msra.mxu0 %v413
    %3605 = vmatpush.msra.mxu0 %v412
    %3606 = vmatpush.msra.mxu0 %v411
    %3607 = vmatpush.msra.mxu0 %v410
    %3608 = vmatpush.msra.mxu0 %v409
    %3609 = vmatpush.msra.mxu0 %v408
    %3610 = vmatpush.msra.mxu0 %v407
    %3611 = vmatmul.f32.gmra.mxu0 %v3593
    %v3612 = vpop.f32.mrf.mxu0
    %v3613 = vadd.f32 0.0, %v3612
    %3614 = vdwg.mxu0
    %3615 = vmatpush.msra.mxu0 %v438
    %3616 = vmatpush.msra.mxu0 %v437
    %3617 = vmatpush.msra.mxu0 %v436
    %3618 = vmatpush.msra.mxu0 %v435
    %3619 = vmatpush.msra.mxu0 %v434
    %3620 = vmatpush.msra.mxu0 %v433
    %3621 = vmatpush.msra.mxu0 %v432
    %3622 = vmatpush.msra.mxu0 %v431
    %3623 = vmatpush.msra.mxu0 %v430
    %3624 = vmatpush.msra.mxu0 %v429
    %3625 = vmatpush.msra.mxu0 %v428
    %3626 = vmatpush.msra.mxu0 %v427
    %3627 = vmatpush.msra.mxu0 %v426
    %3628 = vmatpush.msra.mxu0 %v425
    %3629 = vmatpush.msra.mxu0 %v424
    %3630 = vmatpush.msra.mxu0 %v423
    %3631 = vmatmul.f32.gmra.mxu0 %v3545
    %v3632 = vpop.f32.mrf.mxu0
    %v3633 = vadd.f32 %v3613, %v3632
    %3634 = vdwg.mxu0
    %v3635 = vtanh.pop %v3633
    %s3636 = scalar_lea.vmem [#allocation20], 56
    %3637 = vst [vmem:[%s3636] sm:$0xff] %v3635
    %s3638 = scalar_lea.vmem [#allocation21], 56
    %3639 = vst [vmem:[%s3638] sm:$0xff] %v3574
    %3640 = vst [vmem:[#allocation2] sm:$0xff] %v3545
    %3641 = vst [vmem:[#allocation3] sm:$0xff] %v3543
    %3642 = vst [vmem:[#allocation4] sm:$0xff] %v3635
    // Predicated region
    $region82: #{tpu_custom_call.1} parent=1 // pred_check
      _
    $region83: #{tpu_custom_call.1} parent=1 // pred_check_branch
      %3644 = sbr.rel (0) target = $region85
    $region84: #{tpu_custom_call.1} parent=1 // pred_region
      %3646 = vsyncadd [#allocation7], 0
      %s3647 = sshll.u32 [#allocation20], 4
      %s3648 = int_to_ptr.vmem [resolvable:$true] %s3647
      %s3649 = sshll.u32 %s10, 4
      %s3650 = int_to_ptr.hbm [resolvable:$true] %s3649
      %3655 = dma.vmem_to_hbm [thread:$0]  %s3648, 1024, %s3650, [#allocation7], 128, 128, 8
    $region85: #{tpu_custom_call.1} parent=1 // pred_fallthru
      _
    // Predicated region
    $region86: #{tpu_custom_call.1} parent=1 // pred_check
      _
    $region87: #{tpu_custom_call.1} parent=1 // pred_check_branch
      %3657 = sbr.rel (0) target = $region89
    $region88: #{tpu_custom_call.1} parent=1 // pred_region
      %3659 = vsyncadd [#allocation22], 0
      %s3660 = sshll.u32 [#allocation21], 4
      %s3661 = int_to_ptr.vmem [resolvable:$true] %s3660
      %s3662 = sshll.u32 %s11, 4
      %s3663 = int_to_ptr.hbm [resolvable:$true] %s3662
      %3668 = dma.vmem_to_hbm [thread:$0]  %s3661, 1024, %s3663, [#allocation22], 128, 128, 8
    $region89: #{tpu_custom_call.1} parent=1 // pred_fallthru
      _
    // Predicated region
    $region90: #{tpu_custom_call.1} parent=1 // pred_check
      _
    $region91: #{tpu_custom_call.1} parent=1 // pred_check_branch
      %3670 = sbr.rel (0) target = $region93
    $region92: #{tpu_custom_call.1} parent=1 // pred_region
      %3672 = dma.done [#allocation7], 1024
    $region93: #{tpu_custom_call.1} parent=1 // pred_fallthru
      _
    // Predicated region
    $region94: #{tpu_custom_call.1} parent=1 // pred_check
      _
    $region95: #{tpu_custom_call.1} parent=1 // pred_check_branch
      %3674 = sbr.rel (0) target = $region97
    $region96: #{tpu_custom_call.1} parent=1 // pred_region
      %3676 = dma.done [#allocation22], 1024
    $region97: #{tpu_custom_call.1} parent=1 // pred_fallthru
      _
    %3677 = vsyncpa [#allocation6], 1
    %3678 = vsyncpa [#allocation9], 1
    %3679 = vsyncpa [#allocation12], 1
    %3680 = vsyncpa [#allocation15], 1
    %3681 = vsyncpa [#allocation18], 1
    %3682 = vsyncpa [#allocation7], 1
    %3683 = vsyncpa [#allocation22], 1

</llo_original>
